<compile_context>
chip_gen: v7x
topology: tpu7x:2x2x1
jax: 0.10.0
libtpu: 0.0.40
codegen_flags: <defaults>
</compile_context>

<pallas_src>
import jax
import jax.numpy as jnp
from jax import lax
from jax.experimental import pallas as pl
from jax.experimental.pallas import tpu as pltpu

# ----- hyper-parameters (small, consistent with the module's forward) -----
N_VOCAB  = 128
N_HEADS  = 6
KV_HEADS = 2
REPEAT   = N_HEADS // KV_HEADS        # reference hard-codes repeat(1,1,3) -> must be 3
HEAD_DIM = 16
N_EMBED  = N_HEADS * HEAD_DIM         # 96
N_LAYERS = 2
HIDDEN   = 256
MAX_LEN  = 32
THETA    = 10000.0
EPS      = 1e-5
ROPE_DIM = HEAD_DIM * REPEAT          # 48 -- per-kv-group attention width

C_PAD = 128                            # lane-dense channel dim (96 -> 128)
D_PAD = 128                            # lane-dense per-group width (48 -> 128)
GW    = KV_HEADS * D_PAD               # 256: all groups, group g in lanes [g*128, g*128+48)

B, T = 2, 8                            # batch, sequence (T < MAX_LEN)

assert REPEAT == 3
assert N_EMBED == N_HEADS * HEAD_DIM
assert T < MAX_LEN


# ---------------------------------------------------------------------------
# Host-side weight / table preparation (exact algebraic rewrites only)
# ---------------------------------------------------------------------------
def pad_rows(w, new_rows):
    return jnp.zeros((new_rows, w.shape[1]), w.dtype).at[: w.shape[0], :].set(w)


def pad_cols(w, new_cols):
    return jnp.zeros((w.shape[0], new_cols), w.dtype).at[:, : w.shape[1]].set(w)


def pair_swap_cols(w):
    """Fold the interleaved-RoPE pair swap (2j <-> 2j+1) into the weight columns."""
    n = w.shape[1]
    idx = jnp.arange(n)
    swapped = idx + jnp.where(idx % 2 == 0, 1, -1)
    return w[:, swapped]


def group_pad_cols(w, group_width, padded_width):
    """(C, G*gw) -> (C, G*pw): group g's gw columns land at [g*pw, g*pw+gw), rest zero."""
    c, n = w.shape
    g = n // group_width
    out = jnp.zeros((c, g * padded_width), w.dtype)
    for i in range(g):
        out = out.at[:, i * padded_width:i * padded_width + group_width].set(
            w[:, i * group_width:(i + 1) * group_width])
    return out


def group_pad_rows(w, group_width, padded_width):
    """(G*gw, N) -> (G*pw, N): group g's gw rows land at [g*pw, g*pw+gw), rest zero."""
    n, m = w.shape
    g = n // group_width
    out = jnp.zeros((g * padded_width, m), w.dtype)
    for i in range(g):
        out = out.at[i * padded_width:i * padded_width + group_width, :].set(
            w[i * group_width:(i + 1) * group_width, :])
    return out


def make_rope_tables(seq_len, dim, n_groups, pad, theta=THETA):
    """Interleaved RoPE:  out[2j] = x[2j]cos_j - x[2j+1]sin_j,
                          out[2j+1] = x[2j]sin_j + x[2j+1]cos_j.
    Implemented as  out = x*cos_full + x_swapped*sin_signed.  Tables are built
    for the 48-wide group, zero-padded to 128 lanes and tiled per kv-group so
    they align with the group-block-padded q / repeated-k layout."""
    j = jnp.arange(0, dim, 2, dtype=jnp.float32)
    ang = 1.0 / theta ** (j / dim)                         # (dim/2,)
    t = jnp.arange(seq_len, dtype=jnp.float32)
    phase = t[:, None] * ang[None, :]                      # (T, dim/2)
    cos_full = jnp.repeat(jnp.cos(phase), 2, axis=-1)      # (T, dim)
    sin_full = jnp.repeat(jnp.sin(phase), 2, axis=-1)
    sign = jnp.tile(jnp.array([-1.0, 1.0], jnp.float32), dim // 2)
    sin_signed = sin_full * sign[None, :]
    cos_pad = jnp.zeros((seq_len, pad), jnp.float32).at[:, :dim].set(cos_full)
    sin_pad = jnp.zeros((seq_len, pad), jnp.float32).at[:, :dim].set(sin_signed)
    return jnp.tile(cos_pad, (1, n_groups)), jnp.tile(sin_pad, (1, n_groups))


# ---------------------------------------------------------------------------
# Fused Pallas kernel: embedding -> N_LAYERS decoders -> lm_head
# ---------------------------------------------------------------------------
def smollm_kernel(ids_ref, emb_ref, g1_ref, g2_ref, wqkv_ref, wo_ref, wgu_ref,
                  wd_ref, cos_ref, sin_ref, lmw_ref, lmb_ref, o_ref):
    Bq, Tq, V = o_ref.shape
    BT = Bq * Tq
    scale = 1.0 / (float(ROPE_DIM) ** 0.5)

    # ---- embedding lookup as an exact one-hot matmul (stays in-kernel) ----
    ids = ids_ref[...]                                                # (BT, 1) int32
    onehot = (ids == lax.broadcasted_iota(jnp.int32, (BT, N_VOCAB), 1)
              ).astype(jnp.float32)
    h = jnp.dot(onehot, emb_ref[...],
                preferred_element_type=jnp.float32).reshape(Bq, Tq, C_PAD)

    # shared causal mask / RoPE tables
    row = lax.broadcasted_iota(jnp.int32, (Tq, Tq), 0)
    col = lax.broadcasted_iota(jnp.int32, (Tq, Tq), 1)
    causal = (col <= row).reshape(1, Tq, Tq)
    cosf = cos_ref[...].reshape(1, Tq, GW)
    sinf = sin_ref[...].reshape(1, Tq, GW)

    for l in range(N_LAYERS):                                         # static unroll
        # ---- input RMSNorm (mean-of-squares over SEQ axis, eps outside sqrt) ----
        rms = jnp.sqrt(jnp.mean(h * h, axis=1, keepdims=True))        # (B,1,C)
        hn = h * pl.reciprocal(rms + EPS, approx=True) * g1_ref[l]
        hn2 = hn.reshape(BT, C_PAD)

        # ---- fused q/k/v + RoPE-swap projections: one wide MXU matmul ----
        proj = jnp.dot(hn2, wqkv_ref[l], preferred_element_type=jnp.float32)
        q2 = proj[:, 0 * GW:1 * GW].reshape(Bq, Tq, GW)
        k2 = proj[:, 1 * GW:2 * GW].reshape(Bq, Tq, GW)
        v2 = proj[:, 2 * GW:3 * GW].reshape(Bq, Tq, GW)
        qs = proj[:, 3 * GW:4 * GW].reshape(Bq, Tq, GW)   # pair-swapped q (folded perm)
        ks = proj[:, 4 * GW:5 * GW].reshape(Bq, Tq, GW)   # pair-swapped k

        q3 = q2 * cosf + qs * sinf
        k3 = k2 * cosf + ks * sinf

        # ---- per-kv-group causal attention (group g in its own 128-lane block) ----
        a_parts = []
        for g in range(KV_HEADS):
            lo = g * D_PAD
            qi = q3[:, :, lo:lo + D_PAD]
            ki = k3[:, :, lo:lo + D_PAD]
            vi = v2[:, :, lo:lo + D_PAD]
            s = jnp.einsum('bqd,bkd->bqk', qi, ki,
                           preferred_element_type=jnp.float32) * scale
            s = jnp.where(causal, s, -jnp.inf)
            p = jnp.exp(s - jnp.max(s, axis=-1, keepdims=True))
            p = p * pl.reciprocal(jnp.sum(p, axis=-1, keepdims=True), approx=True)
            a_parts.append(jnp.einsum('bqk,bkd->bqd', p, vi,
                                      preferred_element_type=jnp.float32))
        a = jnp.concatenate(a_parts, axis=-1).reshape(BT, GW)          # (BT, 256)
        attn = jnp.dot(a, wo_ref[l], preferred_element_type=jnp.float32)

        # ---- residual (onto normalized x, as in the reference) + out norm + MLP ----
        h2 = hn + attn.reshape(Bq, Tq, C_PAD)
        rms2 = jnp.sqrt(jnp.mean(h2 * h2, axis=1, keepdims=True))
        h3 = h2 * pl.reciprocal(rms2 + EPS, approx=True) * g2_ref[l]
        h3_2 = h3.reshape(BT, C_PAD)
        gu = jnp.dot(h3_2, wgu_ref[l], preferred_element_type=jnp.float32)  # [gate|up]
        z = gu[:, HIDDEN:] * gu[:, :HIDDEN]                            # up * gate
        act = z * jax.nn.sigmoid(z)                                    # SiLU(up * gate)
        mlp = jnp.dot(act, wd_ref[l], preferred_element_type=jnp.float32)
        h = h3 + mlp.reshape(Bq, Tq, C_PAD)

    # ---- lm head (vocab = 128, already lane-dense) ----
    logits = jnp.dot(h.reshape(BT, C_PAD), lmw_ref[...],
                     preferred_element_type=jnp.float32) + lmb_ref[...]
    o_ref[...] = logits.reshape(Bq, Tq, V)


# ---------------------------------------------------------------------------
# Wrapper: one pallas_call, everything VMEM-resident
# ---------------------------------------------------------------------------
def smollm_forward(token_ids, params):
    B_, T_ = token_ids.shape
    ids = token_ids.reshape(B_ * T_, 1).astype(jnp.int32)
    args = (ids, params['emb'], params['g1'], params['g2'], params['wqkv'],
            params['wo'], params['wgu'], params['wd'], params['cos'],
            params['sin'], params['lm_w'], params['lm_b'])
    return pl.pallas_call(
        smollm_kernel,
        out_shape=jax.ShapeDtypeStruct((B_, T_, N_VOCAB), jnp.float32),
        in_specs=[pl.BlockSpec(memory_space=pltpu.MemorySpace.VMEM)
                  for _ in range(len(args))],
        out_specs=pl.BlockSpec(memory_space=pltpu.MemorySpace.VMEM),
    )(*args)


# ---------------------------------------------------------------------------
# Deterministic parameter init (+ exact folding / padding into kernel layout)
# ---------------------------------------------------------------------------
def init_params(key):
    keys = list(jax.random.split(key, 64))

    def w(shape, scale=0.05):
        return scale * jax.random.normal(keys.pop(), shape, dtype=jnp.float32)

    def expand_kv(wt):
        # fold k.repeat(1,1,3)/v.repeat(1,1,3) into the projection weight columns
        blocks = [jnp.tile(wt[:, i * HEAD_DIM:(i + 1) * HEAD_DIM], (1, REPEAT))
                  for i in range(KV_HEADS)]
        return jnp.concatenate(blocks, axis=1)           # (96, KV_HEADS*ROPE_DIM = 96)

    def prep_proj(p):   # (96, 96) -> (128, 256): group-block pad cols, pad in-rows
        return pad_rows(group_pad_cols(p, ROPE_DIM, D_PAD), C_PAD)

    embed = w((N_VOCAB, N_EMBED), 0.1)
    lm_w = w((N_EMBED, N_VOCAB))
    lm_b = w((1, N_VOCAB))

    g1s, g2s, wqkvs, wos, wgus, wds = [], [], [], [], [], []
    for _ in range(N_LAYERS):
        wq = w((N_EMBED, N_HEADS * HEAD_DIM))
        wk = expand_kv(w((N_EMBED, KV_HEADS * HEAD_DIM)))
        wv = expand_kv(w((N_EMBED, KV_HEADS * HEAD_DIM)))
        wo = w((N_HEADS * HEAD_DIM, N_EMBED))
        wg = w((N_EMBED, HIDDEN))
        wu = w((N_EMBED, HIDDEN))
        wd = w((HIDDEN, N_EMBED))

        # [q | k | v | q_pair_swapped | k_pair_swapped]  -> (128, 5*256)
        wqkv = jnp.concatenate(
            [prep_proj(wq), prep_proj(wk), prep_proj(wv),
             prep_proj(pair_swap_cols(wq)), prep_proj(pair_swap_cols(wk))], axis=1)

        g1s.append(pad_cols(jnp.ones((1, N_EMBED), jnp.float32), C_PAD))
        g2s.append(pad_cols(jnp.ones((1, N_EMBED), jnp.float32), C_PAD))
        wqkvs.append(wqkv)
        wos.append(pad_cols(group_pad_rows(wo, ROPE_DIM, D_PAD), C_PAD))   # (256, 128)
        wgus.append(pad_rows(jnp.concatenate([wg, wu], axis=1), C_PAD))    # (128, 512)
        wds.append(pad_cols(wd, C_PAD))                                    # (256, 128)

    cos_all, sin_all = make_rope_tables(T, ROPE_DIM, KV_HEADS, D_PAD)      # (T, 256)

    return dict(
        emb=pad_cols(embed, C_PAD),              # (128, 128)
        g1=jnp.stack(g1s), g2=jnp.stack(g2s),    # (L, 1, 128)
        wqkv=jnp.stack(wqkvs),                   # (L, 128, 1280)
        wo=jnp.stack(wos),                       # (L, 256, 128)
        wgu=jnp.stack(wgus),                     # (L, 128, 512)
        wd=jnp.stack(wds),                       # (L, 256, 128)
        cos=cos_all, sin=sin_all,                # (T, 256)
        lm_w=pad_rows(lm_w, C_PAD),              # (128, 128)
        lm_b=lm_b,                               # (1, 128)
    )


if __name__ == "__main__":
    key = jax.random.PRNGKey(0)
    pkey, ikey = jax.random.split(key)
    params = init_params(pkey)
    token_ids = jax.random.randint(ikey, (B, T), 0, N_VOCAB, dtype=jnp.int32)

    logits = smollm_forward(token_ids, params)
    jax.block_until_ready(logits)
    assert logits.shape == (B, T, N_VOCAB)
    assert bool(jnp.all(jnp.isfinite(logits)))
    print("KERNEL_OK")
</pallas_src>

<mosaic_0001>
module attributes {stable_mosaic.version = 11 : i64} {
  func.func @smollm_kernel(%arg0: memref<16x1xi32, #tpu.memory_space<vmem>>, %arg1: memref<128x128xf32, #tpu.memory_space<vmem>>, %arg2: memref<2x1x128xf32, #tpu.memory_space<vmem>>, %arg3: memref<2x1x128xf32, #tpu.memory_space<vmem>>, %arg4: memref<2x128x1280xf32, #tpu.memory_space<vmem>>, %arg5: memref<2x256x128xf32, #tpu.memory_space<vmem>>, %arg6: memref<2x128x512xf32, #tpu.memory_space<vmem>>, %arg7: memref<2x256x128xf32, #tpu.memory_space<vmem>>, %arg8: memref<8x256xf32, #tpu.memory_space<vmem>>, %arg9: memref<8x256xf32, #tpu.memory_space<vmem>>, %arg10: memref<128x128xf32, #tpu.memory_space<vmem>>, %arg11: memref<1x128xf32, #tpu.memory_space<vmem>>, %arg12: memref<2x8x128xf32, #tpu.memory_space<vmem>>) attributes {dimension_semantics = [], scalar_prefetch = 0 : i64, scratch_operands = 0 : i64, tpu.core_type = #tpu.core_type<tc>} {
    %c0 = arith.constant 0 : index
    %c0_0 = arith.constant 0 : index
    %0 = vector.load %arg0[%c0, %c0_0] : memref<16x1xi32, #tpu.memory_space<vmem>>, vector<16x1xi32>
    %1 = tpu.iota {dimensions = array<i32: 1>} : vector<16x128xi32>
    %2 = vector.broadcast %0 : vector<16x1xi32> to vector<16x128xi32>
    %3 = arith.cmpi eq, %2, %1 : vector<16x128xi32>
    %4 = arith.extui %3 : vector<16x128xi1> to vector<16x128xi32>
    %5 = arith.sitofp %4 : vector<16x128xi32> to vector<16x128xf32>
    %c0_1 = arith.constant 0 : index
    %c0_2 = arith.constant 0 : index
    %6 = vector.load %arg1[%c0_1, %c0_2] : memref<128x128xf32, #tpu.memory_space<vmem>>, vector<128x128xf32>
    %cst = arith.constant dense<0.000000e+00> : vector<16x128xf32>
    %7 = tpu.matmul %5, %6, %cst {dimension_numbers = #tpu.dot_dimension_numbers<[1], [0], [0], [1], [0, 0, 1, 1], [], []>} : vector<16x128xf32>, vector<128x128xf32>, vector<16x128xf32> -> vector<16x128xf32>
    %8 = vector.shape_cast %7 : vector<16x128xf32> to vector<2x8x128xf32>
    %9 = tpu.iota {dimensions = array<i32: 0>} : vector<8x8xi32>
    %10 = tpu.iota {dimensions = array<i32: 1>} : vector<8x8xi32>
    %11 = arith.cmpi sle, %10, %9 : vector<8x8xi32>
    %12 = vector.shape_cast %11 : vector<8x8xi1> to vector<1x8x8xi1>
    %c0_3 = arith.constant 0 : index
    %c0_4 = arith.constant 0 : index
    %13 = vector.load %arg8[%c0_3, %c0_4] : memref<8x256xf32, #tpu.memory_space<vmem>>, vector<8x256xf32>
    %14 = vector.shape_cast %13 : vector<8x256xf32> to vector<1x8x256xf32>
    %c0_5 = arith.constant 0 : index
    %c0_6 = arith.constant 0 : index
    %15 = vector.load %arg9[%c0_5, %c0_6] : memref<8x256xf32, #tpu.memory_space<vmem>>, vector<8x256xf32>
    %16 = vector.shape_cast %15 : vector<8x256xf32> to vector<1x8x256xf32>
    %17 = arith.mulf %8, %8 : vector<2x8x128xf32>
    %cst_7 = arith.constant dense<0.000000e+00> : vector<2x128xf32>
    %18 = vector.multi_reduction <add>, %17, %cst_7 [1] : vector<2x8x128xf32> to vector<2x128xf32>
    %19 = vector.shape_cast %18 : vector<2x128xf32> to vector<2x1x128xf32>
    %cst_8 = arith.constant 8.000000e+00 : f32
    %20 = vector.broadcast %cst_8 : f32 to vector<2x1x128xf32>
    %21 = arith.divf %19, %20 : vector<2x1x128xf32>
    %22 = math.sqrt %21 : vector<2x1x128xf32>
    %cst_9 = arith.constant 9.99999974E-6 : f32
    %23 = vector.broadcast %cst_9 : f32 to vector<2x1x128xf32>
    %24 = arith.addf %22, %23 : vector<2x1x128xf32>
    %25 = tpu.reciprocal %24 {approx = true} : vector<2x1x128xf32> -> vector<2x1x128xf32>
    %26 = vector.broadcast %25 : vector<2x1x128xf32> to vector<2x8x128xf32>
    %27 = arith.mulf %8, %26 : vector<2x8x128xf32>
    %c0_10 = arith.constant 0 : index
    %c0_11 = arith.constant 0 : index
    %c0_12 = arith.constant 0 : index
    %28 = vector.load %arg2[%c0_10, %c0_11, %c0_12] : memref<2x1x128xf32, #tpu.memory_space<vmem>>, vector<1x1x128xf32>
    %29 = vector.shape_cast %28 : vector<1x1x128xf32> to vector<1x128xf32>
    %30 = vector.shape_cast %29 : vector<1x128xf32> to vector<1x1x128xf32>
    %31 = vector.broadcast %30 : vector<1x1x128xf32> to vector<2x8x128xf32>
    %32 = arith.mulf %27, %31 : vector<2x8x128xf32>
    %33 = vector.shape_cast %32 : vector<2x8x128xf32> to vector<16x128xf32>
    %c0_13 = arith.constant 0 : index
    %c0_14 = arith.constant 0 : index
    %c0_15 = arith.constant 0 : index
    %34 = vector.load %arg4[%c0_13, %c0_14, %c0_15] : memref<2x128x1280xf32, #tpu.memory_space<vmem>>, vector<1x128x1280xf32>
    %35 = vector.shape_cast %34 : vector<1x128x1280xf32> to vector<128x1280xf32>
    %cst_16 = arith.constant dense<0.000000e+00> : vector<16x1280xf32>
    %36 = tpu.matmul %33, %35, %cst_16 {dimension_numbers = #tpu.dot_dimension_numbers<[1], [0], [0], [1], [0, 0, 1, 1], [], []>} : vector<16x128xf32>, vector<128x1280xf32>, vector<16x1280xf32> -> vector<16x1280xf32>
    %37 = vector.extract_strided_slice %36 {offsets = [0, 0], sizes = [16, 256], strides = [1, 1]} : vector<16x1280xf32> to vector<16x256xf32>
    %38 = vector.shape_cast %37 : vector<16x256xf32> to vector<2x8x256xf32>
    %39 = vector.extract_strided_slice %36 {offsets = [0, 256], sizes = [16, 256], strides = [1, 1]} : vector<16x1280xf32> to vector<16x256xf32>
    %40 = vector.shape_cast %39 : vector<16x256xf32> to vector<2x8x256xf32>
    %41 = vector.extract_strided_slice %36 {offsets = [0, 512], sizes = [16, 256], strides = [1, 1]} : vector<16x1280xf32> to vector<16x256xf32>
    %42 = vector.shape_cast %41 : vector<16x256xf32> to vector<2x8x256xf32>
    %43 = vector.extract_strided_slice %36 {offsets = [0, 768], sizes = [16, 256], strides = [1, 1]} : vector<16x1280xf32> to vector<16x256xf32>
    %44 = vector.shape_cast %43 : vector<16x256xf32> to vector<2x8x256xf32>
    %45 = vector.extract_strided_slice %36 {offsets = [0, 1024], sizes = [16, 256], strides = [1, 1]} : vector<16x1280xf32> to vector<16x256xf32>
    %46 = vector.shape_cast %45 : vector<16x256xf32> to vector<2x8x256xf32>
    %47 = vector.broadcast %14 : vector<1x8x256xf32> to vector<2x8x256xf32>
    %48 = arith.mulf %38, %47 : vector<2x8x256xf32>
    %49 = vector.broadcast %16 : vector<1x8x256xf32> to vector<2x8x256xf32>
    %50 = arith.mulf %44, %49 : vector<2x8x256xf32>
    %51 = arith.addf %48, %50 : vector<2x8x256xf32>
    %52 = vector.broadcast %14 : vector<1x8x256xf32> to vector<2x8x256xf32>
    %53 = arith.mulf %40, %52 : vector<2x8x256xf32>
    %54 = vector.broadcast %16 : vector<1x8x256xf32> to vector<2x8x256xf32>
    %55 = arith.mulf %46, %54 : vector<2x8x256xf32>
    %56 = arith.addf %53, %55 : vector<2x8x256xf32>
    %57 = vector.extract_strided_slice %51 {offsets = [0, 0, 0], sizes = [2, 8, 128], strides = [1, 1, 1]} : vector<2x8x256xf32> to vector<2x8x128xf32>
    %58 = vector.extract_strided_slice %56 {offsets = [0, 0, 0], sizes = [2, 8, 128], strides = [1, 1, 1]} : vector<2x8x256xf32> to vector<2x8x128xf32>
    %59 = vector.extract_strided_slice %42 {offsets = [0, 0, 0], sizes = [2, 8, 128], strides = [1, 1, 1]} : vector<2x8x256xf32> to vector<2x8x128xf32>
    "tpu.trace_start"() <{level = 10 : i32, message = "bqd,bkd->bqk"}> : () -> ()
    %cst_17 = arith.constant dense<0.000000e+00> : vector<2x8x8xf32>
    %60 = tpu.matmul %57, %58, %cst_17 {dimension_numbers = #tpu.dot_dimension_numbers<[2], [2], [1], [1], [0, 0, 0, 1, 1, 1], [0], [0]>} : vector<2x8x128xf32>, vector<2x8x128xf32>, vector<2x8x8xf32> -> vector<2x8x8xf32>
    "tpu.trace_stop"() : () -> ()
    %cst_18 = arith.constant 0.144337565 : f32
    %61 = vector.broadcast %cst_18 : f32 to vector<2x8x8xf32>
    %62 = arith.mulf %60, %61 : vector<2x8x8xf32>
    %cst_19 = arith.constant 0xFF800000 : f32
    %63 = vector.shape_cast %12 : vector<1x8x8xi1> to vector<1x8x8xi1>
    %64 = vector.broadcast %63 : vector<1x8x8xi1> to vector<2x8x8xi1>
    %65 = vector.broadcast %cst_19 : f32 to vector<2x8x8xf32>
    %66 = arith.select %64, %62, %65 : vector<2x8x8xi1>, vector<2x8x8xf32>
    %cst_20 = arith.constant dense<0xFF800000> : vector<2x8xf32>
    %67 = vector.multi_reduction <maximumf>, %66, %cst_20 [2] : vector<2x8x8xf32> to vector<2x8xf32>
    %68 = vector.shape_cast %67 : vector<2x8xf32> to vector<2x8x1xf32>
    %69 = vector.broadcast %68 : vector<2x8x1xf32> to vector<2x8x8xf32>
    %70 = arith.subf %66, %69 : vector<2x8x8xf32>
    %71 = math.exp %70 : vector<2x8x8xf32>
    %cst_21 = arith.constant dense<0.000000e+00> : vector<2x8xf32>
    %72 = vector.multi_reduction <add>, %71, %cst_21 [2] : vector<2x8x8xf32> to vector<2x8xf32>
    %73 = vector.shape_cast %72 : vector<2x8xf32> to vector<2x8x1xf32>
    %74 = tpu.reciprocal %73 {approx = true} : vector<2x8x1xf32> -> vector<2x8x1xf32>
    %75 = vector.broadcast %74 : vector<2x8x1xf32> to vector<2x8x8xf32>
    %76 = arith.mulf %71, %75 : vector<2x8x8xf32>
    "tpu.trace_start"() <{level = 10 : i32, message = "bqk,bkd->bqd"}> : () -> ()
    %cst_22 = arith.constant dense<0.000000e+00> : vector<2x8x128xf32>
    %77 = tpu.matmul %76, %59, %cst_22 {dimension_numbers = #tpu.dot_dimension_numbers<[2], [1], [1], [2], [0, 0, 0, 1, 1, 2], [0], [0]>} : vector<2x8x8xf32>, vector<2x8x128xf32>, vector<2x8x128xf32> -> vector<2x8x128xf32>
    "tpu.trace_stop"() : () -> ()
    %78 = vector.extract_strided_slice %51 {offsets = [0, 0, 128], sizes = [2, 8, 128], strides = [1, 1, 1]} : vector<2x8x256xf32> to vector<2x8x128xf32>
    %79 = vector.extract_strided_slice %56 {offsets = [0, 0, 128], sizes = [2, 8, 128], strides = [1, 1, 1]} : vector<2x8x256xf32> to vector<2x8x128xf32>
    %80 = vector.extract_strided_slice %42 {offsets = [0, 0, 128], sizes = [2, 8, 128], strides = [1, 1, 1]} : vector<2x8x256xf32> to vector<2x8x128xf32>
    "tpu.trace_start"() <{level = 10 : i32, message = "bqd,bkd->bqk"}> : () -> ()
    %cst_23 = arith.constant dense<0.000000e+00> : vector<2x8x8xf32>
    %81 = tpu.matmul %78, %79, %cst_23 {dimension_numbers = #tpu.dot_dimension_numbers<[2], [2], [1], [1], [0, 0, 0, 1, 1, 1], [0], [0]>} : vector<2x8x128xf32>, vector<2x8x128xf32>, vector<2x8x8xf32> -> vector<2x8x8xf32>
    "tpu.trace_stop"() : () -> ()
    %cst_24 = arith.constant 0.144337565 : f32
    %82 = vector.broadcast %cst_24 : f32 to vector<2x8x8xf32>
    %83 = arith.mulf %81, %82 : vector<2x8x8xf32>
    %cst_25 = arith.constant 0xFF800000 : f32
    %84 = vector.shape_cast %12 : vector<1x8x8xi1> to vector<1x8x8xi1>
    %85 = vector.broadcast %84 : vector<1x8x8xi1> to vector<2x8x8xi1>
    %86 = vector.broadcast %cst_25 : f32 to vector<2x8x8xf32>
    %87 = arith.select %85, %83, %86 : vector<2x8x8xi1>, vector<2x8x8xf32>
    %cst_26 = arith.constant dense<0xFF800000> : vector<2x8xf32>
    %88 = vector.multi_reduction <maximumf>, %87, %cst_26 [2] : vector<2x8x8xf32> to vector<2x8xf32>
    %89 = vector.shape_cast %88 : vector<2x8xf32> to vector<2x8x1xf32>
    %90 = vector.broadcast %89 : vector<2x8x1xf32> to vector<2x8x8xf32>
    %91 = arith.subf %87, %90 : vector<2x8x8xf32>
    %92 = math.exp %91 : vector<2x8x8xf32>
    %cst_27 = arith.constant dense<0.000000e+00> : vector<2x8xf32>
    %93 = vector.multi_reduction <add>, %92, %cst_27 [2] : vector<2x8x8xf32> to vector<2x8xf32>
    %94 = vector.shape_cast %93 : vector<2x8xf32> to vector<2x8x1xf32>
    %95 = tpu.reciprocal %94 {approx = true} : vector<2x8x1xf32> -> vector<2x8x1xf32>
    %96 = vector.broadcast %95 : vector<2x8x1xf32> to vector<2x8x8xf32>
    %97 = arith.mulf %92, %96 : vector<2x8x8xf32>
    "tpu.trace_start"() <{level = 10 : i32, message = "bqk,bkd->bqd"}> : () -> ()
    %cst_28 = arith.constant dense<0.000000e+00> : vector<2x8x128xf32>
    %98 = tpu.matmul %97, %80, %cst_28 {dimension_numbers = #tpu.dot_dimension_numbers<[2], [1], [1], [2], [0, 0, 0, 1, 1, 2], [0], [0]>} : vector<2x8x8xf32>, vector<2x8x128xf32>, vector<2x8x128xf32> -> vector<2x8x128xf32>
    "tpu.trace_stop"() : () -> ()
    %99 = tpu.concatenate %77, %98 in 2 : vector<2x8x128xf32>, vector<2x8x128xf32> -> vector<2x8x256xf32>
    %100 = vector.shape_cast %99 : vector<2x8x256xf32> to vector<16x256xf32>
    %c0_29 = arith.constant 0 : index
    %c0_30 = arith.constant 0 : index
    %c0_31 = arith.constant 0 : index
    %101 = vector.load %arg5[%c0_29, %c0_30, %c0_31] : memref<2x256x128xf32, #tpu.memory_space<vmem>>, vector<1x256x128xf32>
    %102 = vector.shape_cast %101 : vector<1x256x128xf32> to vector<256x128xf32>
    %cst_32 = arith.constant dense<0.000000e+00> : vector<16x128xf32>
    %103 = tpu.matmul %100, %102, %cst_32 {dimension_numbers = #tpu.dot_dimension_numbers<[1], [0], [0], [1], [0, 0, 1, 1], [], []>} : vector<16x256xf32>, vector<256x128xf32>, vector<16x128xf32> -> vector<16x128xf32>
    %104 = vector.shape_cast %103 : vector<16x128xf32> to vector<2x8x128xf32>
    %105 = arith.addf %32, %104 : vector<2x8x128xf32>
    %106 = arith.mulf %105, %105 : vector<2x8x128xf32>
    %cst_33 = arith.constant dense<0.000000e+00> : vector<2x128xf32>
    %107 = vector.multi_reduction <add>, %106, %cst_33 [1] : vector<2x8x128xf32> to vector<2x128xf32>
    %108 = vector.shape_cast %107 : vector<2x128xf32> to vector<2x1x128xf32>
    %cst_34 = arith.constant 8.000000e+00 : f32
    %109 = vector.broadcast %cst_34 : f32 to vector<2x1x128xf32>
    %110 = arith.divf %108, %109 : vector<2x1x128xf32>
    %111 = math.sqrt %110 : vector<2x1x128xf32>
    %cst_35 = arith.constant 9.99999974E-6 : f32
    %112 = vector.broadcast %cst_35 : f32 to vector<2x1x128xf32>
    %113 = arith.addf %111, %112 : vector<2x1x128xf32>
    %114 = tpu.reciprocal %113 {approx = true} : vector<2x1x128xf32> -> vector<2x1x128xf32>
    %115 = vector.broadcast %114 : vector<2x1x128xf32> to vector<2x8x128xf32>
    %116 = arith.mulf %105, %115 : vector<2x8x128xf32>
    %c0_36 = arith.constant 0 : index
    %c0_37 = arith.constant 0 : index
    %c0_38 = arith.constant 0 : index
    %117 = vector.load %arg3[%c0_36, %c0_37, %c0_38] : memref<2x1x128xf32, #tpu.memory_space<vmem>>, vector<1x1x128xf32>
    %118 = vector.shape_cast %117 : vector<1x1x128xf32> to vector<1x128xf32>
    %119 = vector.shape_cast %118 : vector<1x128xf32> to vector<1x1x128xf32>
    %120 = vector.broadcast %119 : vector<1x1x128xf32> to vector<2x8x128xf32>
    %121 = arith.mulf %116, %120 : vector<2x8x128xf32>
    %122 = vector.shape_cast %121 : vector<2x8x128xf32> to vector<16x128xf32>
    %c0_39 = arith.constant 0 : index
    %c0_40 = arith.constant 0 : index
    %c0_41 = arith.constant 0 : index
    %123 = vector.load %arg6[%c0_39, %c0_40, %c0_41] : memref<2x128x512xf32, #tpu.memory_space<vmem>>, vector<1x128x512xf32>
    %124 = vector.shape_cast %123 : vector<1x128x512xf32> to vector<128x512xf32>
    %cst_42 = arith.constant dense<0.000000e+00> : vector<16x512xf32>
    %125 = tpu.matmul %122, %124, %cst_42 {dimension_numbers = #tpu.dot_dimension_numbers<[1], [0], [0], [1], [0, 0, 1, 1], [], []>} : vector<16x128xf32>, vector<128x512xf32>, vector<16x512xf32> -> vector<16x512xf32>
    %126 = vector.extract_strided_slice %125 {offsets = [0, 256], sizes = [16, 256], strides = [1, 1]} : vector<16x512xf32> to vector<16x256xf32>
    %127 = vector.extract_strided_slice %125 {offsets = [0, 0], sizes = [16, 256], strides = [1, 1]} : vector<16x512xf32> to vector<16x256xf32>
    %128 = arith.mulf %126, %127 : vector<16x256xf32>
    %129 = arith.negf %128 : vector<16x256xf32>
    %130 = math.exp %129 : vector<16x256xf32>
    %cst_43 = arith.constant 1.000000e+00 : f32
    %131 = vector.broadcast %cst_43 : f32 to vector<16x256xf32>
    %132 = arith.addf %131, %130 : vector<16x256xf32>
    %133 = arith.divf %131, %132 : vector<16x256xf32>
    %134 = arith.mulf %128, %133 : vector<16x256xf32>
    %c0_44 = arith.constant 0 : index
    %c0_45 = arith.constant 0 : index
    %c0_46 = arith.constant 0 : index
    %135 = vector.load %arg7[%c0_44, %c0_45, %c0_46] : memref<2x256x128xf32, #tpu.memory_space<vmem>>, vector<1x256x128xf32>
    %136 = vector.shape_cast %135 : vector<1x256x128xf32> to vector<256x128xf32>
    %cst_47 = arith.constant dense<0.000000e+00> : vector<16x128xf32>
    %137 = tpu.matmul %134, %136, %cst_47 {dimension_numbers = #tpu.dot_dimension_numbers<[1], [0], [0], [1], [0, 0, 1, 1], [], []>} : vector<16x256xf32>, vector<256x128xf32>, vector<16x128xf32> -> vector<16x128xf32>
    %138 = vector.shape_cast %137 : vector<16x128xf32> to vector<2x8x128xf32>
    %139 = arith.addf %121, %138 : vector<2x8x128xf32>
    %140 = arith.mulf %139, %139 : vector<2x8x128xf32>
    %cst_48 = arith.constant dense<0.000000e+00> : vector<2x128xf32>
    %141 = vector.multi_reduction <add>, %140, %cst_48 [1] : vector<2x8x128xf32> to vector<2x128xf32>
    %142 = vector.shape_cast %141 : vector<2x128xf32> to vector<2x1x128xf32>
    %cst_49 = arith.constant 8.000000e+00 : f32
    %143 = vector.broadcast %cst_49 : f32 to vector<2x1x128xf32>
    %144 = arith.divf %142, %143 : vector<2x1x128xf32>
    %145 = math.sqrt %144 : vector<2x1x128xf32>
    %cst_50 = arith.constant 9.99999974E-6 : f32
    %146 = vector.broadcast %cst_50 : f32 to vector<2x1x128xf32>
    %147 = arith.addf %145, %146 : vector<2x1x128xf32>
    %148 = tpu.reciprocal %147 {approx = true} : vector<2x1x128xf32> -> vector<2x1x128xf32>
    %149 = vector.broadcast %148 : vector<2x1x128xf32> to vector<2x8x128xf32>
    %150 = arith.mulf %139, %149 : vector<2x8x128xf32>
    %c1 = arith.constant 1 : index
    %c0_51 = arith.constant 0 : index
    %c0_52 = arith.constant 0 : index
    %151 = vector.load %arg2[%c1, %c0_51, %c0_52] : memref<2x1x128xf32, #tpu.memory_space<vmem>>, vector<1x1x128xf32>
    %152 = vector.shape_cast %151 : vector<1x1x128xf32> to vector<1x128xf32>
    %153 = vector.shape_cast %152 : vector<1x128xf32> to vector<1x1x128xf32>
    %154 = vector.broadcast %153 : vector<1x1x128xf32> to vector<2x8x128xf32>
    %155 = arith.mulf %150, %154 : vector<2x8x128xf32>
    %156 = vector.shape_cast %155 : vector<2x8x128xf32> to vector<16x128xf32>
    %c1_53 = arith.constant 1 : index
    %c0_54 = arith.constant 0 : index
    %c0_55 = arith.constant 0 : index
    %157 = vector.load %arg4[%c1_53, %c0_54, %c0_55] : memref<2x128x1280xf32, #tpu.memory_space<vmem>>, vector<1x128x1280xf32>
    %158 = vector.shape_cast %157 : vector<1x128x1280xf32> to vector<128x1280xf32>
    %cst_56 = arith.constant dense<0.000000e+00> : vector<16x1280xf32>
    %159 = tpu.matmul %156, %158, %cst_56 {dimension_numbers = #tpu.dot_dimension_numbers<[1], [0], [0], [1], [0, 0, 1, 1], [], []>} : vector<16x128xf32>, vector<128x1280xf32>, vector<16x1280xf32> -> vector<16x1280xf32>
    %160 = vector.extract_strided_slice %159 {offsets = [0, 0], sizes = [16, 256], strides = [1, 1]} : vector<16x1280xf32> to vector<16x256xf32>
    %161 = vector.shape_cast %160 : vector<16x256xf32> to vector<2x8x256xf32>
    %162 = vector.extract_strided_slice %159 {offsets = [0, 256], sizes = [16, 256], strides = [1, 1]} : vector<16x1280xf32> to vector<16x256xf32>
    %163 = vector.shape_cast %162 : vector<16x256xf32> to vector<2x8x256xf32>
    %164 = vector.extract_strided_slice %159 {offsets = [0, 512], sizes = [16, 256], strides = [1, 1]} : vector<16x1280xf32> to vector<16x256xf32>
    %165 = vector.shape_cast %164 : vector<16x256xf32> to vector<2x8x256xf32>
    %166 = vector.extract_strided_slice %159 {offsets = [0, 768], sizes = [16, 256], strides = [1, 1]} : vector<16x1280xf32> to vector<16x256xf32>
    %167 = vector.shape_cast %166 : vector<16x256xf32> to vector<2x8x256xf32>
    %168 = vector.extract_strided_slice %159 {offsets = [0, 1024], sizes = [16, 256], strides = [1, 1]} : vector<16x1280xf32> to vector<16x256xf32>
    %169 = vector.shape_cast %168 : vector<16x256xf32> to vector<2x8x256xf32>
    %170 = vector.broadcast %14 : vector<1x8x256xf32> to vector<2x8x256xf32>
    %171 = arith.mulf %161, %170 : vector<2x8x256xf32>
    %172 = vector.broadcast %16 : vector<1x8x256xf32> to vector<2x8x256xf32>
    %173 = arith.mulf %167, %172 : vector<2x8x256xf32>
    %174 = arith.addf %171, %173 : vector<2x8x256xf32>
    %175 = vector.broadcast %14 : vector<1x8x256xf32> to vector<2x8x256xf32>
    %176 = arith.mulf %163, %175 : vector<2x8x256xf32>
    %177 = vector.broadcast %16 : vector<1x8x256xf32> to vector<2x8x256xf32>
    %178 = arith.mulf %169, %177 : vector<2x8x256xf32>
    %179 = arith.addf %176, %178 : vector<2x8x256xf32>
    %180 = vector.extract_strided_slice %174 {offsets = [0, 0, 0], sizes = [2, 8, 128], strides = [1, 1, 1]} : vector<2x8x256xf32> to vector<2x8x128xf32>
    %181 = vector.extract_strided_slice %179 {offsets = [0, 0, 0], sizes = [2, 8, 128], strides = [1, 1, 1]} : vector<2x8x256xf32> to vector<2x8x128xf32>
    %182 = vector.extract_strided_slice %165 {offsets = [0, 0, 0], sizes = [2, 8, 128], strides = [1, 1, 1]} : vector<2x8x256xf32> to vector<2x8x128xf32>
    "tpu.trace_start"() <{level = 10 : i32, message = "bqd,bkd->bqk"}> : () -> ()
    %cst_57 = arith.constant dense<0.000000e+00> : vector<2x8x8xf32>
    %183 = tpu.matmul %180, %181, %cst_57 {dimension_numbers = #tpu.dot_dimension_numbers<[2], [2], [1], [1], [0, 0, 0, 1, 1, 1], [0], [0]>} : vector<2x8x128xf32>, vector<2x8x128xf32>, vector<2x8x8xf32> -> vector<2x8x8xf32>
    "tpu.trace_stop"() : () -> ()
    %cst_58 = arith.constant 0.144337565 : f32
    %184 = vector.broadcast %cst_58 : f32 to vector<2x8x8xf32>
    %185 = arith.mulf %183, %184 : vector<2x8x8xf32>
    %cst_59 = arith.constant 0xFF800000 : f32
    %186 = vector.shape_cast %12 : vector<1x8x8xi1> to vector<1x8x8xi1>
    %187 = vector.broadcast %186 : vector<1x8x8xi1> to vector<2x8x8xi1>
    %188 = vector.broadcast %cst_59 : f32 to vector<2x8x8xf32>
    %189 = arith.select %187, %185, %188 : vector<2x8x8xi1>, vector<2x8x8xf32>
    %cst_60 = arith.constant dense<0xFF800000> : vector<2x8xf32>
    %190 = vector.multi_reduction <maximumf>, %189, %cst_60 [2] : vector<2x8x8xf32> to vector<2x8xf32>
    %191 = vector.shape_cast %190 : vector<2x8xf32> to vector<2x8x1xf32>
    %192 = vector.broadcast %191 : vector<2x8x1xf32> to vector<2x8x8xf32>
    %193 = arith.subf %189, %192 : vector<2x8x8xf32>
    %194 = math.exp %193 : vector<2x8x8xf32>
    %cst_61 = arith.constant dense<0.000000e+00> : vector<2x8xf32>
    %195 = vector.multi_reduction <add>, %194, %cst_61 [2] : vector<2x8x8xf32> to vector<2x8xf32>
    %196 = vector.shape_cast %195 : vector<2x8xf32> to vector<2x8x1xf32>
    %197 = tpu.reciprocal %196 {approx = true} : vector<2x8x1xf32> -> vector<2x8x1xf32>
    %198 = vector.broadcast %197 : vector<2x8x1xf32> to vector<2x8x8xf32>
    %199 = arith.mulf %194, %198 : vector<2x8x8xf32>
    "tpu.trace_start"() <{level = 10 : i32, message = "bqk,bkd->bqd"}> : () -> ()
    %cst_62 = arith.constant dense<0.000000e+00> : vector<2x8x128xf32>
    %200 = tpu.matmul %199, %182, %cst_62 {dimension_numbers = #tpu.dot_dimension_numbers<[2], [1], [1], [2], [0, 0, 0, 1, 1, 2], [0], [0]>} : vector<2x8x8xf32>, vector<2x8x128xf32>, vector<2x8x128xf32> -> vector<2x8x128xf32>
    "tpu.trace_stop"() : () -> ()
    %201 = vector.extract_strided_slice %174 {offsets = [0, 0, 128], sizes = [2, 8, 128], strides = [1, 1, 1]} : vector<2x8x256xf32> to vector<2x8x128xf32>
    %202 = vector.extract_strided_slice %179 {offsets = [0, 0, 128], sizes = [2, 8, 128], strides = [1, 1, 1]} : vector<2x8x256xf32> to vector<2x8x128xf32>
    %203 = vector.extract_strided_slice %165 {offsets = [0, 0, 128], sizes = [2, 8, 128], strides = [1, 1, 1]} : vector<2x8x256xf32> to vector<2x8x128xf32>
    "tpu.trace_start"() <{level = 10 : i32, message = "bqd,bkd->bqk"}> : () -> ()
    %cst_63 = arith.constant dense<0.000000e+00> : vector<2x8x8xf32>
    %204 = tpu.matmul %201, %202, %cst_63 {dimension_numbers = #tpu.dot_dimension_numbers<[2], [2], [1], [1], [0, 0, 0, 1, 1, 1], [0], [0]>} : vector<2x8x128xf32>, vector<2x8x128xf32>, vector<2x8x8xf32> -> vector<2x8x8xf32>
    "tpu.trace_stop"() : () -> ()
    %cst_64 = arith.constant 0.144337565 : f32
    %205 = vector.broadcast %cst_64 : f32 to vector<2x8x8xf32>
    %206 = arith.mulf %204, %205 : vector<2x8x8xf32>
    %cst_65 = arith.constant 0xFF800000 : f32
    %207 = vector.shape_cast %12 : vector<1x8x8xi1> to vector<1x8x8xi1>
    %208 = vector.broadcast %207 : vector<1x8x8xi1> to vector<2x8x8xi1>
    %209 = vector.broadcast %cst_65 : f32 to vector<2x8x8xf32>
    %210 = arith.select %208, %206, %209 : vector<2x8x8xi1>, vector<2x8x8xf32>
    %cst_66 = arith.constant dense<0xFF800000> : vector<2x8xf32>
    %211 = vector.multi_reduction <maximumf>, %210, %cst_66 [2] : vector<2x8x8xf32> to vector<2x8xf32>
    %212 = vector.shape_cast %211 : vector<2x8xf32> to vector<2x8x1xf32>
    %213 = vector.broadcast %212 : vector<2x8x1xf32> to vector<2x8x8xf32>
    %214 = arith.subf %210, %213 : vector<2x8x8xf32>
    %215 = math.exp %214 : vector<2x8x8xf32>
    %cst_67 = arith.constant dense<0.000000e+00> : vector<2x8xf32>
    %216 = vector.multi_reduction <add>, %215, %cst_67 [2] : vector<2x8x8xf32> to vector<2x8xf32>
    %217 = vector.shape_cast %216 : vector<2x8xf32> to vector<2x8x1xf32>
    %218 = tpu.reciprocal %217 {approx = true} : vector<2x8x1xf32> -> vector<2x8x1xf32>
    %219 = vector.broadcast %218 : vector<2x8x1xf32> to vector<2x8x8xf32>
    %220 = arith.mulf %215, %219 : vector<2x8x8xf32>
    "tpu.trace_start"() <{level = 10 : i32, message = "bqk,bkd->bqd"}> : () -> ()
    %cst_68 = arith.constant dense<0.000000e+00> : vector<2x8x128xf32>
    %221 = tpu.matmul %220, %203, %cst_68 {dimension_numbers = #tpu.dot_dimension_numbers<[2], [1], [1], [2], [0, 0, 0, 1, 1, 2], [0], [0]>} : vector<2x8x8xf32>, vector<2x8x128xf32>, vector<2x8x128xf32> -> vector<2x8x128xf32>
    "tpu.trace_stop"() : () -> ()
    %222 = tpu.concatenate %200, %221 in 2 : vector<2x8x128xf32>, vector<2x8x128xf32> -> vector<2x8x256xf32>
    %223 = vector.shape_cast %222 : vector<2x8x256xf32> to vector<16x256xf32>
    %c1_69 = arith.constant 1 : index
    %c0_70 = arith.constant 0 : index
    %c0_71 = arith.constant 0 : index
    %224 = vector.load %arg5[%c1_69, %c0_70, %c0_71] : memref<2x256x128xf32, #tpu.memory_space<vmem>>, vector<1x256x128xf32>
    %225 = vector.shape_cast %224 : vector<1x256x128xf32> to vector<256x128xf32>
    %cst_72 = arith.constant dense<0.000000e+00> : vector<16x128xf32>
    %226 = tpu.matmul %223, %225, %cst_72 {dimension_numbers = #tpu.dot_dimension_numbers<[1], [0], [0], [1], [0, 0, 1, 1], [], []>} : vector<16x256xf32>, vector<256x128xf32>, vector<16x128xf32> -> vector<16x128xf32>
    %227 = vector.shape_cast %226 : vector<16x128xf32> to vector<2x8x128xf32>
    %228 = arith.addf %155, %227 : vector<2x8x128xf32>
    %229 = arith.mulf %228, %228 : vector<2x8x128xf32>
    %cst_73 = arith.constant dense<0.000000e+00> : vector<2x128xf32>
    %230 = vector.multi_reduction <add>, %229, %cst_73 [1] : vector<2x8x128xf32> to vector<2x128xf32>
    %231 = vector.shape_cast %230 : vector<2x128xf32> to vector<2x1x128xf32>
    %cst_74 = arith.constant 8.000000e+00 : f32
    %232 = vector.broadcast %cst_74 : f32 to vector<2x1x128xf32>
    %233 = arith.divf %231, %232 : vector<2x1x128xf32>
    %234 = math.sqrt %233 : vector<2x1x128xf32>
    %cst_75 = arith.constant 9.99999974E-6 : f32
    %235 = vector.broadcast %cst_75 : f32 to vector<2x1x128xf32>
    %236 = arith.addf %234, %235 : vector<2x1x128xf32>
    %237 = tpu.reciprocal %236 {approx = true} : vector<2x1x128xf32> -> vector<2x1x128xf32>
    %238 = vector.broadcast %237 : vector<2x1x128xf32> to vector<2x8x128xf32>
    %239 = arith.mulf %228, %238 : vector<2x8x128xf32>
    %c1_76 = arith.constant 1 : index
    %c0_77 = arith.constant 0 : index
    %c0_78 = arith.constant 0 : index
    %240 = vector.load %arg3[%c1_76, %c0_77, %c0_78] : memref<2x1x128xf32, #tpu.memory_space<vmem>>, vector<1x1x128xf32>
    %241 = vector.shape_cast %240 : vector<1x1x128xf32> to vector<1x128xf32>
    %242 = vector.shape_cast %241 : vector<1x128xf32> to vector<1x1x128xf32>
    %243 = vector.broadcast %242 : vector<1x1x128xf32> to vector<2x8x128xf32>
    %244 = arith.mulf %239, %243 : vector<2x8x128xf32>
    %245 = vector.shape_cast %244 : vector<2x8x128xf32> to vector<16x128xf32>
    %c1_79 = arith.constant 1 : index
    %c0_80 = arith.constant 0 : index
    %c0_81 = arith.constant 0 : index
    %246 = vector.load %arg6[%c1_79, %c0_80, %c0_81] : memref<2x128x512xf32, #tpu.memory_space<vmem>>, vector<1x128x512xf32>
    %247 = vector.shape_cast %246 : vector<1x128x512xf32> to vector<128x512xf32>
    %cst_82 = arith.constant dense<0.000000e+00> : vector<16x512xf32>
    %248 = tpu.matmul %245, %247, %cst_82 {dimension_numbers = #tpu.dot_dimension_numbers<[1], [0], [0], [1], [0, 0, 1, 1], [], []>} : vector<16x128xf32>, vector<128x512xf32>, vector<16x512xf32> -> vector<16x512xf32>
    %249 = vector.extract_strided_slice %248 {offsets = [0, 256], sizes = [16, 256], strides = [1, 1]} : vector<16x512xf32> to vector<16x256xf32>
    %250 = vector.extract_strided_slice %248 {offsets = [0, 0], sizes = [16, 256], strides = [1, 1]} : vector<16x512xf32> to vector<16x256xf32>
    %251 = arith.mulf %249, %250 : vector<16x256xf32>
    %252 = arith.negf %251 : vector<16x256xf32>
    %253 = math.exp %252 : vector<16x256xf32>
    %cst_83 = arith.constant 1.000000e+00 : f32
    %254 = vector.broadcast %cst_83 : f32 to vector<16x256xf32>
    %255 = arith.addf %254, %253 : vector<16x256xf32>
    %256 = arith.divf %254, %255 : vector<16x256xf32>
    %257 = arith.mulf %251, %256 : vector<16x256xf32>
    %c1_84 = arith.constant 1 : index
    %c0_85 = arith.constant 0 : index
    %c0_86 = arith.constant 0 : index
    %258 = vector.load %arg7[%c1_84, %c0_85, %c0_86] : memref<2x256x128xf32, #tpu.memory_space<vmem>>, vector<1x256x128xf32>
    %259 = vector.shape_cast %258 : vector<1x256x128xf32> to vector<256x128xf32>
    %cst_87 = arith.constant dense<0.000000e+00> : vector<16x128xf32>
    %260 = tpu.matmul %257, %259, %cst_87 {dimension_numbers = #tpu.dot_dimension_numbers<[1], [0], [0], [1], [0, 0, 1, 1], [], []>} : vector<16x256xf32>, vector<256x128xf32>, vector<16x128xf32> -> vector<16x128xf32>
    %261 = vector.shape_cast %260 : vector<16x128xf32> to vector<2x8x128xf32>
    %262 = arith.addf %244, %261 : vector<2x8x128xf32>
    %263 = vector.shape_cast %262 : vector<2x8x128xf32> to vector<16x128xf32>
    %c0_88 = arith.constant 0 : index
    %c0_89 = arith.constant 0 : index
    %264 = vector.load %arg10[%c0_88, %c0_89] : memref<128x128xf32, #tpu.memory_space<vmem>>, vector<128x128xf32>
    %cst_90 = arith.constant dense<0.000000e+00> : vector<16x128xf32>
    %265 = tpu.matmul %263, %264, %cst_90 {dimension_numbers = #tpu.dot_dimension_numbers<[1], [0], [0], [1], [0, 0, 1, 1], [], []>} : vector<16x128xf32>, vector<128x128xf32>, vector<16x128xf32> -> vector<16x128xf32>
    %c0_91 = arith.constant 0 : index
    %c0_92 = arith.constant 0 : index
    %266 = vector.load %arg11[%c0_91, %c0_92] : memref<1x128xf32, #tpu.memory_space<vmem>>, vector<1x128xf32>
    %267 = vector.broadcast %266 : vector<1x128xf32> to vector<16x128xf32>
    %268 = arith.addf %265, %267 : vector<16x128xf32>
    %269 = vector.shape_cast %268 : vector<16x128xf32> to vector<2x8x128xf32>
    %c0_93 = arith.constant 0 : index
    %c0_94 = arith.constant 0 : index
    %c0_95 = arith.constant 0 : index
    %270 = vector.load %arg12[%c0_93, %c0_94, %c0_95] : memref<2x8x128xf32, #tpu.memory_space<vmem>>, vector<2x8x128xf32>
    tpu.vector_store %arg12[%c0_93, %c0_94, %c0_95], %269 {strides = array<i32>} : memref<2x8x128xf32, #tpu.memory_space<vmem>>, vector<2x8x128xf32>,
    return
  }
}

</mosaic_0001>

<llo_original>
// kernel: tpu_custom_call.1
$region0: #{tpu_custom_call.1}
  #allocation0 [shape = 'u32[]', space=smem, size = 0x4, offset = 0x4, fixed_abs, tag = 'smem constant byte address 0x4 - core index']
  #allocation1 [shape = 'u32[144,128]{1,0:T(1,128)}', space=vmem, size = 0x12000, scoped, tag = 'internal scratch']
  %s0 = inlined_call_operand.vmem [shape: s32[16,1], index: 0, kind: input, shape index: {}]
  %s1 = inlined_call_operand.hbm [shape: f32[128,128], index: 1, kind: input, shape index: {}]
  %s2 = inlined_call_operand.hbm [shape: f32[2,1,128], index: 2, kind: input, shape index: {}]
  %s3 = inlined_call_operand.hbm [shape: f32[2,1,128], index: 3, kind: input, shape index: {}]
  %s4 = inlined_call_operand.hbm [shape: f32[2,128,1280], index: 4, kind: input, shape index: {}]
  %s5 = inlined_call_operand.hbm [shape: f32[2,256,128], index: 5, kind: input, shape index: {}]
  %s6 = inlined_call_operand.hbm [shape: f32[2,128,512], index: 6, kind: input, shape index: {}]
  %s7 = inlined_call_operand.hbm [shape: f32[2,256,128], index: 7, kind: input, shape index: {}]
  %s8 = inlined_call_operand.hbm [shape: f32[8,256], index: 8, kind: input, shape index: {}]
  %s9 = inlined_call_operand.hbm [shape: f32[8,256], index: 9, kind: input, shape index: {}]
  %s10 = inlined_call_operand.hbm [shape: f32[128,128], index: 10, kind: input, shape index: {}]
  %s11 = inlined_call_operand.hbm [shape: f32[1,128], index: 11, kind: input, shape index: {}]
  %s12 = inlined_call_operand.hbm [shape: f32[2,8,128], index: 12, kind: output, shape index: {}]
  %s13 = sld [smem:[#allocation0]]
  $region102: #{tpu_custom_call.1} parent=0
    _
  %s15 = ssub.s32 1, %s13
  %s16 = scalar_select 0, %s15, %s13
  $region1: #{tpu_custom_call.1} parent=0
    #allocation2 [shape = 'u8[65536]{0}', space=vmem, size = 0x10000, scoped, tag = 'input window, operand 1, single buffered']
    #allocation3 [shape = 's32[1]{0}', space=sflag, size = 0x4, scoped, tag = 'scoped memory for tpu_custom_call.1']
    #allocation4 [shape = 's32[1]{0}', space=sflag, size = 0x4, scoped, tag = 'scoped memory for tpu_custom_call.1']
    #allocation5 [shape = 'u8[1024]{0}', space=vmem, size = 0x400, scoped, tag = 'input window, operand 2, single buffered']
    #allocation6 [shape = 's32[1]{0}', space=sflag, size = 0x4, scoped, tag = 'scoped memory for tpu_custom_call.1']
    #allocation7 [shape = 'u8[1024]{0}', space=vmem, size = 0x400, scoped, tag = 'input window, operand 3, single buffered']
    #allocation8 [shape = 'u8[1310720]{0}', space=vmem, size = 0x140000, scoped, tag = 'input window, operand 4, single buffered']
    #allocation9 [shape = 's32[1]{0}', space=sflag, size = 0x4, scoped, tag = 'scoped memory for tpu_custom_call.1']
    #allocation10 [shape = 'u8[262144]{0}', space=vmem, size = 0x40000, scoped, tag = 'input window, operand 5, single buffered']
    #allocation11 [shape = 'u8[524288]{0}', space=vmem, size = 0x80000, scoped, tag = 'input window, operand 6, single buffered']
    #allocation12 [shape = 's32[1]{0}', space=sflag, size = 0x4, scoped, tag = 'scoped memory for tpu_custom_call.1']
    #allocation13 [shape = 'u8[262144]{0}', space=vmem, size = 0x40000, scoped, tag = 'input window, operand 7, single buffered']
    #allocation14 [shape = 'u8[8192]{0}', space=vmem, size = 0x2000, scoped, tag = 'input window, operand 8, single buffered']
    #allocation15 [shape = 's32[1]{0}', space=sflag, size = 0x4, scoped, tag = 'scoped memory for tpu_custom_call.1']
    #allocation16 [shape = 'u8[8192]{0}', space=vmem, size = 0x2000, scoped, tag = 'input window, operand 9, single buffered']
    #allocation17 [shape = 'u8[65536]{0}', space=vmem, size = 0x10000, scoped, tag = 'input window, operand 10, single buffered']
    #allocation18 [shape = 's32[1]{0}', space=sflag, size = 0x4, scoped, tag = 'scoped memory for tpu_custom_call.1']
    #allocation19 [shape = 'u8[512]{0}', space=vmem, size = 0x400, scoped, tag = 'input window, operand 11, single buffered']
    #allocation20 [shape = 'u8[8192]{0}', space=vmem, size = 0x2000, scoped, tag = 'output window, operand 0, single buffered']
    %17 = vsyncpa [#allocation3], 0
    %18 = vsyncpa [#allocation6], 0
    %19 = vsyncpa [#allocation9], 0
    %20 = vsyncpa [#allocation12], 0
    %21 = vsyncpa [#allocation15], 0
    %22 = vsyncpa [#allocation18], 0
    %23 = vsyncpa [#allocation4], 0
    // Predicated region
    $region2: #{tpu_custom_call.1} parent=1 // pred_check
      _
    $region3: #{tpu_custom_call.1} parent=1 // pred_check_branch
      %25 = sbr.rel (0) target = $region5
    $region4: #{tpu_custom_call.1} parent=1 // pred_region
      _
    $region5: #{tpu_custom_call.1} parent=1 // pred_fallthru
      _
    // Predicated region
    $region6: #{tpu_custom_call.1} parent=1 // pred_check
      _
    $region7: #{tpu_custom_call.1} parent=1 // pred_check_branch
      %27 = sbr.rel (0) target = $region9
    $region8: #{tpu_custom_call.1} parent=1 // pred_region
      %s29 = ssub.s32 2048, 2048
      %30 = vsyncadd [#allocation3], %s29
      %s31 = sshll.u32 [#allocation2], 4
      %s32 = int_to_ptr.vmem [resolvable:$true] %s31
      %37 = dma.hbm_to_vmem [thread:$0]  %s1, 2048, %s32, [#allocation3], 128, 128, 8
    $region9: #{tpu_custom_call.1} parent=1 // pred_fallthru
      _
    // Predicated region
    $region10: #{tpu_custom_call.1} parent=1 // pred_check
      _
    $region11: #{tpu_custom_call.1} parent=1 // pred_check_branch
      %39 = sbr.rel (0) target = $region13
    $region12: #{tpu_custom_call.1} parent=1 // pred_region
      %s41 = ssub.s32 32, 32
      %42 = vsyncadd [#allocation6], %s41
      %s43 = sshll.u32 [#allocation5], 4
      %s44 = int_to_ptr.vmem [resolvable:$true] %s43
      %49 = dma.hbm_to_vmem [thread:$0]  %s2, 32, %s44, [#allocation6], 16, 16, 1
    $region13: #{tpu_custom_call.1} parent=1 // pred_fallthru
      _
    // Predicated region
    $region14: #{tpu_custom_call.1} parent=1 // pred_check
      _
    $region15: #{tpu_custom_call.1} parent=1 // pred_check_branch
      %51 = sbr.rel (0) target = $region17
    $region16: #{tpu_custom_call.1} parent=1 // pred_region
      %s53 = ssub.s32 32, 32
      %54 = vsyncadd [#allocation6], %s53
      %s55 = sshll.u32 [#allocation7], 4
      %s56 = int_to_ptr.vmem [resolvable:$true] %s55
      %61 = dma.hbm_to_vmem [thread:$0]  %s3, 32, %s56, [#allocation6], 16, 16, 1
    $region17: #{tpu_custom_call.1} parent=1 // pred_fallthru
      _
    // Predicated region
    $region18: #{tpu_custom_call.1} parent=1 // pred_check
      _
    $region19: #{tpu_custom_call.1} parent=1 // pred_check_branch
      %63 = sbr.rel (0) target = $region21
    $region20: #{tpu_custom_call.1} parent=1 // pred_region
      %s65 = ssub.s32 40960, 40960
      %66 = vsyncadd [#allocation9], %s65
      %s67 = sshll.u32 [#allocation8], 4
      %s68 = int_to_ptr.vmem [resolvable:$true] %s67
      %73 = dma.hbm_to_vmem [thread:$0]  %s4, 40960, %s68, [#allocation9], 1280, 1280, 80
    $region21: #{tpu_custom_call.1} parent=1 // pred_fallthru
      _
    // Predicated region
    $region22: #{tpu_custom_call.1} parent=1 // pred_check
      _
    $region23: #{tpu_custom_call.1} parent=1 // pred_check_branch
      %75 = sbr.rel (0) target = $region25
    $region24: #{tpu_custom_call.1} parent=1 // pred_region
      %s77 = ssub.s32 8192, 8192
      %78 = vsyncadd [#allocation9], %s77
      %s79 = sshll.u32 [#allocation10], 4
      %s80 = int_to_ptr.vmem [resolvable:$true] %s79
      %85 = dma.hbm_to_vmem [thread:$0]  %s5, 8192, %s80, [#allocation9], 128, 128, 8
    $region25: #{tpu_custom_call.1} parent=1 // pred_fallthru
      _
    // Predicated region
    $region26: #{tpu_custom_call.1} parent=1 // pred_check
      _
    $region27: #{tpu_custom_call.1} parent=1 // pred_check_branch
      %87 = sbr.rel (0) target = $region29
    $region28: #{tpu_custom_call.1} parent=1 // pred_region
      %s89 = ssub.s32 16384, 16384
      %90 = vsyncadd [#allocation12], %s89
      %s91 = sshll.u32 [#allocation11], 4
      %s92 = int_to_ptr.vmem [resolvable:$true] %s91
      %97 = dma.hbm_to_vmem [thread:$0]  %s6, 16384, %s92, [#allocation12], 512, 512, 32
    $region29: #{tpu_custom_call.1} parent=1 // pred_fallthru
      _
    // Predicated region
    $region30: #{tpu_custom_call.1} parent=1 // pred_check
      _
    $region31: #{tpu_custom_call.1} parent=1 // pred_check_branch
      %99 = sbr.rel (0) target = $region33
    $region32: #{tpu_custom_call.1} parent=1 // pred_region
      %s101 = ssub.s32 8192, 8192
      %102 = vsyncadd [#allocation12], %s101
      %s103 = sshll.u32 [#allocation13], 4
      %s104 = int_to_ptr.vmem [resolvable:$true] %s103
      %109 = dma.hbm_to_vmem [thread:$0]  %s7, 8192, %s104, [#allocation12], 128, 128, 8
    $region33: #{tpu_custom_call.1} parent=1 // pred_fallthru
      _
    // Predicated region
    $region34: #{tpu_custom_call.1} parent=1 // pred_check
      _
    $region35: #{tpu_custom_call.1} parent=1 // pred_check_branch
      %111 = sbr.rel (0) target = $region37
    $region36: #{tpu_custom_call.1} parent=1 // pred_region
      %s113 = ssub.s32 256, 256
      %114 = vsyncadd [#allocation15], %s113
      %s116 = sshll.u32 [#allocation14], 4
      %s117 = int_to_ptr.vmem [resolvable:$true] %s116
      %119 = dma.hbm_to_vmem [thread:$0]  %s8, 256, %s117, [#allocation15]
    $region37: #{tpu_custom_call.1} parent=1 // pred_fallthru
      _
    // Predicated region
    $region38: #{tpu_custom_call.1} parent=1 // pred_check
      _
    $region39: #{tpu_custom_call.1} parent=1 // pred_check_branch
      %121 = sbr.rel (0) target = $region41
    $region40: #{tpu_custom_call.1} parent=1 // pred_region
      %s123 = ssub.s32 256, 256
      %124 = vsyncadd [#allocation15], %s123
      %s126 = sshll.u32 [#allocation16], 4
      %s127 = int_to_ptr.vmem [resolvable:$true] %s126
      %129 = dma.hbm_to_vmem [thread:$0]  %s9, 256, %s127, [#allocation15]
    $region41: #{tpu_custom_call.1} parent=1 // pred_fallthru
      _
    // Predicated region
    $region42: #{tpu_custom_call.1} parent=1 // pred_check
      _
    $region43: #{tpu_custom_call.1} parent=1 // pred_check_branch
      %131 = sbr.rel (0) target = $region45
    $region44: #{tpu_custom_call.1} parent=1 // pred_region
      %s133 = ssub.s32 2048, 2048
      %134 = vsyncadd [#allocation18], %s133
      %s135 = sshll.u32 [#allocation17], 4
      %s136 = int_to_ptr.vmem [resolvable:$true] %s135
      %141 = dma.hbm_to_vmem [thread:$0]  %s10, 2048, %s136, [#allocation18], 128, 128, 8
    $region45: #{tpu_custom_call.1} parent=1 // pred_fallthru
      _
    // Predicated region
    $region46: #{tpu_custom_call.1} parent=1 // pred_check
      _
    $region47: #{tpu_custom_call.1} parent=1 // pred_check_branch
      %143 = sbr.rel (0) target = $region49
    $region48: #{tpu_custom_call.1} parent=1 // pred_region
      %s145 = ssub.s32 16, 16
      %146 = vsyncadd [#allocation18], %s145
      %s148 = sshll.u32 [#allocation19], 4
      %s149 = int_to_ptr.vmem [resolvable:$true] %s148
      %151 = dma.hbm_to_vmem [thread:$0]  %s11, 16, %s149, [#allocation18]
    $region49: #{tpu_custom_call.1} parent=1 // pred_fallthru
      _
    // Predicated region
    $region50: #{tpu_custom_call.1} parent=1 // pred_check
      _
    $region51: #{tpu_custom_call.1} parent=1 // pred_check_branch
      %153 = sbr.rel (0) target = $region53
    $region52: #{tpu_custom_call.1} parent=1 // pred_region
      %154 = dma.done [#allocation3], 2048
    $region53: #{tpu_custom_call.1} parent=1 // pred_fallthru
      _
    // Predicated region
    $region54: #{tpu_custom_call.1} parent=1 // pred_check
      _
    $region55: #{tpu_custom_call.1} parent=1 // pred_check_branch
      %156 = sbr.rel (0) target = $region57
    $region56: #{tpu_custom_call.1} parent=1 // pred_region
      %157 = dma.done [#allocation6], 32
    $region57: #{tpu_custom_call.1} parent=1 // pred_fallthru
      _
    // Predicated region
    $region58: #{tpu_custom_call.1} parent=1 // pred_check
      _
    $region59: #{tpu_custom_call.1} parent=1 // pred_check_branch
      %159 = sbr.rel (0) target = $region61
    $region60: #{tpu_custom_call.1} parent=1 // pred_region
      %160 = dma.done [#allocation6], 32
    $region61: #{tpu_custom_call.1} parent=1 // pred_fallthru
      _
    // Predicated region
    $region62: #{tpu_custom_call.1} parent=1 // pred_check
      _
    $region63: #{tpu_custom_call.1} parent=1 // pred_check_branch
      %162 = sbr.rel (0) target = $region65
    $region64: #{tpu_custom_call.1} parent=1 // pred_region
      %163 = dma.done [#allocation9], 40960
    $region65: #{tpu_custom_call.1} parent=1 // pred_fallthru
      _
    // Predicated region
    $region66: #{tpu_custom_call.1} parent=1 // pred_check
      _
    $region67: #{tpu_custom_call.1} parent=1 // pred_check_branch
      %165 = sbr.rel (0) target = $region69
    $region68: #{tpu_custom_call.1} parent=1 // pred_region
      %166 = dma.done [#allocation9], 8192
    $region69: #{tpu_custom_call.1} parent=1 // pred_fallthru
      _
    // Predicated region
    $region70: #{tpu_custom_call.1} parent=1 // pred_check
      _
    $region71: #{tpu_custom_call.1} parent=1 // pred_check_branch
      %168 = sbr.rel (0) target = $region73
    $region72: #{tpu_custom_call.1} parent=1 // pred_region
      %169 = dma.done [#allocation12], 16384
    $region73: #{tpu_custom_call.1} parent=1 // pred_fallthru
      _
    // Predicated region
    $region74: #{tpu_custom_call.1} parent=1 // pred_check
      _
    $region75: #{tpu_custom_call.1} parent=1 // pred_check_branch
      %171 = sbr.rel (0) target = $region77
    $region76: #{tpu_custom_call.1} parent=1 // pred_region
      %172 = dma.done [#allocation12], 8192
    $region77: #{tpu_custom_call.1} parent=1 // pred_fallthru
      _
    // Predicated region
    $region78: #{tpu_custom_call.1} parent=1 // pred_check
      _
    $region79: #{tpu_custom_call.1} parent=1 // pred_check_branch
      %174 = sbr.rel (0) target = $region81
    $region80: #{tpu_custom_call.1} parent=1 // pred_region
      %175 = dma.done [#allocation15], 256
    $region81: #{tpu_custom_call.1} parent=1 // pred_fallthru
      _
    // Predicated region
    $region82: #{tpu_custom_call.1} parent=1 // pred_check
      _
    $region83: #{tpu_custom_call.1} parent=1 // pred_check_branch
      %177 = sbr.rel (0) target = $region85
    $region84: #{tpu_custom_call.1} parent=1 // pred_region
      %178 = dma.done [#allocation15], 256
    $region85: #{tpu_custom_call.1} parent=1 // pred_fallthru
      _
    // Predicated region
    $region86: #{tpu_custom_call.1} parent=1 // pred_check
      _
    $region87: #{tpu_custom_call.1} parent=1 // pred_check_branch
      %180 = sbr.rel (0) target = $region89
    $region88: #{tpu_custom_call.1} parent=1 // pred_region
      %181 = dma.done [#allocation18], 2048
    $region89: #{tpu_custom_call.1} parent=1 // pred_fallthru
      _
    // Predicated region
    $region90: #{tpu_custom_call.1} parent=1 // pred_check
      _
    $region91: #{tpu_custom_call.1} parent=1 // pred_check_branch
      %183 = sbr.rel (0) target = $region93
    $region92: #{tpu_custom_call.1} parent=1 // pred_region
      %184 = dma.done [#allocation18], 16
    $region93: #{tpu_custom_call.1} parent=1 // pred_fallthru
      _
    %v185 = vld [vmem:[%s0] sm:$0xff]
    %v186 = vld [vmem:[%s0 + $0x8] sm:$0xff]
    %v187 = vlaneseq
    %v188 = vand.u32 %v187, 127
    %189 = vset.pattern.permute.xlu0 0
    %190 = vperm.xlu0 %189, %v185
    %v191 = vpop.permute.xlu0 %190
    %192 = vset.pattern.permute.xlu0 0
    %193 = vperm.xlu0 %192, %v186
    %v194 = vpop.permute.xlu0 %193
    %vm195 = vcmp.eq.s32.totalorder %v191, %v188
    %vm196 = vcmp.eq.s32.totalorder %v194, %v188
    %v197 = vsel %vm195, 1, 0
    %v198 = vsel %vm196, 1, 0
    %v199 = vcvt.s32.f32 %v197
    %v200 = vcvt.s32.f32 %v198
    %v201 = vld [vmem:[#allocation2] sm:$0xff]
    %v202 = vld [vmem:[#allocation2 + $0x8] sm:$0xff]
    %v203 = vld [vmem:[#allocation2 + $0x10] sm:$0xff]
    %v204 = vld [vmem:[#allocation2 + $0x18] sm:$0xff]
    %v205 = vld [vmem:[#allocation2 + $0x20] sm:$0xff]
    %v206 = vld [vmem:[#allocation2 + $0x28] sm:$0xff]
    %v207 = vld [vmem:[#allocation2 + $0x30] sm:$0xff]
    %v208 = vld [vmem:[#allocation2 + $0x38] sm:$0xff]
    %v209 = vld [vmem:[#allocation2 + $0x40] sm:$0xff]
    %v210 = vld [vmem:[#allocation2 + $0x48] sm:$0xff]
    %v211 = vld [vmem:[#allocation2 + $0x50] sm:$0xff]
    %v212 = vld [vmem:[#allocation2 + $0x58] sm:$0xff]
    %v213 = vld [vmem:[#allocation2 + $0x60] sm:$0xff]
    %v214 = vld [vmem:[#allocation2 + $0x68] sm:$0xff]
    %v215 = vld [vmem:[#allocation2 + $0x70] sm:$0xff]
    %v216 = vld [vmem:[#allocation2 + $0x78] sm:$0xff]
    %217 = vmatprep.subr.mxu0 0.0
    %218 = vmatpush1.msra.mxu0 %v201
    %219 = vmatprep.subr.mxu0 0.0
    %220 = vmatpush1.msra.mxu0 %v202
    %221 = vmatprep.subr.mxu0 0.0
    %222 = vmatpush1.msra.mxu0 %v203
    %223 = vmatprep.subr.mxu0 0.0
    %224 = vmatpush1.msra.mxu0 %v204
    %225 = vmatprep.subr.mxu0 0.0
    %226 = vmatpush1.msra.mxu0 %v205
    %227 = vmatprep.subr.mxu0 0.0
    %228 = vmatpush1.msra.mxu0 %v206
    %229 = vmatprep.subr.mxu0 0.0
    %230 = vmatpush1.msra.mxu0 %v207
    %231 = vmatprep.subr.mxu0 0.0
    %232 = vmatpush1.msra.mxu0 %v208
    %233 = vmatprep.subr.mxu0 0.0
    %234 = vmatpush1.msra.mxu0 %v209
    %235 = vmatprep.subr.mxu0 0.0
    %236 = vmatpush1.msra.mxu0 %v210
    %237 = vmatprep.subr.mxu0 0.0
    %238 = vmatpush1.msra.mxu0 %v211
    %239 = vmatprep.subr.mxu0 0.0
    %240 = vmatpush1.msra.mxu0 %v212
    %241 = vmatprep.subr.mxu0 0.0
    %242 = vmatpush1.msra.mxu0 %v213
    %243 = vmatprep.subr.mxu0 0.0
    %244 = vmatpush1.msra.mxu0 %v214
    %245 = vmatprep.subr.mxu0 0.0
    %246 = vmatpush1.msra.mxu0 %v215
    %247 = vmatprep.subr.mxu0 0.0
    %248 = vmatpush1.msra.mxu0 %v216
    %249 = vmatprep.subr.mxu0 0.0
    %250 = vmatpush1.msra.mxu0 0.0
    %251 = vmatprep.subr.mxu0 0.0
    %252 = vmatpush1.msra.mxu0 0.0
    %253 = vmatprep.subr.mxu0 0.0
    %254 = vmatpush1.msra.mxu0 0.0
    %255 = vmatprep.subr.mxu0 0.0
    %256 = vmatpush1.msra.mxu0 0.0
    %257 = vmatprep.subr.mxu0 0.0
    %258 = vmatpush1.msra.mxu0 0.0
    %259 = vmatprep.subr.mxu0 0.0
    %260 = vmatpush1.msra.mxu0 0.0
    %261 = vmatprep.subr.mxu0 0.0
    %262 = vmatpush1.msra.mxu0 0.0
    %263 = vmatprep.subr.mxu0 0.0
    %264 = vmatpush1.msra.mxu0 0.0
    %265 = vmatprep.subr.mxu0 0.0
    %266 = vmatpush1.msra.mxu0 0.0
    %267 = vmatprep.subr.mxu0 0.0
    %268 = vmatpush1.msra.mxu0 0.0
    %269 = vmatprep.subr.mxu0 0.0
    %270 = vmatpush1.msra.mxu0 0.0
    %271 = vmatprep.subr.mxu0 0.0
    %272 = vmatpush1.msra.mxu0 0.0
    %273 = vmatprep.subr.mxu0 0.0
    %274 = vmatpush1.msra.mxu0 0.0
    %275 = vmatprep.subr.mxu0 0.0
    %276 = vmatpush1.msra.mxu0 0.0
    %277 = vmatprep.subr.mxu0 0.0
    %278 = vmatpush1.msra.mxu0 0.0
    %279 = vmatprep.subr.mxu0 0.0
    %280 = vmatpush1.msra.mxu0 0.0
    %281 = vmatprep.mubr.f32.mxu0 0.0
    %282 = vmatmul.mubr.f32.gmra.mrb[0].mxu0 %v199
    %v283 = vpop.f32.mrb[0].mxu0
    %v284 = vadd.f32 0.0, %v283
    %v285 = vpop.f32.mrb[0].mxu0
    %286 = vmatprep.mubr.f32.mxu0 0.0
    %287 = vmatmul.mubr.f32.gmra.mrb[0].mxu0 %v200
    %v288 = vpop.f32.mrb[0].mxu0
    %v289 = vadd.f32 0.0, %v288
    %v290 = vpop.f32.mrb[0].mxu0
    %291 = vdwg.mxu0
    %v292 = vlaneseq
    %v293 = vshrl.u32 %v292, 7
    %vm294 = vcmp.le.s32.totalorder %v188, %v293
    %v295 = vld [vmem:[#allocation14] sm:$0xff]
    %v296 = vld [vmem:[#allocation14 + $0x8] sm:$0xff]
    %v297 = vld [vmem:[#allocation16] sm:$0xff]
    %v298 = vld [vmem:[#allocation16 + $0x8] sm:$0xff]
    %v299 = vmul.f32 %v284, %v284
    %v300 = vmul.f32 %v289, %v289
    %v301 = vrot.slane %v299, 4
    %v302 = vadd.f32 %v299, %v301
    %v303 = vrot.slane %v302, 2
    %v304 = vadd.f32 %v302, %v303
    %v305 = vrot.slane %v304, 1
    %v306 = vadd.f32 %v304, %v305
    %v307 = vrot.slane %v300, 4
    %v308 = vadd.f32 %v300, %v307
    %v309 = vrot.slane %v308, 2
    %v310 = vadd.f32 %v308, %v309
    %v311 = vrot.slane %v310, 1
    %v312 = vadd.f32 %v310, %v311
    %v313 = vrcp.pop 8.0
    %v314 = vmul.f32 %v306, %v313
    %v315 = vmul.f32 %v312, %v313
    %v316 = vrsqrt.pop %v314
    %v317 = vmul.f32 %v314, %v316
    %vm318 = vcmp.eq.f32.partialorder %v314, inf
    %v319 = vsel %vm318, %v314, %v317
    %vm320 = vcmp.eq.f32.partialorder %v314, 0.0
    %v321 = vand.u32 %v314, 2147483648
    %v322 = vsel %vm320, %v321, %v319
    %v323 = vrsqrt.pop %v315
    %v324 = vmul.f32 %v315, %v323
    %vm325 = vcmp.eq.f32.partialorder %v315, inf
    %v326 = vsel %vm325, %v315, %v324
    %vm327 = vcmp.eq.f32.partialorder %v315, 0.0
    %v328 = vand.u32 %v315, 2147483648
    %v329 = vsel %vm327, %v328, %v326
    %v330 = vadd.f32 %v322, 1e-05
    %v331 = vadd.f32 %v329, 1e-05
    %v332 = vrcp.pop %v330
    %v333 = vrcp.pop %v331
    %v334 = vmul.f32 %v284, %v332
    %v335 = vmul.f32 %v289, %v333
    %v336 = vld [vmem:[#allocation5] sm:$0x1]
    %v338 = vlaneseq
    %v339 = vshrl.u32 %v338, 7
    %v340 = vsub.s32 0, %v339
    %v341 = vrot.slane %v336, %v340
    %v343 = vmul.f32 %v334, %v341
    %v344 = vmul.f32 %v335, %v341
    %v345 = vld [vmem:[#allocation8] sm:$0xff]
    %v346 = vld [vmem:[#allocation8 + $0x8] sm:$0xff]
    %v347 = vld [vmem:[#allocation8 + $0x10] sm:$0xff]
    %v348 = vld [vmem:[#allocation8 + $0x18] sm:$0xff]
    %v349 = vld [vmem:[#allocation8 + $0x20] sm:$0xff]
    %v350 = vld [vmem:[#allocation8 + $0x28] sm:$0xff]
    %v351 = vld [vmem:[#allocation8 + $0x30] sm:$0xff]
    %v352 = vld [vmem:[#allocation8 + $0x38] sm:$0xff]
    %v353 = vld [vmem:[#allocation8 + $0x40] sm:$0xff]
    %v354 = vld [vmem:[#allocation8 + $0x48] sm:$0xff]
    %v355 = vld [vmem:[#allocation8 + $0x50] sm:$0xff]
    %v356 = vld [vmem:[#allocation8 + $0x58] sm:$0xff]
    %v357 = vld [vmem:[#allocation8 + $0x60] sm:$0xff]
    %v358 = vld [vmem:[#allocation8 + $0x68] sm:$0xff]
    %v359 = vld [vmem:[#allocation8 + $0x70] sm:$0xff]
    %v360 = vld [vmem:[#allocation8 + $0x78] sm:$0xff]
    %v361 = vld [vmem:[#allocation8 + $0x80] sm:$0xff]
    %v362 = vld [vmem:[#allocation8 + $0x88] sm:$0xff]
    %v363 = vld [vmem:[#allocation8 + $0x90] sm:$0xff]
    %v364 = vld [vmem:[#allocation8 + $0x98] sm:$0xff]
    %v365 = vld [vmem:[#allocation8 + $0xa0] sm:$0xff]
    %v366 = vld [vmem:[#allocation8 + $0xa8] sm:$0xff]
    %v367 = vld [vmem:[#allocation8 + $0xb0] sm:$0xff]
    %v368 = vld [vmem:[#allocation8 + $0xb8] sm:$0xff]
    %v369 = vld [vmem:[#allocation8 + $0xc0] sm:$0xff]
    %v370 = vld [vmem:[#allocation8 + $0xc8] sm:$0xff]
    %v371 = vld [vmem:[#allocation8 + $0xd0] sm:$0xff]
    %v372 = vld [vmem:[#allocation8 + $0xd8] sm:$0xff]
    %v373 = vld [vmem:[#allocation8 + $0xe0] sm:$0xff]
    %v374 = vld [vmem:[#allocation8 + $0xe8] sm:$0xff]
    %v375 = vld [vmem:[#allocation8 + $0xf0] sm:$0xff]
    %v376 = vld [vmem:[#allocation8 + $0xf8] sm:$0xff]
    %v377 = vld [vmem:[#allocation8 + $0x100] sm:$0xff]
    %v378 = vld [vmem:[#allocation8 + $0x108] sm:$0xff]
    %v379 = vld [vmem:[#allocation8 + $0x110] sm:$0xff]
    %v380 = vld [vmem:[#allocation8 + $0x118] sm:$0xff]
    %v381 = vld [vmem:[#allocation8 + $0x120] sm:$0xff]
    %v382 = vld [vmem:[#allocation8 + $0x128] sm:$0xff]
    %v383 = vld [vmem:[#allocation8 + $0x130] sm:$0xff]
    %v384 = vld [vmem:[#allocation8 + $0x138] sm:$0xff]
    %v385 = vld [vmem:[#allocation8 + $0x140] sm:$0xff]
    %v386 = vld [vmem:[#allocation8 + $0x148] sm:$0xff]
    %v387 = vld [vmem:[#allocation8 + $0x150] sm:$0xff]
    %v388 = vld [vmem:[#allocation8 + $0x158] sm:$0xff]
    %v389 = vld [vmem:[#allocation8 + $0x160] sm:$0xff]
    %v390 = vld [vmem:[#allocation8 + $0x168] sm:$0xff]
    %v391 = vld [vmem:[#allocation8 + $0x170] sm:$0xff]
    %v392 = vld [vmem:[#allocation8 + $0x178] sm:$0xff]
    %v393 = vld [vmem:[#allocation8 + $0x180] sm:$0xff]
    %v394 = vld [vmem:[#allocation8 + $0x188] sm:$0xff]
    %v395 = vld [vmem:[#allocation8 + $0x190] sm:$0xff]
    %v396 = vld [vmem:[#allocation8 + $0x198] sm:$0xff]
    %v397 = vld [vmem:[#allocation8 + $0x1a0] sm:$0xff]
    %v398 = vld [vmem:[#allocation8 + $0x1a8] sm:$0xff]
    %v399 = vld [vmem:[#allocation8 + $0x1b0] sm:$0xff]
    %v400 = vld [vmem:[#allocation8 + $0x1b8] sm:$0xff]
    %v401 = vld [vmem:[#allocation8 + $0x1c0] sm:$0xff]
    %v402 = vld [vmem:[#allocation8 + $0x1c8] sm:$0xff]
    %v403 = vld [vmem:[#allocation8 + $0x1d0] sm:$0xff]
    %v404 = vld [vmem:[#allocation8 + $0x1d8] sm:$0xff]
    %v405 = vld [vmem:[#allocation8 + $0x1e0] sm:$0xff]
    %v406 = vld [vmem:[#allocation8 + $0x1e8] sm:$0xff]
    %v407 = vld [vmem:[#allocation8 + $0x1f0] sm:$0xff]
    %v408 = vld [vmem:[#allocation8 + $0x1f8] sm:$0xff]
    %v409 = vld [vmem:[#allocation8 + $0x200] sm:$0xff]
    %v410 = vld [vmem:[#allocation8 + $0x208] sm:$0xff]
    %v411 = vld [vmem:[#allocation8 + $0x210] sm:$0xff]
    %v412 = vld [vmem:[#allocation8 + $0x218] sm:$0xff]
    %v413 = vld [vmem:[#allocation8 + $0x220] sm:$0xff]
    %v414 = vld [vmem:[#allocation8 + $0x228] sm:$0xff]
    %v415 = vld [vmem:[#allocation8 + $0x230] sm:$0xff]
    %v416 = vld [vmem:[#allocation8 + $0x238] sm:$0xff]
    %v417 = vld [vmem:[#allocation8 + $0x240] sm:$0xff]
    %v418 = vld [vmem:[#allocation8 + $0x248] sm:$0xff]
    %v419 = vld [vmem:[#allocation8 + $0x250] sm:$0xff]
    %v420 = vld [vmem:[#allocation8 + $0x258] sm:$0xff]
    %v421 = vld [vmem:[#allocation8 + $0x260] sm:$0xff]
    %v422 = vld [vmem:[#allocation8 + $0x268] sm:$0xff]
    %v423 = vld [vmem:[#allocation8 + $0x270] sm:$0xff]
    %v424 = vld [vmem:[#allocation8 + $0x278] sm:$0xff]
    %v425 = vld [vmem:[#allocation8 + $0x280] sm:$0xff]
    %v426 = vld [vmem:[#allocation8 + $0x288] sm:$0xff]
    %v427 = vld [vmem:[#allocation8 + $0x290] sm:$0xff]
    %v428 = vld [vmem:[#allocation8 + $0x298] sm:$0xff]
    %v429 = vld [vmem:[#allocation8 + $0x2a0] sm:$0xff]
    %v430 = vld [vmem:[#allocation8 + $0x2a8] sm:$0xff]
    %v431 = vld [vmem:[#allocation8 + $0x2b0] sm:$0xff]
    %v432 = vld [vmem:[#allocation8 + $0x2b8] sm:$0xff]
    %v433 = vld [vmem:[#allocation8 + $0x2c0] sm:$0xff]
    %v434 = vld [vmem:[#allocation8 + $0x2c8] sm:$0xff]
    %v435 = vld [vmem:[#allocation8 + $0x2d0] sm:$0xff]
    %v436 = vld [vmem:[#allocation8 + $0x2d8] sm:$0xff]
    %v437 = vld [vmem:[#allocation8 + $0x2e0] sm:$0xff]
    %v438 = vld [vmem:[#allocation8 + $0x2e8] sm:$0xff]
    %v439 = vld [vmem:[#allocation8 + $0x2f0] sm:$0xff]
    %v440 = vld [vmem:[#allocation8 + $0x2f8] sm:$0xff]
    %v441 = vld [vmem:[#allocation8 + $0x300] sm:$0xff]
    %v442 = vld [vmem:[#allocation8 + $0x308] sm:$0xff]
    %v443 = vld [vmem:[#allocation8 + $0x310] sm:$0xff]
    %v444 = vld [vmem:[#allocation8 + $0x318] sm:$0xff]
    %v445 = vld [vmem:[#allocation8 + $0x320] sm:$0xff]
    %v446 = vld [vmem:[#allocation8 + $0x328] sm:$0xff]
    %v447 = vld [vmem:[#allocation8 + $0x330] sm:$0xff]
    %v448 = vld [vmem:[#allocation8 + $0x338] sm:$0xff]
    %v449 = vld [vmem:[#allocation8 + $0x340] sm:$0xff]
    %v450 = vld [vmem:[#allocation8 + $0x348] sm:$0xff]
    %v451 = vld [vmem:[#allocation8 + $0x350] sm:$0xff]
    %v452 = vld [vmem:[#allocation8 + $0x358] sm:$0xff]
    %v453 = vld [vmem:[#allocation8 + $0x360] sm:$0xff]
    %v454 = vld [vmem:[#allocation8 + $0x368] sm:$0xff]
    %v455 = vld [vmem:[#allocation8 + $0x370] sm:$0xff]
    %v456 = vld [vmem:[#allocation8 + $0x378] sm:$0xff]
    %v457 = vld [vmem:[#allocation8 + $0x380] sm:$0xff]
    %v458 = vld [vmem:[#allocation8 + $0x388] sm:$0xff]
    %v459 = vld [vmem:[#allocation8 + $0x390] sm:$0xff]
    %v460 = vld [vmem:[#allocation8 + $0x398] sm:$0xff]
    %v461 = vld [vmem:[#allocation8 + $0x3a0] sm:$0xff]
    %v462 = vld [vmem:[#allocation8 + $0x3a8] sm:$0xff]
    %v463 = vld [vmem:[#allocation8 + $0x3b0] sm:$0xff]
    %v464 = vld [vmem:[#allocation8 + $0x3b8] sm:$0xff]
    %v465 = vld [vmem:[#allocation8 + $0x3c0] sm:$0xff]
    %v466 = vld [vmem:[#allocation8 + $0x3c8] sm:$0xff]
    %v467 = vld [vmem:[#allocation8 + $0x3d0] sm:$0xff]
    %v468 = vld [vmem:[#allocation8 + $0x3d8] sm:$0xff]
    %v469 = vld [vmem:[#allocation8 + $0x3e0] sm:$0xff]
    %v470 = vld [vmem:[#allocation8 + $0x3e8] sm:$0xff]
    %v471 = vld [vmem:[#allocation8 + $0x3f0] sm:$0xff]
    %v472 = vld [vmem:[#allocation8 + $0x3f8] sm:$0xff]
    %v473 = vld [vmem:[#allocation8 + $0x400] sm:$0xff]
    %v474 = vld [vmem:[#allocation8 + $0x408] sm:$0xff]
    %v475 = vld [vmem:[#allocation8 + $0x410] sm:$0xff]
    %v476 = vld [vmem:[#allocation8 + $0x418] sm:$0xff]
    %v477 = vld [vmem:[#allocation8 + $0x420] sm:$0xff]
    %v478 = vld [vmem:[#allocation8 + $0x428] sm:$0xff]
    %v479 = vld [vmem:[#allocation8 + $0x430] sm:$0xff]
    %v480 = vld [vmem:[#allocation8 + $0x438] sm:$0xff]
    %v481 = vld [vmem:[#allocation8 + $0x440] sm:$0xff]
    %v482 = vld [vmem:[#allocation8 + $0x448] sm:$0xff]
    %v483 = vld [vmem:[#allocation8 + $0x450] sm:$0xff]
    %v484 = vld [vmem:[#allocation8 + $0x458] sm:$0xff]
    %v485 = vld [vmem:[#allocation8 + $0x460] sm:$0xff]
    %v486 = vld [vmem:[#allocation8 + $0x468] sm:$0xff]
    %v487 = vld [vmem:[#allocation8 + $0x470] sm:$0xff]
    %v488 = vld [vmem:[#allocation8 + $0x478] sm:$0xff]
    %v489 = vld [vmem:[#allocation8 + $0x480] sm:$0xff]
    %v490 = vld [vmem:[#allocation8 + $0x488] sm:$0xff]
    %v491 = vld [vmem:[#allocation8 + $0x490] sm:$0xff]
    %v492 = vld [vmem:[#allocation8 + $0x498] sm:$0xff]
    %v493 = vld [vmem:[#allocation8 + $0x4a0] sm:$0xff]
    %v494 = vld [vmem:[#allocation8 + $0x4a8] sm:$0xff]
    %v495 = vld [vmem:[#allocation8 + $0x4b0] sm:$0xff]
    %v496 = vld [vmem:[#allocation8 + $0x4b8] sm:$0xff]
    %v497 = vld [vmem:[#allocation8 + $0x4c0] sm:$0xff]
    %v498 = vld [vmem:[#allocation8 + $0x4c8] sm:$0xff]
    %v499 = vld [vmem:[#allocation8 + $0x4d0] sm:$0xff]
    %v500 = vld [vmem:[#allocation8 + $0x4d8] sm:$0xff]
    %v501 = vld [vmem:[#allocation8 + $0x4e0] sm:$0xff]
    %v502 = vld [vmem:[#allocation8 + $0x4e8] sm:$0xff]
    %v503 = vld [vmem:[#allocation8 + $0x4f0] sm:$0xff]
    %v504 = vld [vmem:[#allocation8 + $0x4f8] sm:$0xff]
    %505 = vmatprep.subr.mxu0 %v346
    %506 = vmatpush1.msra.mxu0 %v345
    %507 = vmatprep.subr.mxu0 %v356
    %508 = vmatpush1.msra.mxu0 %v355
    %509 = vmatprep.subr.mxu0 %v366
    %510 = vmatpush1.msra.mxu0 %v365
    %511 = vmatprep.subr.mxu0 %v376
    %512 = vmatpush1.msra.mxu0 %v375
    %513 = vmatprep.subr.mxu0 %v386
    %514 = vmatpush1.msra.mxu0 %v385
    %515 = vmatprep.subr.mxu0 %v396
    %516 = vmatpush1.msra.mxu0 %v395
    %517 = vmatprep.subr.mxu0 %v406
    %518 = vmatpush1.msra.mxu0 %v405
    %519 = vmatprep.subr.mxu0 %v416
    %520 = vmatpush1.msra.mxu0 %v415
    %521 = vmatprep.subr.mxu0 %v426
    %522 = vmatpush1.msra.mxu0 %v425
    %523 = vmatprep.subr.mxu0 %v436
    %524 = vmatpush1.msra.mxu0 %v435
    %525 = vmatprep.subr.mxu0 %v446
    %526 = vmatpush1.msra.mxu0 %v445
    %527 = vmatprep.subr.mxu0 %v456
    %528 = vmatpush1.msra.mxu0 %v455
    %529 = vmatprep.subr.mxu0 %v466
    %530 = vmatpush1.msra.mxu0 %v465
    %531 = vmatprep.subr.mxu0 %v476
    %532 = vmatpush1.msra.mxu0 %v475
    %533 = vmatprep.subr.mxu0 %v486
    %534 = vmatpush1.msra.mxu0 %v485
    %535 = vmatprep.subr.mxu0 %v496
    %536 = vmatpush1.msra.mxu0 %v495
    %537 = vmatprep.subr.mxu0 0.0
    %538 = vmatpush1.msra.mxu0 0.0
    %539 = vmatprep.subr.mxu0 0.0
    %540 = vmatpush1.msra.mxu0 0.0
    %541 = vmatprep.subr.mxu0 0.0
    %542 = vmatpush1.msra.mxu0 0.0
    %543 = vmatprep.subr.mxu0 0.0
    %544 = vmatpush1.msra.mxu0 0.0
    %545 = vmatprep.subr.mxu0 0.0
    %546 = vmatpush1.msra.mxu0 0.0
    %547 = vmatprep.subr.mxu0 0.0
    %548 = vmatpush1.msra.mxu0 0.0
    %549 = vmatprep.subr.mxu0 0.0
    %550 = vmatpush1.msra.mxu0 0.0
    %551 = vmatprep.subr.mxu0 0.0
    %552 = vmatpush1.msra.mxu0 0.0
    %553 = vmatprep.subr.mxu0 0.0
    %554 = vmatpush1.msra.mxu0 0.0
    %555 = vmatprep.subr.mxu0 0.0
    %556 = vmatpush1.msra.mxu0 0.0
    %557 = vmatprep.subr.mxu0 0.0
    %558 = vmatpush1.msra.mxu0 0.0
    %559 = vmatprep.subr.mxu0 0.0
    %560 = vmatpush1.msra.mxu0 0.0
    %561 = vmatprep.subr.mxu0 0.0
    %562 = vmatpush1.msra.mxu0 0.0
    %563 = vmatprep.subr.mxu0 0.0
    %564 = vmatpush1.msra.mxu0 0.0
    %565 = vmatprep.subr.mxu0 0.0
    %566 = vmatpush1.msra.mxu0 0.0
    %567 = vmatprep.subr.mxu0 0.0
    %568 = vmatpush1.msra.mxu0 0.0
    %569 = vmatprep.mubr.f32.mxu0 0.0
    %570 = vmatmul.mubr.f32.gmra.mrb[0].mxu0 %v343
    %v571 = vpop.f32.mrb[0].mxu0
    %v572 = vadd.f32 0.0, %v571
    %v573 = vpop.f32.mrb[0].mxu0
    %v574 = vadd.f32 0.0, %v573
    %575 = vmatprep.mubr.f32.mxu0 0.0
    %576 = vmatmul.mubr.f32.gmra.mrb[0].mxu0 %v344
    %v577 = vpop.f32.mrb[0].mxu0
    %v578 = vadd.f32 0.0, %v577
    %v579 = vpop.f32.mrb[0].mxu0
    %v580 = vadd.f32 0.0, %v579
    %581 = vdwg.mxu0
    %582 = vmatprep.subr.mxu0 %v348
    %583 = vmatpush1.msra.mxu0 %v347
    %584 = vmatprep.subr.mxu0 %v358
    %585 = vmatpush1.msra.mxu0 %v357
    %586 = vmatprep.subr.mxu0 %v368
    %587 = vmatpush1.msra.mxu0 %v367
    %588 = vmatprep.subr.mxu0 %v378
    %589 = vmatpush1.msra.mxu0 %v377
    %590 = vmatprep.subr.mxu0 %v388
    %591 = vmatpush1.msra.mxu0 %v387
    %592 = vmatprep.subr.mxu0 %v398
    %593 = vmatpush1.msra.mxu0 %v397
    %594 = vmatprep.subr.mxu0 %v408
    %595 = vmatpush1.msra.mxu0 %v407
    %596 = vmatprep.subr.mxu0 %v418
    %597 = vmatpush1.msra.mxu0 %v417
    %598 = vmatprep.subr.mxu0 %v428
    %599 = vmatpush1.msra.mxu0 %v427
    %600 = vmatprep.subr.mxu0 %v438
    %601 = vmatpush1.msra.mxu0 %v437
    %602 = vmatprep.subr.mxu0 %v448
    %603 = vmatpush1.msra.mxu0 %v447
    %604 = vmatprep.subr.mxu0 %v458
    %605 = vmatpush1.msra.mxu0 %v457
    %606 = vmatprep.subr.mxu0 %v468
    %607 = vmatpush1.msra.mxu0 %v467
    %608 = vmatprep.subr.mxu0 %v478
    %609 = vmatpush1.msra.mxu0 %v477
    %610 = vmatprep.subr.mxu0 %v488
    %611 = vmatpush1.msra.mxu0 %v487
    %612 = vmatprep.subr.mxu0 %v498
    %613 = vmatpush1.msra.mxu0 %v497
    %614 = vmatprep.subr.mxu0 0.0
    %615 = vmatpush1.msra.mxu0 0.0
    %616 = vmatprep.subr.mxu0 0.0
    %617 = vmatpush1.msra.mxu0 0.0
    %618 = vmatprep.subr.mxu0 0.0
    %619 = vmatpush1.msra.mxu0 0.0
    %620 = vmatprep.subr.mxu0 0.0
    %621 = vmatpush1.msra.mxu0 0.0
    %622 = vmatprep.subr.mxu0 0.0
    %623 = vmatpush1.msra.mxu0 0.0
    %624 = vmatprep.subr.mxu0 0.0
    %625 = vmatpush1.msra.mxu0 0.0
    %626 = vmatprep.subr.mxu0 0.0
    %627 = vmatpush1.msra.mxu0 0.0
    %628 = vmatprep.subr.mxu0 0.0
    %629 = vmatpush1.msra.mxu0 0.0
    %630 = vmatprep.subr.mxu0 0.0
    %631 = vmatpush1.msra.mxu0 0.0
    %632 = vmatprep.subr.mxu0 0.0
    %633 = vmatpush1.msra.mxu0 0.0
    %634 = vmatprep.subr.mxu0 0.0
    %635 = vmatpush1.msra.mxu0 0.0
    %636 = vmatprep.subr.mxu0 0.0
    %637 = vmatpush1.msra.mxu0 0.0
    %638 = vmatprep.subr.mxu0 0.0
    %639 = vmatpush1.msra.mxu0 0.0
    %640 = vmatprep.subr.mxu0 0.0
    %641 = vmatpush1.msra.mxu0 0.0
    %642 = vmatprep.subr.mxu0 0.0
    %643 = vmatpush1.msra.mxu0 0.0
    %644 = vmatprep.subr.mxu0 0.0
    %645 = vmatpush1.msra.mxu0 0.0
    %646 = vmatprep.mubr.f32.mxu0 0.0
    %647 = vmatmul.mubr.f32.gmra.mrb[0].mxu0 %v343
    %v648 = vpop.f32.mrb[0].mxu0
    %v649 = vadd.f32 0.0, %v648
    %v650 = vpop.f32.mrb[0].mxu0
    %v651 = vadd.f32 0.0, %v650
    %652 = vmatprep.mubr.f32.mxu0 0.0
    %653 = vmatmul.mubr.f32.gmra.mrb[0].mxu0 %v344
    %v654 = vpop.f32.mrb[0].mxu0
    %v655 = vadd.f32 0.0, %v654
    %v656 = vpop.f32.mrb[0].mxu0
    %v657 = vadd.f32 0.0, %v656
    %658 = vdwg.mxu0
    %659 = vmatprep.subr.mxu0 %v350
    %660 = vmatpush1.msra.mxu0 %v349
    %661 = vmatprep.subr.mxu0 %v360
    %662 = vmatpush1.msra.mxu0 %v359
    %663 = vmatprep.subr.mxu0 %v370
    %664 = vmatpush1.msra.mxu0 %v369
    %665 = vmatprep.subr.mxu0 %v380
    %666 = vmatpush1.msra.mxu0 %v379
    %667 = vmatprep.subr.mxu0 %v390
    %668 = vmatpush1.msra.mxu0 %v389
    %669 = vmatprep.subr.mxu0 %v400
    %670 = vmatpush1.msra.mxu0 %v399
    %671 = vmatprep.subr.mxu0 %v410
    %672 = vmatpush1.msra.mxu0 %v409
    %673 = vmatprep.subr.mxu0 %v420
    %674 = vmatpush1.msra.mxu0 %v419
    %675 = vmatprep.subr.mxu0 %v430
    %676 = vmatpush1.msra.mxu0 %v429
    %677 = vmatprep.subr.mxu0 %v440
    %678 = vmatpush1.msra.mxu0 %v439
    %679 = vmatprep.subr.mxu0 %v450
    %680 = vmatpush1.msra.mxu0 %v449
    %681 = vmatprep.subr.mxu0 %v460
    %682 = vmatpush1.msra.mxu0 %v459
    %683 = vmatprep.subr.mxu0 %v470
    %684 = vmatpush1.msra.mxu0 %v469
    %685 = vmatprep.subr.mxu0 %v480
    %686 = vmatpush1.msra.mxu0 %v479
    %687 = vmatprep.subr.mxu0 %v490
    %688 = vmatpush1.msra.mxu0 %v489
    %689 = vmatprep.subr.mxu0 %v500
    %690 = vmatpush1.msra.mxu0 %v499
    %691 = vmatprep.subr.mxu0 0.0
    %692 = vmatpush1.msra.mxu0 0.0
    %693 = vmatprep.subr.mxu0 0.0
    %694 = vmatpush1.msra.mxu0 0.0
    %695 = vmatprep.subr.mxu0 0.0
    %696 = vmatpush1.msra.mxu0 0.0
    %697 = vmatprep.subr.mxu0 0.0
    %698 = vmatpush1.msra.mxu0 0.0
    %699 = vmatprep.subr.mxu0 0.0
    %700 = vmatpush1.msra.mxu0 0.0
    %701 = vmatprep.subr.mxu0 0.0
    %702 = vmatpush1.msra.mxu0 0.0
    %703 = vmatprep.subr.mxu0 0.0
    %704 = vmatpush1.msra.mxu0 0.0
    %705 = vmatprep.subr.mxu0 0.0
    %706 = vmatpush1.msra.mxu0 0.0
    %707 = vmatprep.subr.mxu0 0.0
    %708 = vmatpush1.msra.mxu0 0.0
    %709 = vmatprep.subr.mxu0 0.0
    %710 = vmatpush1.msra.mxu0 0.0
    %711 = vmatprep.subr.mxu0 0.0
    %712 = vmatpush1.msra.mxu0 0.0
    %713 = vmatprep.subr.mxu0 0.0
    %714 = vmatpush1.msra.mxu0 0.0
    %715 = vmatprep.subr.mxu0 0.0
    %716 = vmatpush1.msra.mxu0 0.0
    %717 = vmatprep.subr.mxu0 0.0
    %718 = vmatpush1.msra.mxu0 0.0
    %719 = vmatprep.subr.mxu0 0.0
    %720 = vmatpush1.msra.mxu0 0.0
    %721 = vmatprep.subr.mxu0 0.0
    %722 = vmatpush1.msra.mxu0 0.0
    %723 = vmatprep.mubr.f32.mxu0 0.0
    %724 = vmatmul.mubr.f32.gmra.mrb[0].mxu0 %v343
    %v725 = vpop.f32.mrb[0].mxu0
    %v726 = vadd.f32 0.0, %v725
    %v727 = vpop.f32.mrb[0].mxu0
    %v728 = vadd.f32 0.0, %v727
    %729 = vmatprep.mubr.f32.mxu0 0.0
    %730 = vmatmul.mubr.f32.gmra.mrb[0].mxu0 %v344
    %v731 = vpop.f32.mrb[0].mxu0
    %v732 = vadd.f32 0.0, %v731
    %v733 = vpop.f32.mrb[0].mxu0
    %v734 = vadd.f32 0.0, %v733
    %735 = vdwg.mxu0
    %736 = vmatprep.subr.mxu0 %v352
    %737 = vmatpush1.msra.mxu0 %v351
    %738 = vmatprep.subr.mxu0 %v362
    %739 = vmatpush1.msra.mxu0 %v361
    %740 = vmatprep.subr.mxu0 %v372
    %741 = vmatpush1.msra.mxu0 %v371
    %742 = vmatprep.subr.mxu0 %v382
    %743 = vmatpush1.msra.mxu0 %v381
    %744 = vmatprep.subr.mxu0 %v392
    %745 = vmatpush1.msra.mxu0 %v391
    %746 = vmatprep.subr.mxu0 %v402
    %747 = vmatpush1.msra.mxu0 %v401
    %748 = vmatprep.subr.mxu0 %v412
    %749 = vmatpush1.msra.mxu0 %v411
    %750 = vmatprep.subr.mxu0 %v422
    %751 = vmatpush1.msra.mxu0 %v421
    %752 = vmatprep.subr.mxu0 %v432
    %753 = vmatpush1.msra.mxu0 %v431
    %754 = vmatprep.subr.mxu0 %v442
    %755 = vmatpush1.msra.mxu0 %v441
    %756 = vmatprep.subr.mxu0 %v452
    %757 = vmatpush1.msra.mxu0 %v451
    %758 = vmatprep.subr.mxu0 %v462
    %759 = vmatpush1.msra.mxu0 %v461
    %760 = vmatprep.subr.mxu0 %v472
    %761 = vmatpush1.msra.mxu0 %v471
    %762 = vmatprep.subr.mxu0 %v482
    %763 = vmatpush1.msra.mxu0 %v481
    %764 = vmatprep.subr.mxu0 %v492
    %765 = vmatpush1.msra.mxu0 %v491
    %766 = vmatprep.subr.mxu0 %v502
    %767 = vmatpush1.msra.mxu0 %v501
    %768 = vmatprep.subr.mxu0 0.0
    %769 = vmatpush1.msra.mxu0 0.0
    %770 = vmatprep.subr.mxu0 0.0
    %771 = vmatpush1.msra.mxu0 0.0
    %772 = vmatprep.subr.mxu0 0.0
    %773 = vmatpush1.msra.mxu0 0.0
    %774 = vmatprep.subr.mxu0 0.0
    %775 = vmatpush1.msra.mxu0 0.0
    %776 = vmatprep.subr.mxu0 0.0
    %777 = vmatpush1.msra.mxu0 0.0
    %778 = vmatprep.subr.mxu0 0.0
    %779 = vmatpush1.msra.mxu0 0.0
    %780 = vmatprep.subr.mxu0 0.0
    %781 = vmatpush1.msra.mxu0 0.0
    %782 = vmatprep.subr.mxu0 0.0
    %783 = vmatpush1.msra.mxu0 0.0
    %784 = vmatprep.subr.mxu0 0.0
    %785 = vmatpush1.msra.mxu0 0.0
    %786 = vmatprep.subr.mxu0 0.0
    %787 = vmatpush1.msra.mxu0 0.0
    %788 = vmatprep.subr.mxu0 0.0
    %789 = vmatpush1.msra.mxu0 0.0
    %790 = vmatprep.subr.mxu0 0.0
    %791 = vmatpush1.msra.mxu0 0.0
    %792 = vmatprep.subr.mxu0 0.0
    %793 = vmatpush1.msra.mxu0 0.0
    %794 = vmatprep.subr.mxu0 0.0
    %795 = vmatpush1.msra.mxu0 0.0
    %796 = vmatprep.subr.mxu0 0.0
    %797 = vmatpush1.msra.mxu0 0.0
    %798 = vmatprep.subr.mxu0 0.0
    %799 = vmatpush1.msra.mxu0 0.0
    %800 = vmatprep.mubr.f32.mxu0 0.0
    %801 = vmatmul.mubr.f32.gmra.mrb[0].mxu0 %v343
    %v802 = vpop.f32.mrb[0].mxu0
    %v803 = vadd.f32 0.0, %v802
    %v804 = vpop.f32.mrb[0].mxu0
    %v805 = vadd.f32 0.0, %v804
    %806 = vmatprep.mubr.f32.mxu0 0.0
    %807 = vmatmul.mubr.f32.gmra.mrb[0].mxu0 %v344
    %v808 = vpop.f32.mrb[0].mxu0
    %v809 = vadd.f32 0.0, %v808
    %v810 = vpop.f32.mrb[0].mxu0
    %v811 = vadd.f32 0.0, %v810
    %812 = vdwg.mxu0
    %813 = vmatprep.subr.mxu0 %v354
    %814 = vmatpush1.msra.mxu0 %v353
    %815 = vmatprep.subr.mxu0 %v364
    %816 = vmatpush1.msra.mxu0 %v363
    %817 = vmatprep.subr.mxu0 %v374
    %818 = vmatpush1.msra.mxu0 %v373
    %819 = vmatprep.subr.mxu0 %v384
    %820 = vmatpush1.msra.mxu0 %v383
    %821 = vmatprep.subr.mxu0 %v394
    %822 = vmatpush1.msra.mxu0 %v393
    %823 = vmatprep.subr.mxu0 %v404
    %824 = vmatpush1.msra.mxu0 %v403
    %825 = vmatprep.subr.mxu0 %v414
    %826 = vmatpush1.msra.mxu0 %v413
    %827 = vmatprep.subr.mxu0 %v424
    %828 = vmatpush1.msra.mxu0 %v423
    %829 = vmatprep.subr.mxu0 %v434
    %830 = vmatpush1.msra.mxu0 %v433
    %831 = vmatprep.subr.mxu0 %v444
    %832 = vmatpush1.msra.mxu0 %v443
    %833 = vmatprep.subr.mxu0 %v454
    %834 = vmatpush1.msra.mxu0 %v453
    %835 = vmatprep.subr.mxu0 %v464
    %836 = vmatpush1.msra.mxu0 %v463
    %837 = vmatprep.subr.mxu0 %v474
    %838 = vmatpush1.msra.mxu0 %v473
    %839 = vmatprep.subr.mxu0 %v484
    %840 = vmatpush1.msra.mxu0 %v483
    %841 = vmatprep.subr.mxu0 %v494
    %842 = vmatpush1.msra.mxu0 %v493
    %843 = vmatprep.subr.mxu0 %v504
    %844 = vmatpush1.msra.mxu0 %v503
    %845 = vmatprep.subr.mxu0 0.0
    %846 = vmatpush1.msra.mxu0 0.0
    %847 = vmatprep.subr.mxu0 0.0
    %848 = vmatpush1.msra.mxu0 0.0
    %849 = vmatprep.subr.mxu0 0.0
    %850 = vmatpush1.msra.mxu0 0.0
    %851 = vmatprep.subr.mxu0 0.0
    %852 = vmatpush1.msra.mxu0 0.0
    %853 = vmatprep.subr.mxu0 0.0
    %854 = vmatpush1.msra.mxu0 0.0
    %855 = vmatprep.subr.mxu0 0.0
    %856 = vmatpush1.msra.mxu0 0.0
    %857 = vmatprep.subr.mxu0 0.0
    %858 = vmatpush1.msra.mxu0 0.0
    %859 = vmatprep.subr.mxu0 0.0
    %860 = vmatpush1.msra.mxu0 0.0
    %861 = vmatprep.subr.mxu0 0.0
    %862 = vmatpush1.msra.mxu0 0.0
    %863 = vmatprep.subr.mxu0 0.0
    %864 = vmatpush1.msra.mxu0 0.0
    %865 = vmatprep.subr.mxu0 0.0
    %866 = vmatpush1.msra.mxu0 0.0
    %867 = vmatprep.subr.mxu0 0.0
    %868 = vmatpush1.msra.mxu0 0.0
    %869 = vmatprep.subr.mxu0 0.0
    %870 = vmatpush1.msra.mxu0 0.0
    %871 = vmatprep.subr.mxu0 0.0
    %872 = vmatpush1.msra.mxu0 0.0
    %873 = vmatprep.subr.mxu0 0.0
    %874 = vmatpush1.msra.mxu0 0.0
    %875 = vmatprep.subr.mxu0 0.0
    %876 = vmatpush1.msra.mxu0 0.0
    %877 = vmatprep.mubr.f32.mxu0 0.0
    %878 = vmatmul.mubr.f32.gmra.mrb[0].mxu0 %v343
    %v879 = vpop.f32.mrb[0].mxu0
    %v880 = vadd.f32 0.0, %v879
    %v881 = vpop.f32.mrb[0].mxu0
    %v882 = vadd.f32 0.0, %v881
    %883 = vmatprep.mubr.f32.mxu0 0.0
    %884 = vmatmul.mubr.f32.gmra.mrb[0].mxu0 %v344
    %v885 = vpop.f32.mrb[0].mxu0
    %v886 = vadd.f32 0.0, %v885
    %v887 = vpop.f32.mrb[0].mxu0
    %v888 = vadd.f32 0.0, %v887
    %889 = vdwg.mxu0
    %v890 = vmul.f32 %v572, %v295
    %v891 = vmul.f32 %v574, %v296
    %v892 = vmul.f32 %v578, %v295
    %v893 = vmul.f32 %v580, %v296
    %v894 = vmul.f32 %v803, %v297
    %v895 = vmul.f32 %v805, %v298
    %v896 = vmul.f32 %v809, %v297
    %v897 = vmul.f32 %v811, %v298
    %v898 = vadd.f32 %v890, %v894
    %v899 = vadd.f32 %v891, %v895
    %v900 = vadd.f32 %v892, %v896
    %v901 = vadd.f32 %v893, %v897
    %v902 = vmul.f32 %v649, %v295
    %v903 = vmul.f32 %v651, %v296
    %v904 = vmul.f32 %v655, %v295
    %v905 = vmul.f32 %v657, %v296
    %v906 = vmul.f32 %v880, %v297
    %v907 = vmul.f32 %v882, %v298
    %v908 = vmul.f32 %v886, %v297
    %v909 = vmul.f32 %v888, %v298
    %v910 = vadd.f32 %v902, %v906
    %v911 = vadd.f32 %v903, %v907
    %v912 = vadd.f32 %v904, %v908
    %v913 = vadd.f32 %v905, %v909
    %914 = vmatprep.subr.mxu0 0.0
    %915 = vmatpush1.xpose.msra.mxu0 %v910
    %916 = vmatprep.subr.mxu0 0.0
    %917 = vmatpush1.xpose.msra.mxu0 0.0
    %918 = vmatprep.subr.mxu0 0.0
    %919 = vmatpush1.xpose.msra.mxu0 0.0
    %920 = vmatprep.subr.mxu0 0.0
    %921 = vmatpush1.xpose.msra.mxu0 0.0
    %922 = vmatprep.subr.mxu0 0.0
    %923 = vmatpush1.xpose.msra.mxu0 0.0
    %924 = vmatprep.subr.mxu0 0.0
    %925 = vmatpush1.xpose.msra.mxu0 0.0
    %926 = vmatprep.subr.mxu0 0.0
    %927 = vmatpush1.xpose.msra.mxu0 0.0
    %928 = vmatprep.subr.mxu0 0.0
    %929 = vmatpush1.xpose.msra.mxu0 0.0
    %930 = vmatprep.subr.mxu0 0.0
    %931 = vmatpush1.xpose.msra.mxu0 0.0
    %932 = vmatprep.subr.mxu0 0.0
    %933 = vmatpush1.xpose.msra.mxu0 0.0
    %934 = vmatprep.subr.mxu0 0.0
    %935 = vmatpush1.xpose.msra.mxu0 0.0
    %936 = vmatprep.subr.mxu0 0.0
    %937 = vmatpush1.xpose.msra.mxu0 0.0
    %938 = vmatprep.subr.mxu0 0.0
    %939 = vmatpush1.xpose.msra.mxu0 0.0
    %940 = vmatprep.subr.mxu0 0.0
    %941 = vmatpush1.xpose.msra.mxu0 0.0
    %942 = vmatprep.subr.mxu0 0.0
    %943 = vmatpush1.xpose.msra.mxu0 0.0
    %944 = vmatprep.subr.mxu0 0.0
    %945 = vmatpush1.xpose.msra.mxu0 0.0
    %946 = vmatprep.subr.mxu0 0.0
    %947 = vmatpush1.xpose.msra.mxu0 0.0
    %948 = vmatprep.subr.mxu0 0.0
    %949 = vmatpush1.xpose.msra.mxu0 0.0
    %950 = vmatprep.subr.mxu0 0.0
    %951 = vmatpush1.xpose.msra.mxu0 0.0
    %952 = vmatprep.subr.mxu0 0.0
    %953 = vmatpush1.xpose.msra.mxu0 0.0
    %954 = vmatprep.subr.mxu0 0.0
    %955 = vmatpush1.xpose.msra.mxu0 0.0
    %956 = vmatprep.subr.mxu0 0.0
    %957 = vmatpush1.xpose.msra.mxu0 0.0
    %958 = vmatprep.subr.mxu0 0.0
    %959 = vmatpush1.xpose.msra.mxu0 0.0
    %960 = vmatprep.subr.mxu0 0.0
    %961 = vmatpush1.xpose.msra.mxu0 0.0
    %962 = vmatprep.subr.mxu0 0.0
    %963 = vmatpush1.xpose.msra.mxu0 0.0
    %964 = vmatprep.subr.mxu0 0.0
    %965 = vmatpush1.xpose.msra.mxu0 0.0
    %966 = vmatprep.subr.mxu0 0.0
    %967 = vmatpush1.xpose.msra.mxu0 0.0
    %968 = vmatprep.subr.mxu0 0.0
    %969 = vmatpush1.xpose.msra.mxu0 0.0
    %970 = vmatprep.subr.mxu0 0.0
    %971 = vmatpush1.xpose.msra.mxu0 0.0
    %972 = vmatprep.subr.mxu0 0.0
    %973 = vmatpush1.xpose.msra.mxu0 0.0
    %974 = vmatprep.subr.mxu0 0.0
    %975 = vmatpush1.xpose.msra.mxu0 0.0
    %976 = vmatprep.subr.mxu0 0.0
    %977 = vmatpush1.xpose.msra.mxu0 0.0
    %978 = vmatprep.mubr.f32.mxu0 0.0
    %979 = vmatmul.mubr.f32.gmra.mrb[0].mxu0 %v898
    %v980 = vpop.f32.mrb[0].mxu0
    %v981 = vadd.f32 0.0, %v980
    %v982 = vpop.f32.mrb[0].mxu0
    %983 = vdwg.mxu0
    %984 = vmatprep.subr.mxu0 0.0
    %985 = vmatpush1.xpose.msra.mxu0 %v912
    %986 = vmatprep.subr.mxu0 0.0
    %987 = vmatpush1.xpose.msra.mxu0 0.0
    %988 = vmatprep.subr.mxu0 0.0
    %989 = vmatpush1.xpose.msra.mxu0 0.0
    %990 = vmatprep.subr.mxu0 0.0
    %991 = vmatpush1.xpose.msra.mxu0 0.0
    %992 = vmatprep.subr.mxu0 0.0
    %993 = vmatpush1.xpose.msra.mxu0 0.0
    %994 = vmatprep.subr.mxu0 0.0
    %995 = vmatpush1.xpose.msra.mxu0 0.0
    %996 = vmatprep.subr.mxu0 0.0
    %997 = vmatpush1.xpose.msra.mxu0 0.0
    %998 = vmatprep.subr.mxu0 0.0
    %999 = vmatpush1.xpose.msra.mxu0 0.0
    %1000 = vmatprep.subr.mxu0 0.0
    %1001 = vmatpush1.xpose.msra.mxu0 0.0
    %1002 = vmatprep.subr.mxu0 0.0
    %1003 = vmatpush1.xpose.msra.mxu0 0.0
    %1004 = vmatprep.subr.mxu0 0.0
    %1005 = vmatpush1.xpose.msra.mxu0 0.0
    %1006 = vmatprep.subr.mxu0 0.0
    %1007 = vmatpush1.xpose.msra.mxu0 0.0
    %1008 = vmatprep.subr.mxu0 0.0
    %1009 = vmatpush1.xpose.msra.mxu0 0.0
    %1010 = vmatprep.subr.mxu0 0.0
    %1011 = vmatpush1.xpose.msra.mxu0 0.0
    %1012 = vmatprep.subr.mxu0 0.0
    %1013 = vmatpush1.xpose.msra.mxu0 0.0
    %1014 = vmatprep.subr.mxu0 0.0
    %1015 = vmatpush1.xpose.msra.mxu0 0.0
    %1016 = vmatprep.subr.mxu0 0.0
    %1017 = vmatpush1.xpose.msra.mxu0 0.0
    %1018 = vmatprep.subr.mxu0 0.0
    %1019 = vmatpush1.xpose.msra.mxu0 0.0
    %1020 = vmatprep.subr.mxu0 0.0
    %1021 = vmatpush1.xpose.msra.mxu0 0.0
    %1022 = vmatprep.subr.mxu0 0.0
    %1023 = vmatpush1.xpose.msra.mxu0 0.0
    %1024 = vmatprep.subr.mxu0 0.0
    %1025 = vmatpush1.xpose.msra.mxu0 0.0
    %1026 = vmatprep.subr.mxu0 0.0
    %1027 = vmatpush1.xpose.msra.mxu0 0.0
    %1028 = vmatprep.subr.mxu0 0.0
    %1029 = vmatpush1.xpose.msra.mxu0 0.0
    %1030 = vmatprep.subr.mxu0 0.0
    %1031 = vmatpush1.xpose.msra.mxu0 0.0
    %1032 = vmatprep.subr.mxu0 0.0
    %1033 = vmatpush1.xpose.msra.mxu0 0.0
    %1034 = vmatprep.subr.mxu0 0.0
    %1035 = vmatpush1.xpose.msra.mxu0 0.0
    %1036 = vmatprep.subr.mxu0 0.0
    %1037 = vmatpush1.xpose.msra.mxu0 0.0
    %1038 = vmatprep.subr.mxu0 0.0
    %1039 = vmatpush1.xpose.msra.mxu0 0.0
    %1040 = vmatprep.subr.mxu0 0.0
    %1041 = vmatpush1.xpose.msra.mxu0 0.0
    %1042 = vmatprep.subr.mxu0 0.0
    %1043 = vmatpush1.xpose.msra.mxu0 0.0
    %1044 = vmatprep.subr.mxu0 0.0
    %1045 = vmatpush1.xpose.msra.mxu0 0.0
    %1046 = vmatprep.subr.mxu0 0.0
    %1047 = vmatpush1.xpose.msra.mxu0 0.0
    %1048 = vmatprep.mubr.f32.mxu0 0.0
    %1049 = vmatmul.mubr.f32.gmra.mrb[0].mxu0 %v900
    %v1050 = vpop.f32.mrb[0].mxu0
    %v1051 = vadd.f32 0.0, %v1050
    %v1052 = vpop.f32.mrb[0].mxu0
    %1053 = vdwg.mxu0
    %v1054 = vmul.f32 %v981, 0.14433756
    %v1055 = vmul.f32 %v1051, 0.14433756
    %v1056 = vsel %vm294, 1, 0
    %vm1057 = vcmp.eq.s32.totalorder %v1056, 1
    %v1058 = vsel %vm1057, %v1054, -inf
    %v1059 = vsel %vm1057, %v1055, -inf
    %vm1060 = vcmask 64512
    %v1061 = vsel %vm1060, %v1058, -inf
    %1062 = vmax.xlane.f32.xlu0 %v1061
    %v1063 = vpop.xlane.xlu0 %1062
    %v1064 = vsel %vm1060, %v1059, -inf
    %1065 = vmax.xlane.f32.xlu0 %v1064
    %v1066 = vpop.xlane.xlu0 %1065
    %v1067 = vsub.f32 %v1058, %v1063
    %v1068 = vsub.f32 %v1059, %v1066
    %v1069 = vmul.f32 %v1067, 1.442695
    %v1070 = vpow.pop %v1069
    %v1071 = vmul.f32 %v1068, 1.442695
    %v1072 = vpow.pop %v1071
    %v1073 = vsel %vm1060, %v1070, 0.0
    %1074 = vadd.xlane.f32.xlu0 %v1073
    %v1075 = vpop.xlane.xlu0 %1074
    %v1076 = vsel %vm1060, %v1072, 0.0
    %1077 = vadd.xlane.f32.xlu0 %v1076
    %v1078 = vpop.xlane.xlu0 %1077
    %v1079 = vrcp.pop %v1075
    %v1080 = vrcp.pop %v1078
    %v1081 = vmul.f32 %v1070, %v1079
    %v1082 = vmul.f32 %v1072, %v1080
    %v1084 = vsel %vm1060, %v1081, 0
    %1086 = vmatprep.subr.mxu0 0.0
    %1087 = vmatpush1.msra.mxu0 %v726
    %1088 = vmatprep.subr.mxu0 0.0
    %1089 = vmatpush1.msra.mxu0 0.0
    %1090 = vmatprep.subr.mxu0 0.0
    %1091 = vmatpush1.msra.mxu0 0.0
    %1092 = vmatprep.subr.mxu0 0.0
    %1093 = vmatpush1.msra.mxu0 0.0
    %1094 = vmatprep.subr.mxu0 0.0
    %1095 = vmatpush1.msra.mxu0 0.0
    %1096 = vmatprep.subr.mxu0 0.0
    %1097 = vmatpush1.msra.mxu0 0.0
    %1098 = vmatprep.subr.mxu0 0.0
    %1099 = vmatpush1.msra.mxu0 0.0
    %1100 = vmatprep.subr.mxu0 0.0
    %1101 = vmatpush1.msra.mxu0 0.0
    %1102 = vmatprep.subr.mxu0 0.0
    %1103 = vmatpush1.msra.mxu0 0.0
    %1104 = vmatprep.subr.mxu0 0.0
    %1105 = vmatpush1.msra.mxu0 0.0
    %1106 = vmatprep.subr.mxu0 0.0
    %1107 = vmatpush1.msra.mxu0 0.0
    %1108 = vmatprep.subr.mxu0 0.0
    %1109 = vmatpush1.msra.mxu0 0.0
    %1110 = vmatprep.subr.mxu0 0.0
    %1111 = vmatpush1.msra.mxu0 0.0
    %1112 = vmatprep.subr.mxu0 0.0
    %1113 = vmatpush1.msra.mxu0 0.0
    %1114 = vmatprep.subr.mxu0 0.0
    %1115 = vmatpush1.msra.mxu0 0.0
    %1116 = vmatprep.subr.mxu0 0.0
    %1117 = vmatpush1.msra.mxu0 0.0
    %1118 = vmatprep.subr.mxu0 0.0
    %1119 = vmatpush1.msra.mxu0 0.0
    %1120 = vmatprep.subr.mxu0 0.0
    %1121 = vmatpush1.msra.mxu0 0.0
    %1122 = vmatprep.subr.mxu0 0.0
    %1123 = vmatpush1.msra.mxu0 0.0
    %1124 = vmatprep.subr.mxu0 0.0
    %1125 = vmatpush1.msra.mxu0 0.0
    %1126 = vmatprep.subr.mxu0 0.0
    %1127 = vmatpush1.msra.mxu0 0.0
    %1128 = vmatprep.subr.mxu0 0.0
    %1129 = vmatpush1.msra.mxu0 0.0
    %1130 = vmatprep.subr.mxu0 0.0
    %1131 = vmatpush1.msra.mxu0 0.0
    %1132 = vmatprep.subr.mxu0 0.0
    %1133 = vmatpush1.msra.mxu0 0.0
    %1134 = vmatprep.subr.mxu0 0.0
    %1135 = vmatpush1.msra.mxu0 0.0
    %1136 = vmatprep.subr.mxu0 0.0
    %1137 = vmatpush1.msra.mxu0 0.0
    %1138 = vmatprep.subr.mxu0 0.0
    %1139 = vmatpush1.msra.mxu0 0.0
    %1140 = vmatprep.subr.mxu0 0.0
    %1141 = vmatpush1.msra.mxu0 0.0
    %1142 = vmatprep.subr.mxu0 0.0
    %1143 = vmatpush1.msra.mxu0 0.0
    %1144 = vmatprep.subr.mxu0 0.0
    %1145 = vmatpush1.msra.mxu0 0.0
    %1146 = vmatprep.subr.mxu0 0.0
    %1147 = vmatpush1.msra.mxu0 0.0
    %1148 = vmatprep.subr.mxu0 0.0
    %1149 = vmatpush1.msra.mxu0 0.0
    %1150 = vmatprep.mubr.f32.mxu0 0.0
    %1151 = vmatmul.mubr.f32.gmra.mrb[0].mxu0 %v1084
    %v1152 = vpop.f32.mrb[0].mxu0
    %v1153 = vadd.f32 0.0, %v1152
    %v1154 = vpop.f32.mrb[0].mxu0
    %1155 = vdwg.mxu0
    %v1157 = vsel %vm1060, %v1082, 0
    %1159 = vmatprep.subr.mxu0 0.0
    %1160 = vmatpush1.msra.mxu0 %v732
    %1161 = vmatprep.subr.mxu0 0.0
    %1162 = vmatpush1.msra.mxu0 0.0
    %1163 = vmatprep.subr.mxu0 0.0
    %1164 = vmatpush1.msra.mxu0 0.0
    %1165 = vmatprep.subr.mxu0 0.0
    %1166 = vmatpush1.msra.mxu0 0.0
    %1167 = vmatprep.subr.mxu0 0.0
    %1168 = vmatpush1.msra.mxu0 0.0
    %1169 = vmatprep.subr.mxu0 0.0
    %1170 = vmatpush1.msra.mxu0 0.0
    %1171 = vmatprep.subr.mxu0 0.0
    %1172 = vmatpush1.msra.mxu0 0.0
    %1173 = vmatprep.subr.mxu0 0.0
    %1174 = vmatpush1.msra.mxu0 0.0
    %1175 = vmatprep.subr.mxu0 0.0
    %1176 = vmatpush1.msra.mxu0 0.0
    %1177 = vmatprep.subr.mxu0 0.0
    %1178 = vmatpush1.msra.mxu0 0.0
    %1179 = vmatprep.subr.mxu0 0.0
    %1180 = vmatpush1.msra.mxu0 0.0
    %1181 = vmatprep.subr.mxu0 0.0
    %1182 = vmatpush1.msra.mxu0 0.0
    %1183 = vmatprep.subr.mxu0 0.0
    %1184 = vmatpush1.msra.mxu0 0.0
    %1185 = vmatprep.subr.mxu0 0.0
    %1186 = vmatpush1.msra.mxu0 0.0
    %1187 = vmatprep.subr.mxu0 0.0
    %1188 = vmatpush1.msra.mxu0 0.0
    %1189 = vmatprep.subr.mxu0 0.0
    %1190 = vmatpush1.msra.mxu0 0.0
    %1191 = vmatprep.subr.mxu0 0.0
    %1192 = vmatpush1.msra.mxu0 0.0
    %1193 = vmatprep.subr.mxu0 0.0
    %1194 = vmatpush1.msra.mxu0 0.0
    %1195 = vmatprep.subr.mxu0 0.0
    %1196 = vmatpush1.msra.mxu0 0.0
    %1197 = vmatprep.subr.mxu0 0.0
    %1198 = vmatpush1.msra.mxu0 0.0
    %1199 = vmatprep.subr.mxu0 0.0
    %1200 = vmatpush1.msra.mxu0 0.0
    %1201 = vmatprep.subr.mxu0 0.0
    %1202 = vmatpush1.msra.mxu0 0.0
    %1203 = vmatprep.subr.mxu0 0.0
    %1204 = vmatpush1.msra.mxu0 0.0
    %1205 = vmatprep.subr.mxu0 0.0
    %1206 = vmatpush1.msra.mxu0 0.0
    %1207 = vmatprep.subr.mxu0 0.0
    %1208 = vmatpush1.msra.mxu0 0.0
    %1209 = vmatprep.subr.mxu0 0.0
    %1210 = vmatpush1.msra.mxu0 0.0
    %1211 = vmatprep.subr.mxu0 0.0
    %1212 = vmatpush1.msra.mxu0 0.0
    %1213 = vmatprep.subr.mxu0 0.0
    %1214 = vmatpush1.msra.mxu0 0.0
    %1215 = vmatprep.subr.mxu0 0.0
    %1216 = vmatpush1.msra.mxu0 0.0
    %1217 = vmatprep.subr.mxu0 0.0
    %1218 = vmatpush1.msra.mxu0 0.0
    %1219 = vmatprep.subr.mxu0 0.0
    %1220 = vmatpush1.msra.mxu0 0.0
    %1221 = vmatprep.subr.mxu0 0.0
    %1222 = vmatpush1.msra.mxu0 0.0
    %1223 = vmatprep.mubr.f32.mxu0 0.0
    %1224 = vmatmul.mubr.f32.gmra.mrb[0].mxu0 %v1157
    %v1225 = vpop.f32.mrb[0].mxu0
    %v1226 = vadd.f32 0.0, %v1225
    %v1227 = vpop.f32.mrb[0].mxu0
    %1228 = vdwg.mxu0
    %1229 = vmatprep.subr.mxu0 0.0
    %1230 = vmatpush1.xpose.msra.mxu0 %v911
    %1231 = vmatprep.subr.mxu0 0.0
    %1232 = vmatpush1.xpose.msra.mxu0 0.0
    %1233 = vmatprep.subr.mxu0 0.0
    %1234 = vmatpush1.xpose.msra.mxu0 0.0
    %1235 = vmatprep.subr.mxu0 0.0
    %1236 = vmatpush1.xpose.msra.mxu0 0.0
    %1237 = vmatprep.subr.mxu0 0.0
    %1238 = vmatpush1.xpose.msra.mxu0 0.0
    %1239 = vmatprep.subr.mxu0 0.0
    %1240 = vmatpush1.xpose.msra.mxu0 0.0
    %1241 = vmatprep.subr.mxu0 0.0
    %1242 = vmatpush1.xpose.msra.mxu0 0.0
    %1243 = vmatprep.subr.mxu0 0.0
    %1244 = vmatpush1.xpose.msra.mxu0 0.0
    %1245 = vmatprep.subr.mxu0 0.0
    %1246 = vmatpush1.xpose.msra.mxu0 0.0
    %1247 = vmatprep.subr.mxu0 0.0
    %1248 = vmatpush1.xpose.msra.mxu0 0.0
    %1249 = vmatprep.subr.mxu0 0.0
    %1250 = vmatpush1.xpose.msra.mxu0 0.0
    %1251 = vmatprep.subr.mxu0 0.0
    %1252 = vmatpush1.xpose.msra.mxu0 0.0
    %1253 = vmatprep.subr.mxu0 0.0
    %1254 = vmatpush1.xpose.msra.mxu0 0.0
    %1255 = vmatprep.subr.mxu0 0.0
    %1256 = vmatpush1.xpose.msra.mxu0 0.0
    %1257 = vmatprep.subr.mxu0 0.0
    %1258 = vmatpush1.xpose.msra.mxu0 0.0
    %1259 = vmatprep.subr.mxu0 0.0
    %1260 = vmatpush1.xpose.msra.mxu0 0.0
    %1261 = vmatprep.subr.mxu0 0.0
    %1262 = vmatpush1.xpose.msra.mxu0 0.0
    %1263 = vmatprep.subr.mxu0 0.0
    %1264 = vmatpush1.xpose.msra.mxu0 0.0
    %1265 = vmatprep.subr.mxu0 0.0
    %1266 = vmatpush1.xpose.msra.mxu0 0.0
    %1267 = vmatprep.subr.mxu0 0.0
    %1268 = vmatpush1.xpose.msra.mxu0 0.0
    %1269 = vmatprep.subr.mxu0 0.0
    %1270 = vmatpush1.xpose.msra.mxu0 0.0
    %1271 = vmatprep.subr.mxu0 0.0
    %1272 = vmatpush1.xpose.msra.mxu0 0.0
    %1273 = vmatprep.subr.mxu0 0.0
    %1274 = vmatpush1.xpose.msra.mxu0 0.0
    %1275 = vmatprep.subr.mxu0 0.0
    %1276 = vmatpush1.xpose.msra.mxu0 0.0
    %1277 = vmatprep.subr.mxu0 0.0
    %1278 = vmatpush1.xpose.msra.mxu0 0.0
    %1279 = vmatprep.subr.mxu0 0.0
    %1280 = vmatpush1.xpose.msra.mxu0 0.0
    %1281 = vmatprep.subr.mxu0 0.0
    %1282 = vmatpush1.xpose.msra.mxu0 0.0
    %1283 = vmatprep.subr.mxu0 0.0
    %1284 = vmatpush1.xpose.msra.mxu0 0.0
    %1285 = vmatprep.subr.mxu0 0.0
    %1286 = vmatpush1.xpose.msra.mxu0 0.0
    %1287 = vmatprep.subr.mxu0 0.0
    %1288 = vmatpush1.xpose.msra.mxu0 0.0
    %1289 = vmatprep.subr.mxu0 0.0
    %1290 = vmatpush1.xpose.msra.mxu0 0.0
    %1291 = vmatprep.subr.mxu0 0.0
    %1292 = vmatpush1.xpose.msra.mxu0 0.0
    %1293 = vmatprep.mubr.f32.mxu0 0.0
    %1294 = vmatmul.mubr.f32.gmra.mrb[0].mxu0 %v899
    %v1295 = vpop.f32.mrb[0].mxu0
    %v1296 = vadd.f32 0.0, %v1295
    %v1297 = vpop.f32.mrb[0].mxu0
    %1298 = vdwg.mxu0
    %1299 = vmatprep.subr.mxu0 0.0
    %1300 = vmatpush1.xpose.msra.mxu0 %v913
    %1301 = vmatprep.subr.mxu0 0.0
    %1302 = vmatpush1.xpose.msra.mxu0 0.0
    %1303 = vmatprep.subr.mxu0 0.0
    %1304 = vmatpush1.xpose.msra.mxu0 0.0
    %1305 = vmatprep.subr.mxu0 0.0
    %1306 = vmatpush1.xpose.msra.mxu0 0.0
    %1307 = vmatprep.subr.mxu0 0.0
    %1308 = vmatpush1.xpose.msra.mxu0 0.0
    %1309 = vmatprep.subr.mxu0 0.0
    %1310 = vmatpush1.xpose.msra.mxu0 0.0
    %1311 = vmatprep.subr.mxu0 0.0
    %1312 = vmatpush1.xpose.msra.mxu0 0.0
    %1313 = vmatprep.subr.mxu0 0.0
    %1314 = vmatpush1.xpose.msra.mxu0 0.0
    %1315 = vmatprep.subr.mxu0 0.0
    %1316 = vmatpush1.xpose.msra.mxu0 0.0
    %1317 = vmatprep.subr.mxu0 0.0
    %1318 = vmatpush1.xpose.msra.mxu0 0.0
    %1319 = vmatprep.subr.mxu0 0.0
    %1320 = vmatpush1.xpose.msra.mxu0 0.0
    %1321 = vmatprep.subr.mxu0 0.0
    %1322 = vmatpush1.xpose.msra.mxu0 0.0
    %1323 = vmatprep.subr.mxu0 0.0
    %1324 = vmatpush1.xpose.msra.mxu0 0.0
    %1325 = vmatprep.subr.mxu0 0.0
    %1326 = vmatpush1.xpose.msra.mxu0 0.0
    %1327 = vmatprep.subr.mxu0 0.0
    %1328 = vmatpush1.xpose.msra.mxu0 0.0
    %1329 = vmatprep.subr.mxu0 0.0
    %1330 = vmatpush1.xpose.msra.mxu0 0.0
    %1331 = vmatprep.subr.mxu0 0.0
    %1332 = vmatpush1.xpose.msra.mxu0 0.0
    %1333 = vmatprep.subr.mxu0 0.0
    %1334 = vmatpush1.xpose.msra.mxu0 0.0
    %1335 = vmatprep.subr.mxu0 0.0
    %1336 = vmatpush1.xpose.msra.mxu0 0.0
    %1337 = vmatprep.subr.mxu0 0.0
    %1338 = vmatpush1.xpose.msra.mxu0 0.0
    %1339 = vmatprep.subr.mxu0 0.0
    %1340 = vmatpush1.xpose.msra.mxu0 0.0
    %1341 = vmatprep.subr.mxu0 0.0
    %1342 = vmatpush1.xpose.msra.mxu0 0.0
    %1343 = vmatprep.subr.mxu0 0.0
    %1344 = vmatpush1.xpose.msra.mxu0 0.0
    %1345 = vmatprep.subr.mxu0 0.0
    %1346 = vmatpush1.xpose.msra.mxu0 0.0
    %1347 = vmatprep.subr.mxu0 0.0
    %1348 = vmatpush1.xpose.msra.mxu0 0.0
    %1349 = vmatprep.subr.mxu0 0.0
    %1350 = vmatpush1.xpose.msra.mxu0 0.0
    %1351 = vmatprep.subr.mxu0 0.0
    %1352 = vmatpush1.xpose.msra.mxu0 0.0
    %1353 = vmatprep.subr.mxu0 0.0
    %1354 = vmatpush1.xpose.msra.mxu0 0.0
    %1355 = vmatprep.subr.mxu0 0.0
    %1356 = vmatpush1.xpose.msra.mxu0 0.0
    %1357 = vmatprep.subr.mxu0 0.0
    %1358 = vmatpush1.xpose.msra.mxu0 0.0
    %1359 = vmatprep.subr.mxu0 0.0
    %1360 = vmatpush1.xpose.msra.mxu0 0.0
    %1361 = vmatprep.subr.mxu0 0.0
    %1362 = vmatpush1.xpose.msra.mxu0 0.0
    %1363 = vmatprep.mubr.f32.mxu0 0.0
    %1364 = vmatmul.mubr.f32.gmra.mrb[0].mxu0 %v901
    %v1365 = vpop.f32.mrb[0].mxu0
    %v1366 = vadd.f32 0.0, %v1365
    %v1367 = vpop.f32.mrb[0].mxu0
    %1368 = vdwg.mxu0
    %v1369 = vmul.f32 %v1296, 0.14433756
    %v1370 = vmul.f32 %v1366, 0.14433756
    %v1371 = vsel %vm1057, %v1369, -inf
    %v1372 = vsel %vm1057, %v1370, -inf
    %v1373 = vsel %vm1060, %v1371, -inf
    %1374 = vmax.xlane.f32.xlu0 %v1373
    %v1375 = vpop.xlane.xlu0 %1374
    %v1376 = vsel %vm1060, %v1372, -inf
    %1377 = vmax.xlane.f32.xlu0 %v1376
    %v1378 = vpop.xlane.xlu0 %1377
    %v1379 = vsub.f32 %v1371, %v1375
    %v1380 = vsub.f32 %v1372, %v1378
    %v1381 = vmul.f32 %v1379, 1.442695
    %v1382 = vpow.pop %v1381
    %v1383 = vmul.f32 %v1380, 1.442695
    %v1384 = vpow.pop %v1383
    %v1385 = vsel %vm1060, %v1382, 0.0
    %1386 = vadd.xlane.f32.xlu0 %v1385
    %v1387 = vpop.xlane.xlu0 %1386
    %v1388 = vsel %vm1060, %v1384, 0.0
    %1389 = vadd.xlane.f32.xlu0 %v1388
    %v1390 = vpop.xlane.xlu0 %1389
    %v1391 = vrcp.pop %v1387
    %v1392 = vrcp.pop %v1390
    %v1393 = vmul.f32 %v1382, %v1391
    %v1394 = vmul.f32 %v1384, %v1392
    %v1396 = vsel %vm1060, %v1393, 0
    %1398 = vmatprep.subr.mxu0 0.0
    %1399 = vmatpush1.msra.mxu0 %v728
    %1400 = vmatprep.subr.mxu0 0.0
    %1401 = vmatpush1.msra.mxu0 0.0
    %1402 = vmatprep.subr.mxu0 0.0
    %1403 = vmatpush1.msra.mxu0 0.0
    %1404 = vmatprep.subr.mxu0 0.0
    %1405 = vmatpush1.msra.mxu0 0.0
    %1406 = vmatprep.subr.mxu0 0.0
    %1407 = vmatpush1.msra.mxu0 0.0
    %1408 = vmatprep.subr.mxu0 0.0
    %1409 = vmatpush1.msra.mxu0 0.0
    %1410 = vmatprep.subr.mxu0 0.0
    %1411 = vmatpush1.msra.mxu0 0.0
    %1412 = vmatprep.subr.mxu0 0.0
    %1413 = vmatpush1.msra.mxu0 0.0
    %1414 = vmatprep.subr.mxu0 0.0
    %1415 = vmatpush1.msra.mxu0 0.0
    %1416 = vmatprep.subr.mxu0 0.0
    %1417 = vmatpush1.msra.mxu0 0.0
    %1418 = vmatprep.subr.mxu0 0.0
    %1419 = vmatpush1.msra.mxu0 0.0
    %1420 = vmatprep.subr.mxu0 0.0
    %1421 = vmatpush1.msra.mxu0 0.0
    %1422 = vmatprep.subr.mxu0 0.0
    %1423 = vmatpush1.msra.mxu0 0.0
    %1424 = vmatprep.subr.mxu0 0.0
    %1425 = vmatpush1.msra.mxu0 0.0
    %1426 = vmatprep.subr.mxu0 0.0
    %1427 = vmatpush1.msra.mxu0 0.0
    %1428 = vmatprep.subr.mxu0 0.0
    %1429 = vmatpush1.msra.mxu0 0.0
    %1430 = vmatprep.subr.mxu0 0.0
    %1431 = vmatpush1.msra.mxu0 0.0
    %1432 = vmatprep.subr.mxu0 0.0
    %1433 = vmatpush1.msra.mxu0 0.0
    %1434 = vmatprep.subr.mxu0 0.0
    %1435 = vmatpush1.msra.mxu0 0.0
    %1436 = vmatprep.subr.mxu0 0.0
    %1437 = vmatpush1.msra.mxu0 0.0
    %1438 = vmatprep.subr.mxu0 0.0
    %1439 = vmatpush1.msra.mxu0 0.0
    %1440 = vmatprep.subr.mxu0 0.0
    %1441 = vmatpush1.msra.mxu0 0.0
    %1442 = vmatprep.subr.mxu0 0.0
    %1443 = vmatpush1.msra.mxu0 0.0
    %1444 = vmatprep.subr.mxu0 0.0
    %1445 = vmatpush1.msra.mxu0 0.0
    %1446 = vmatprep.subr.mxu0 0.0
    %1447 = vmatpush1.msra.mxu0 0.0
    %1448 = vmatprep.subr.mxu0 0.0
    %1449 = vmatpush1.msra.mxu0 0.0
    %1450 = vmatprep.subr.mxu0 0.0
    %1451 = vmatpush1.msra.mxu0 0.0
    %1452 = vmatprep.subr.mxu0 0.0
    %1453 = vmatpush1.msra.mxu0 0.0
    %1454 = vmatprep.subr.mxu0 0.0
    %1455 = vmatpush1.msra.mxu0 0.0
    %1456 = vmatprep.subr.mxu0 0.0
    %1457 = vmatpush1.msra.mxu0 0.0
    %1458 = vmatprep.subr.mxu0 0.0
    %1459 = vmatpush1.msra.mxu0 0.0
    %1460 = vmatprep.subr.mxu0 0.0
    %1461 = vmatpush1.msra.mxu0 0.0
    %1462 = vmatprep.mubr.f32.mxu0 0.0
    %1463 = vmatmul.mubr.f32.gmra.mrb[0].mxu0 %v1396
    %v1464 = vpop.f32.mrb[0].mxu0
    %v1465 = vadd.f32 0.0, %v1464
    %v1466 = vpop.f32.mrb[0].mxu0
    %1467 = vdwg.mxu0
    %v1469 = vsel %vm1060, %v1394, 0
    %1471 = vmatprep.subr.mxu0 0.0
    %1472 = vmatpush1.msra.mxu0 %v734
    %1473 = vmatprep.subr.mxu0 0.0
    %1474 = vmatpush1.msra.mxu0 0.0
    %1475 = vmatprep.subr.mxu0 0.0
    %1476 = vmatpush1.msra.mxu0 0.0
    %1477 = vmatprep.subr.mxu0 0.0
    %1478 = vmatpush1.msra.mxu0 0.0
    %1479 = vmatprep.subr.mxu0 0.0
    %1480 = vmatpush1.msra.mxu0 0.0
    %1481 = vmatprep.subr.mxu0 0.0
    %1482 = vmatpush1.msra.mxu0 0.0
    %1483 = vmatprep.subr.mxu0 0.0
    %1484 = vmatpush1.msra.mxu0 0.0
    %1485 = vmatprep.subr.mxu0 0.0
    %1486 = vmatpush1.msra.mxu0 0.0
    %1487 = vmatprep.subr.mxu0 0.0
    %1488 = vmatpush1.msra.mxu0 0.0
    %1489 = vmatprep.subr.mxu0 0.0
    %1490 = vmatpush1.msra.mxu0 0.0
    %1491 = vmatprep.subr.mxu0 0.0
    %1492 = vmatpush1.msra.mxu0 0.0
    %1493 = vmatprep.subr.mxu0 0.0
    %1494 = vmatpush1.msra.mxu0 0.0
    %1495 = vmatprep.subr.mxu0 0.0
    %1496 = vmatpush1.msra.mxu0 0.0
    %1497 = vmatprep.subr.mxu0 0.0
    %1498 = vmatpush1.msra.mxu0 0.0
    %1499 = vmatprep.subr.mxu0 0.0
    %1500 = vmatpush1.msra.mxu0 0.0
    %1501 = vmatprep.subr.mxu0 0.0
    %1502 = vmatpush1.msra.mxu0 0.0
    %1503 = vmatprep.subr.mxu0 0.0
    %1504 = vmatpush1.msra.mxu0 0.0
    %1505 = vmatprep.subr.mxu0 0.0
    %1506 = vmatpush1.msra.mxu0 0.0
    %1507 = vmatprep.subr.mxu0 0.0
    %1508 = vmatpush1.msra.mxu0 0.0
    %1509 = vmatprep.subr.mxu0 0.0
    %1510 = vmatpush1.msra.mxu0 0.0
    %1511 = vmatprep.subr.mxu0 0.0
    %1512 = vmatpush1.msra.mxu0 0.0
    %1513 = vmatprep.subr.mxu0 0.0
    %1514 = vmatpush1.msra.mxu0 0.0
    %1515 = vmatprep.subr.mxu0 0.0
    %1516 = vmatpush1.msra.mxu0 0.0
    %1517 = vmatprep.subr.mxu0 0.0
    %1518 = vmatpush1.msra.mxu0 0.0
    %1519 = vmatprep.subr.mxu0 0.0
    %1520 = vmatpush1.msra.mxu0 0.0
    %1521 = vmatprep.subr.mxu0 0.0
    %1522 = vmatpush1.msra.mxu0 0.0
    %1523 = vmatprep.subr.mxu0 0.0
    %1524 = vmatpush1.msra.mxu0 0.0
    %1525 = vmatprep.subr.mxu0 0.0
    %1526 = vmatpush1.msra.mxu0 0.0
    %1527 = vmatprep.subr.mxu0 0.0
    %1528 = vmatpush1.msra.mxu0 0.0
    %1529 = vmatprep.subr.mxu0 0.0
    %1530 = vmatpush1.msra.mxu0 0.0
    %1531 = vmatprep.subr.mxu0 0.0
    %1532 = vmatpush1.msra.mxu0 0.0
    %1533 = vmatprep.subr.mxu0 0.0
    %1534 = vmatpush1.msra.mxu0 0.0
    %1535 = vmatprep.mubr.f32.mxu0 0.0
    %1536 = vmatmul.mubr.f32.gmra.mrb[0].mxu0 %v1469
    %v1537 = vpop.f32.mrb[0].mxu0
    %v1538 = vadd.f32 0.0, %v1537
    %v1539 = vpop.f32.mrb[0].mxu0
    %1540 = vdwg.mxu0
    %v1541 = vld [vmem:[#allocation10] sm:$0xff]
    %v1542 = vld [vmem:[#allocation10 + $0x8] sm:$0xff]
    %v1543 = vld [vmem:[#allocation10 + $0x10] sm:$0xff]
    %v1544 = vld [vmem:[#allocation10 + $0x18] sm:$0xff]
    %v1545 = vld [vmem:[#allocation10 + $0x20] sm:$0xff]
    %v1546 = vld [vmem:[#allocation10 + $0x28] sm:$0xff]
    %v1547 = vld [vmem:[#allocation10 + $0x30] sm:$0xff]
    %v1548 = vld [vmem:[#allocation10 + $0x38] sm:$0xff]
    %v1549 = vld [vmem:[#allocation10 + $0x40] sm:$0xff]
    %v1550 = vld [vmem:[#allocation10 + $0x48] sm:$0xff]
    %v1551 = vld [vmem:[#allocation10 + $0x50] sm:$0xff]
    %v1552 = vld [vmem:[#allocation10 + $0x58] sm:$0xff]
    %v1553 = vld [vmem:[#allocation10 + $0x60] sm:$0xff]
    %v1554 = vld [vmem:[#allocation10 + $0x68] sm:$0xff]
    %v1555 = vld [vmem:[#allocation10 + $0x70] sm:$0xff]
    %v1556 = vld [vmem:[#allocation10 + $0x78] sm:$0xff]
    %v1557 = vld [vmem:[#allocation10 + $0x80] sm:$0xff]
    %v1558 = vld [vmem:[#allocation10 + $0x88] sm:$0xff]
    %v1559 = vld [vmem:[#allocation10 + $0x90] sm:$0xff]
    %v1560 = vld [vmem:[#allocation10 + $0x98] sm:$0xff]
    %v1561 = vld [vmem:[#allocation10 + $0xa0] sm:$0xff]
    %v1562 = vld [vmem:[#allocation10 + $0xa8] sm:$0xff]
    %v1563 = vld [vmem:[#allocation10 + $0xb0] sm:$0xff]
    %v1564 = vld [vmem:[#allocation10 + $0xb8] sm:$0xff]
    %v1565 = vld [vmem:[#allocation10 + $0xc0] sm:$0xff]
    %v1566 = vld [vmem:[#allocation10 + $0xc8] sm:$0xff]
    %v1567 = vld [vmem:[#allocation10 + $0xd0] sm:$0xff]
    %v1568 = vld [vmem:[#allocation10 + $0xd8] sm:$0xff]
    %v1569 = vld [vmem:[#allocation10 + $0xe0] sm:$0xff]
    %v1570 = vld [vmem:[#allocation10 + $0xe8] sm:$0xff]
    %v1571 = vld [vmem:[#allocation10 + $0xf0] sm:$0xff]
    %v1572 = vld [vmem:[#allocation10 + $0xf8] sm:$0xff]
    %1573 = vmatprep.subr.mxu0 0.0
    %1574 = vmatpush1.msra.mxu0 %v1541
    %1575 = vmatprep.subr.mxu0 0.0
    %1576 = vmatpush1.msra.mxu0 %v1542
    %1577 = vmatprep.subr.mxu0 0.0
    %1578 = vmatpush1.msra.mxu0 %v1543
    %1579 = vmatprep.subr.mxu0 0.0
    %1580 = vmatpush1.msra.mxu0 %v1544
    %1581 = vmatprep.subr.mxu0 0.0
    %1582 = vmatpush1.msra.mxu0 %v1545
    %1583 = vmatprep.subr.mxu0 0.0
    %1584 = vmatpush1.msra.mxu0 %v1546
    %1585 = vmatprep.subr.mxu0 0.0
    %1586 = vmatpush1.msra.mxu0 %v1547
    %1587 = vmatprep.subr.mxu0 0.0
    %1588 = vmatpush1.msra.mxu0 %v1548
    %1589 = vmatprep.subr.mxu0 0.0
    %1590 = vmatpush1.msra.mxu0 %v1549
    %1591 = vmatprep.subr.mxu0 0.0
    %1592 = vmatpush1.msra.mxu0 %v1550
    %1593 = vmatprep.subr.mxu0 0.0
    %1594 = vmatpush1.msra.mxu0 %v1551
    %1595 = vmatprep.subr.mxu0 0.0
    %1596 = vmatpush1.msra.mxu0 %v1552
    %1597 = vmatprep.subr.mxu0 0.0
    %1598 = vmatpush1.msra.mxu0 %v1553
    %1599 = vmatprep.subr.mxu0 0.0
    %1600 = vmatpush1.msra.mxu0 %v1554
    %1601 = vmatprep.subr.mxu0 0.0
    %1602 = vmatpush1.msra.mxu0 %v1555
    %1603 = vmatprep.subr.mxu0 0.0
    %1604 = vmatpush1.msra.mxu0 %v1556
    %1605 = vmatprep.subr.mxu0 0.0
    %1606 = vmatpush1.msra.mxu0 %v1557
    %1607 = vmatprep.subr.mxu0 0.0
    %1608 = vmatpush1.msra.mxu0 %v1558
    %1609 = vmatprep.subr.mxu0 0.0
    %1610 = vmatpush1.msra.mxu0 %v1559
    %1611 = vmatprep.subr.mxu0 0.0
    %1612 = vmatpush1.msra.mxu0 %v1560
    %1613 = vmatprep.subr.mxu0 0.0
    %1614 = vmatpush1.msra.mxu0 %v1561
    %1615 = vmatprep.subr.mxu0 0.0
    %1616 = vmatpush1.msra.mxu0 %v1562
    %1617 = vmatprep.subr.mxu0 0.0
    %1618 = vmatpush1.msra.mxu0 %v1563
    %1619 = vmatprep.subr.mxu0 0.0
    %1620 = vmatpush1.msra.mxu0 %v1564
    %1621 = vmatprep.subr.mxu0 0.0
    %1622 = vmatpush1.msra.mxu0 %v1565
    %1623 = vmatprep.subr.mxu0 0.0
    %1624 = vmatpush1.msra.mxu0 %v1566
    %1625 = vmatprep.subr.mxu0 0.0
    %1626 = vmatpush1.msra.mxu0 %v1567
    %1627 = vmatprep.subr.mxu0 0.0
    %1628 = vmatpush1.msra.mxu0 %v1568
    %1629 = vmatprep.subr.mxu0 0.0
    %1630 = vmatpush1.msra.mxu0 %v1569
    %1631 = vmatprep.subr.mxu0 0.0
    %1632 = vmatpush1.msra.mxu0 %v1570
    %1633 = vmatprep.subr.mxu0 0.0
    %1634 = vmatpush1.msra.mxu0 %v1571
    %1635 = vmatprep.subr.mxu0 0.0
    %1636 = vmatpush1.msra.mxu0 %v1572
    %1637 = vmatprep.mubr.f32.mxu0 %v1465
    %1638 = vmatmul.mubr.f32.gmra.mrb[0].mxu0 %v1153
    %v1639 = vpop.f32.mrb[0].mxu0
    %v1640 = vadd.f32 0.0, %v1639
    %v1641 = vpop.f32.mrb[0].mxu0
    %1642 = vmatprep.mubr.f32.mxu0 %v1538
    %1643 = vmatmul.mubr.f32.gmra.mrb[0].mxu0 %v1226
    %v1644 = vpop.f32.mrb[0].mxu0
    %v1645 = vadd.f32 0.0, %v1644
    %v1646 = vpop.f32.mrb[0].mxu0
    %1647 = vdwg.mxu0
    %v1648 = vadd.f32 %v343, %v1640
    %v1649 = vadd.f32 %v344, %v1645
    %v1650 = vmul.f32 %v1648, %v1648
    %v1651 = vmul.f32 %v1649, %v1649
    %v1652 = vrot.slane %v1650, 4
    %v1653 = vadd.f32 %v1650, %v1652
    %v1654 = vrot.slane %v1653, 2
    %v1655 = vadd.f32 %v1653, %v1654
    %v1656 = vrot.slane %v1655, 1
    %v1657 = vadd.f32 %v1655, %v1656
    %v1658 = vrot.slane %v1651, 4
    %v1659 = vadd.f32 %v1651, %v1658
    %v1660 = vrot.slane %v1659, 2
    %v1661 = vadd.f32 %v1659, %v1660
    %v1662 = vrot.slane %v1661, 1
    %v1663 = vadd.f32 %v1661, %v1662
    %v1664 = vmul.f32 %v1657, %v313
    %v1665 = vmul.f32 %v1663, %v313
    %v1666 = vrsqrt.pop %v1664
    %v1667 = vmul.f32 %v1664, %v1666
    %vm1668 = vcmp.eq.f32.partialorder %v1664, inf
    %v1669 = vsel %vm1668, %v1664, %v1667
    %vm1670 = vcmp.eq.f32.partialorder %v1664, 0.0
    %v1671 = vand.u32 %v1664, 2147483648
    %v1672 = vsel %vm1670, %v1671, %v1669
    %v1673 = vrsqrt.pop %v1665
    %v1674 = vmul.f32 %v1665, %v1673
    %vm1675 = vcmp.eq.f32.partialorder %v1665, inf
    %v1676 = vsel %vm1675, %v1665, %v1674
    %vm1677 = vcmp.eq.f32.partialorder %v1665, 0.0
    %v1678 = vand.u32 %v1665, 2147483648
    %v1679 = vsel %vm1677, %v1678, %v1676
    %v1680 = vadd.f32 %v1672, 1e-05
    %v1681 = vadd.f32 %v1679, 1e-05
    %v1682 = vrcp.pop %v1680
    %v1683 = vrcp.pop %v1681
    %v1684 = vmul.f32 %v1648, %v1682
    %v1685 = vmul.f32 %v1649, %v1683
    %v1686 = vld [vmem:[#allocation7] sm:$0x1]
    %v1688 = vlaneseq
    %v1689 = vshrl.u32 %v1688, 7
    %v1690 = vsub.s32 0, %v1689
    %v1691 = vrot.slane %v1686, %v1690
    %v1693 = vmul.f32 %v1684, %v1691
    %v1694 = vmul.f32 %v1685, %v1691
    %v1695 = vld [vmem:[#allocation11] sm:$0xff]
    %v1696 = vld [vmem:[#allocation11 + $0x8] sm:$0xff]
    %v1697 = vld [vmem:[#allocation11 + $0x10] sm:$0xff]
    %v1698 = vld [vmem:[#allocation11 + $0x18] sm:$0xff]
    %v1699 = vld [vmem:[#allocation11 + $0x20] sm:$0xff]
    %v1700 = vld [vmem:[#allocation11 + $0x28] sm:$0xff]
    %v1701 = vld [vmem:[#allocation11 + $0x30] sm:$0xff]
    %v1702 = vld [vmem:[#allocation11 + $0x38] sm:$0xff]
    %v1703 = vld [vmem:[#allocation11 + $0x40] sm:$0xff]
    %v1704 = vld [vmem:[#allocation11 + $0x48] sm:$0xff]
    %v1705 = vld [vmem:[#allocation11 + $0x50] sm:$0xff]
    %v1706 = vld [vmem:[#allocation11 + $0x58] sm:$0xff]
    %v1707 = vld [vmem:[#allocation11 + $0x60] sm:$0xff]
    %v1708 = vld [vmem:[#allocation11 + $0x68] sm:$0xff]
    %v1709 = vld [vmem:[#allocation11 + $0x70] sm:$0xff]
    %v1710 = vld [vmem:[#allocation11 + $0x78] sm:$0xff]
    %v1711 = vld [vmem:[#allocation11 + $0x80] sm:$0xff]
    %v1712 = vld [vmem:[#allocation11 + $0x88] sm:$0xff]
    %v1713 = vld [vmem:[#allocation11 + $0x90] sm:$0xff]
    %v1714 = vld [vmem:[#allocation11 + $0x98] sm:$0xff]
    %v1715 = vld [vmem:[#allocation11 + $0xa0] sm:$0xff]
    %v1716 = vld [vmem:[#allocation11 + $0xa8] sm:$0xff]
    %v1717 = vld [vmem:[#allocation11 + $0xb0] sm:$0xff]
    %v1718 = vld [vmem:[#allocation11 + $0xb8] sm:$0xff]
    %v1719 = vld [vmem:[#allocation11 + $0xc0] sm:$0xff]
    %v1720 = vld [vmem:[#allocation11 + $0xc8] sm:$0xff]
    %v1721 = vld [vmem:[#allocation11 + $0xd0] sm:$0xff]
    %v1722 = vld [vmem:[#allocation11 + $0xd8] sm:$0xff]
    %v1723 = vld [vmem:[#allocation11 + $0xe0] sm:$0xff]
    %v1724 = vld [vmem:[#allocation11 + $0xe8] sm:$0xff]
    %v1725 = vld [vmem:[#allocation11 + $0xf0] sm:$0xff]
    %v1726 = vld [vmem:[#allocation11 + $0xf8] sm:$0xff]
    %v1727 = vld [vmem:[#allocation11 + $0x100] sm:$0xff]
    %v1728 = vld [vmem:[#allocation11 + $0x108] sm:$0xff]
    %v1729 = vld [vmem:[#allocation11 + $0x110] sm:$0xff]
    %v1730 = vld [vmem:[#allocation11 + $0x118] sm:$0xff]
    %v1731 = vld [vmem:[#allocation11 + $0x120] sm:$0xff]
    %v1732 = vld [vmem:[#allocation11 + $0x128] sm:$0xff]
    %v1733 = vld [vmem:[#allocation11 + $0x130] sm:$0xff]
    %v1734 = vld [vmem:[#allocation11 + $0x138] sm:$0xff]
    %v1735 = vld [vmem:[#allocation11 + $0x140] sm:$0xff]
    %v1736 = vld [vmem:[#allocation11 + $0x148] sm:$0xff]
    %v1737 = vld [vmem:[#allocation11 + $0x150] sm:$0xff]
    %v1738 = vld [vmem:[#allocation11 + $0x158] sm:$0xff]
    %v1739 = vld [vmem:[#allocation11 + $0x160] sm:$0xff]
    %v1740 = vld [vmem:[#allocation11 + $0x168] sm:$0xff]
    %v1741 = vld [vmem:[#allocation11 + $0x170] sm:$0xff]
    %v1742 = vld [vmem:[#allocation11 + $0x178] sm:$0xff]
    %v1743 = vld [vmem:[#allocation11 + $0x180] sm:$0xff]
    %v1744 = vld [vmem:[#allocation11 + $0x188] sm:$0xff]
    %v1745 = vld [vmem:[#allocation11 + $0x190] sm:$0xff]
    %v1746 = vld [vmem:[#allocation11 + $0x198] sm:$0xff]
    %v1747 = vld [vmem:[#allocation11 + $0x1a0] sm:$0xff]
    %v1748 = vld [vmem:[#allocation11 + $0x1a8] sm:$0xff]
    %v1749 = vld [vmem:[#allocation11 + $0x1b0] sm:$0xff]
    %v1750 = vld [vmem:[#allocation11 + $0x1b8] sm:$0xff]
    %v1751 = vld [vmem:[#allocation11 + $0x1c0] sm:$0xff]
    %v1752 = vld [vmem:[#allocation11 + $0x1c8] sm:$0xff]
    %v1753 = vld [vmem:[#allocation11 + $0x1d0] sm:$0xff]
    %v1754 = vld [vmem:[#allocation11 + $0x1d8] sm:$0xff]
    %v1755 = vld [vmem:[#allocation11 + $0x1e0] sm:$0xff]
    %v1756 = vld [vmem:[#allocation11 + $0x1e8] sm:$0xff]
    %v1757 = vld [vmem:[#allocation11 + $0x1f0] sm:$0xff]
    %v1758 = vld [vmem:[#allocation11 + $0x1f8] sm:$0xff]
    %1759 = vmatprep.subr.mxu0 %v1696
    %1760 = vmatpush1.msra.mxu0 %v1695
    %1761 = vmatprep.subr.mxu0 %v1700
    %1762 = vmatpush1.msra.mxu0 %v1699
    %1763 = vmatprep.subr.mxu0 %v1704
    %1764 = vmatpush1.msra.mxu0 %v1703
    %1765 = vmatprep.subr.mxu0 %v1708
    %1766 = vmatpush1.msra.mxu0 %v1707
    %1767 = vmatprep.subr.mxu0 %v1712
    %1768 = vmatpush1.msra.mxu0 %v1711
    %1769 = vmatprep.subr.mxu0 %v1716
    %1770 = vmatpush1.msra.mxu0 %v1715
    %1771 = vmatprep.subr.mxu0 %v1720
    %1772 = vmatpush1.msra.mxu0 %v1719
    %1773 = vmatprep.subr.mxu0 %v1724
    %1774 = vmatpush1.msra.mxu0 %v1723
    %1775 = vmatprep.subr.mxu0 %v1728
    %1776 = vmatpush1.msra.mxu0 %v1727
    %1777 = vmatprep.subr.mxu0 %v1732
    %1778 = vmatpush1.msra.mxu0 %v1731
    %1779 = vmatprep.subr.mxu0 %v1736
    %1780 = vmatpush1.msra.mxu0 %v1735
    %1781 = vmatprep.subr.mxu0 %v1740
    %1782 = vmatpush1.msra.mxu0 %v1739
    %1783 = vmatprep.subr.mxu0 %v1744
    %1784 = vmatpush1.msra.mxu0 %v1743
    %1785 = vmatprep.subr.mxu0 %v1748
    %1786 = vmatpush1.msra.mxu0 %v1747
    %1787 = vmatprep.subr.mxu0 %v1752
    %1788 = vmatpush1.msra.mxu0 %v1751
    %1789 = vmatprep.subr.mxu0 %v1756
    %1790 = vmatpush1.msra.mxu0 %v1755
    %1791 = vmatprep.subr.mxu0 0.0
    %1792 = vmatpush1.msra.mxu0 0.0
    %1793 = vmatprep.subr.mxu0 0.0
    %1794 = vmatpush1.msra.mxu0 0.0
    %1795 = vmatprep.subr.mxu0 0.0
    %1796 = vmatpush1.msra.mxu0 0.0
    %1797 = vmatprep.subr.mxu0 0.0
    %1798 = vmatpush1.msra.mxu0 0.0
    %1799 = vmatprep.subr.mxu0 0.0
    %1800 = vmatpush1.msra.mxu0 0.0
    %1801 = vmatprep.subr.mxu0 0.0
    %1802 = vmatpush1.msra.mxu0 0.0
    %1803 = vmatprep.subr.mxu0 0.0
    %1804 = vmatpush1.msra.mxu0 0.0
    %1805 = vmatprep.subr.mxu0 0.0
    %1806 = vmatpush1.msra.mxu0 0.0
    %1807 = vmatprep.subr.mxu0 0.0
    %1808 = vmatpush1.msra.mxu0 0.0
    %1809 = vmatprep.subr.mxu0 0.0
    %1810 = vmatpush1.msra.mxu0 0.0
    %1811 = vmatprep.subr.mxu0 0.0
    %1812 = vmatpush1.msra.mxu0 0.0
    %1813 = vmatprep.subr.mxu0 0.0
    %1814 = vmatpush1.msra.mxu0 0.0
    %1815 = vmatprep.subr.mxu0 0.0
    %1816 = vmatpush1.msra.mxu0 0.0
    %1817 = vmatprep.subr.mxu0 0.0
    %1818 = vmatpush1.msra.mxu0 0.0
    %1819 = vmatprep.subr.mxu0 0.0
    %1820 = vmatpush1.msra.mxu0 0.0
    %1821 = vmatprep.subr.mxu0 0.0
    %1822 = vmatpush1.msra.mxu0 0.0
    %1823 = vmatprep.mubr.f32.mxu0 0.0
    %1824 = vmatmul.mubr.f32.gmra.mrb[0].mxu0 %v1693
    %v1825 = vpop.f32.mrb[0].mxu0
    %v1826 = vadd.f32 0.0, %v1825
    %v1827 = vpop.f32.mrb[0].mxu0
    %v1828 = vadd.f32 0.0, %v1827
    %1829 = vmatprep.mubr.f32.mxu0 0.0
    %1830 = vmatmul.mubr.f32.gmra.mrb[0].mxu0 %v1694
    %v1831 = vpop.f32.mrb[0].mxu0
    %v1832 = vadd.f32 0.0, %v1831
    %v1833 = vpop.f32.mrb[0].mxu0
    %v1834 = vadd.f32 0.0, %v1833
    %1835 = vdwg.mxu0
    %1836 = vmatprep.subr.mxu0 %v1698
    %1837 = vmatpush1.msra.mxu0 %v1697
    %1838 = vmatprep.subr.mxu0 %v1702
    %1839 = vmatpush1.msra.mxu0 %v1701
    %1840 = vmatprep.subr.mxu0 %v1706
    %1841 = vmatpush1.msra.mxu0 %v1705
    %1842 = vmatprep.subr.mxu0 %v1710
    %1843 = vmatpush1.msra.mxu0 %v1709
    %1844 = vmatprep.subr.mxu0 %v1714
    %1845 = vmatpush1.msra.mxu0 %v1713
    %1846 = vmatprep.subr.mxu0 %v1718
    %1847 = vmatpush1.msra.mxu0 %v1717
    %1848 = vmatprep.subr.mxu0 %v1722
    %1849 = vmatpush1.msra.mxu0 %v1721
    %1850 = vmatprep.subr.mxu0 %v1726
    %1851 = vmatpush1.msra.mxu0 %v1725
    %1852 = vmatprep.subr.mxu0 %v1730
    %1853 = vmatpush1.msra.mxu0 %v1729
    %1854 = vmatprep.subr.mxu0 %v1734
    %1855 = vmatpush1.msra.mxu0 %v1733
    %1856 = vmatprep.subr.mxu0 %v1738
    %1857 = vmatpush1.msra.mxu0 %v1737
    %1858 = vmatprep.subr.mxu0 %v1742
    %1859 = vmatpush1.msra.mxu0 %v1741
    %1860 = vmatprep.subr.mxu0 %v1746
    %1861 = vmatpush1.msra.mxu0 %v1745
    %1862 = vmatprep.subr.mxu0 %v1750
    %1863 = vmatpush1.msra.mxu0 %v1749
    %1864 = vmatprep.subr.mxu0 %v1754
    %1865 = vmatpush1.msra.mxu0 %v1753
    %1866 = vmatprep.subr.mxu0 %v1758
    %1867 = vmatpush1.msra.mxu0 %v1757
    %1868 = vmatprep.subr.mxu0 0.0
    %1869 = vmatpush1.msra.mxu0 0.0
    %1870 = vmatprep.subr.mxu0 0.0
    %1871 = vmatpush1.msra.mxu0 0.0
    %1872 = vmatprep.subr.mxu0 0.0
    %1873 = vmatpush1.msra.mxu0 0.0
    %1874 = vmatprep.subr.mxu0 0.0
    %1875 = vmatpush1.msra.mxu0 0.0
    %1876 = vmatprep.subr.mxu0 0.0
    %1877 = vmatpush1.msra.mxu0 0.0
    %1878 = vmatprep.subr.mxu0 0.0
    %1879 = vmatpush1.msra.mxu0 0.0
    %1880 = vmatprep.subr.mxu0 0.0
    %1881 = vmatpush1.msra.mxu0 0.0
    %1882 = vmatprep.subr.mxu0 0.0
    %1883 = vmatpush1.msra.mxu0 0.0
    %1884 = vmatprep.subr.mxu0 0.0
    %1885 = vmatpush1.msra.mxu0 0.0
    %1886 = vmatprep.subr.mxu0 0.0
    %1887 = vmatpush1.msra.mxu0 0.0
    %1888 = vmatprep.subr.mxu0 0.0
    %1889 = vmatpush1.msra.mxu0 0.0
    %1890 = vmatprep.subr.mxu0 0.0
    %1891 = vmatpush1.msra.mxu0 0.0
    %1892 = vmatprep.subr.mxu0 0.0
    %1893 = vmatpush1.msra.mxu0 0.0
    %1894 = vmatprep.subr.mxu0 0.0
    %1895 = vmatpush1.msra.mxu0 0.0
    %1896 = vmatprep.subr.mxu0 0.0
    %1897 = vmatpush1.msra.mxu0 0.0
    %1898 = vmatprep.subr.mxu0 0.0
    %1899 = vmatpush1.msra.mxu0 0.0
    %1900 = vmatprep.mubr.f32.mxu0 0.0
    %1901 = vmatmul.mubr.f32.gmra.mrb[0].mxu0 %v1693
    %v1902 = vpop.f32.mrb[0].mxu0
    %v1903 = vadd.f32 0.0, %v1902
    %v1904 = vpop.f32.mrb[0].mxu0
    %v1905 = vadd.f32 0.0, %v1904
    %1906 = vmatprep.mubr.f32.mxu0 0.0
    %1907 = vmatmul.mubr.f32.gmra.mrb[0].mxu0 %v1694
    %v1908 = vpop.f32.mrb[0].mxu0
    %v1909 = vadd.f32 0.0, %v1908
    %v1910 = vpop.f32.mrb[0].mxu0
    %v1911 = vadd.f32 0.0, %v1910
    %1912 = vdwg.mxu0
    %v1913 = vmul.f32 %v1903, %v1826
    %v1914 = vmul.f32 %v1905, %v1828
    %v1915 = vmul.f32 %v1909, %v1832
    %v1916 = vmul.f32 %v1911, %v1834
    %v1917 = vxor.u32 %v1913, 2147483648
    %v1918 = vxor.u32 %v1914, 2147483648
    %v1919 = vxor.u32 %v1915, 2147483648
    %v1920 = vxor.u32 %v1916, 2147483648
    %v1921 = vmul.f32 %v1917, 1.442695
    %v1922 = vpow.pop %v1921
    %v1923 = vmul.f32 %v1918, 1.442695
    %v1924 = vpow.pop %v1923
    %v1925 = vmul.f32 %v1919, 1.442695
    %v1926 = vpow.pop %v1925
    %v1927 = vmul.f32 %v1920, 1.442695
    %v1928 = vpow.pop %v1927
    %v1929 = vadd.f32 %v1922, 1.0
    %v1930 = vadd.f32 %v1924, 1.0
    %v1931 = vadd.f32 %v1926, 1.0
    %v1932 = vadd.f32 %v1928, 1.0
    %v1933 = vrcp.pop %v1929
    %v1934 = vmul.f32 1.0, %v1933
    %v1935 = vrcp.pop %v1930
    %v1936 = vmul.f32 1.0, %v1935
    %v1937 = vrcp.pop %v1931
    %v1938 = vmul.f32 1.0, %v1937
    %v1939 = vrcp.pop %v1932
    %v1940 = vmul.f32 1.0, %v1939
    %v1941 = vmul.f32 %v1913, %v1934
    %v1942 = vmul.f32 %v1914, %v1936
    %v1943 = vmul.f32 %v1915, %v1938
    %v1944 = vmul.f32 %v1916, %v1940
    %v1945 = vld [vmem:[#allocation13] sm:$0xff]
    %v1946 = vld [vmem:[#allocation13 + $0x8] sm:$0xff]
    %v1947 = vld [vmem:[#allocation13 + $0x10] sm:$0xff]
    %v1948 = vld [vmem:[#allocation13 + $0x18] sm:$0xff]
    %v1949 = vld [vmem:[#allocation13 + $0x20] sm:$0xff]
    %v1950 = vld [vmem:[#allocation13 + $0x28] sm:$0xff]
    %v1951 = vld [vmem:[#allocation13 + $0x30] sm:$0xff]
    %v1952 = vld [vmem:[#allocation13 + $0x38] sm:$0xff]
    %v1953 = vld [vmem:[#allocation13 + $0x40] sm:$0xff]
    %v1954 = vld [vmem:[#allocation13 + $0x48] sm:$0xff]
    %v1955 = vld [vmem:[#allocation13 + $0x50] sm:$0xff]
    %v1956 = vld [vmem:[#allocation13 + $0x58] sm:$0xff]
    %v1957 = vld [vmem:[#allocation13 + $0x60] sm:$0xff]
    %v1958 = vld [vmem:[#allocation13 + $0x68] sm:$0xff]
    %v1959 = vld [vmem:[#allocation13 + $0x70] sm:$0xff]
    %v1960 = vld [vmem:[#allocation13 + $0x78] sm:$0xff]
    %v1961 = vld [vmem:[#allocation13 + $0x80] sm:$0xff]
    %v1962 = vld [vmem:[#allocation13 + $0x88] sm:$0xff]
    %v1963 = vld [vmem:[#allocation13 + $0x90] sm:$0xff]
    %v1964 = vld [vmem:[#allocation13 + $0x98] sm:$0xff]
    %v1965 = vld [vmem:[#allocation13 + $0xa0] sm:$0xff]
    %v1966 = vld [vmem:[#allocation13 + $0xa8] sm:$0xff]
    %v1967 = vld [vmem:[#allocation13 + $0xb0] sm:$0xff]
    %v1968 = vld [vmem:[#allocation13 + $0xb8] sm:$0xff]
    %v1969 = vld [vmem:[#allocation13 + $0xc0] sm:$0xff]
    %v1970 = vld [vmem:[#allocation13 + $0xc8] sm:$0xff]
    %v1971 = vld [vmem:[#allocation13 + $0xd0] sm:$0xff]
    %v1972 = vld [vmem:[#allocation13 + $0xd8] sm:$0xff]
    %v1973 = vld [vmem:[#allocation13 + $0xe0] sm:$0xff]
    %v1974 = vld [vmem:[#allocation13 + $0xe8] sm:$0xff]
    %v1975 = vld [vmem:[#allocation13 + $0xf0] sm:$0xff]
    %v1976 = vld [vmem:[#allocation13 + $0xf8] sm:$0xff]
    %1977 = vmatprep.subr.mxu0 0.0
    %1978 = vmatpush1.msra.mxu0 %v1945
    %1979 = vmatprep.subr.mxu0 0.0
    %1980 = vmatpush1.msra.mxu0 %v1946
    %1981 = vmatprep.subr.mxu0 0.0
    %1982 = vmatpush1.msra.mxu0 %v1947
    %1983 = vmatprep.subr.mxu0 0.0
    %1984 = vmatpush1.msra.mxu0 %v1948
    %1985 = vmatprep.subr.mxu0 0.0
    %1986 = vmatpush1.msra.mxu0 %v1949
    %1987 = vmatprep.subr.mxu0 0.0
    %1988 = vmatpush1.msra.mxu0 %v1950
    %1989 = vmatprep.subr.mxu0 0.0
    %1990 = vmatpush1.msra.mxu0 %v1951
    %1991 = vmatprep.subr.mxu0 0.0
    %1992 = vmatpush1.msra.mxu0 %v1952
    %1993 = vmatprep.subr.mxu0 0.0
    %1994 = vmatpush1.msra.mxu0 %v1953
    %1995 = vmatprep.subr.mxu0 0.0
    %1996 = vmatpush1.msra.mxu0 %v1954
    %1997 = vmatprep.subr.mxu0 0.0
    %1998 = vmatpush1.msra.mxu0 %v1955
    %1999 = vmatprep.subr.mxu0 0.0
    %2000 = vmatpush1.msra.mxu0 %v1956
    %2001 = vmatprep.subr.mxu0 0.0
    %2002 = vmatpush1.msra.mxu0 %v1957
    %2003 = vmatprep.subr.mxu0 0.0
    %2004 = vmatpush1.msra.mxu0 %v1958
    %2005 = vmatprep.subr.mxu0 0.0
    %2006 = vmatpush1.msra.mxu0 %v1959
    %2007 = vmatprep.subr.mxu0 0.0
    %2008 = vmatpush1.msra.mxu0 %v1960
    %2009 = vmatprep.subr.mxu0 0.0
    %2010 = vmatpush1.msra.mxu0 %v1961
    %2011 = vmatprep.subr.mxu0 0.0
    %2012 = vmatpush1.msra.mxu0 %v1962
    %2013 = vmatprep.subr.mxu0 0.0
    %2014 = vmatpush1.msra.mxu0 %v1963
    %2015 = vmatprep.subr.mxu0 0.0
    %2016 = vmatpush1.msra.mxu0 %v1964
    %2017 = vmatprep.subr.mxu0 0.0
    %2018 = vmatpush1.msra.mxu0 %v1965
    %2019 = vmatprep.subr.mxu0 0.0
    %2020 = vmatpush1.msra.mxu0 %v1966
    %2021 = vmatprep.subr.mxu0 0.0
    %2022 = vmatpush1.msra.mxu0 %v1967
    %2023 = vmatprep.subr.mxu0 0.0
    %2024 = vmatpush1.msra.mxu0 %v1968
    %2025 = vmatprep.subr.mxu0 0.0
    %2026 = vmatpush1.msra.mxu0 %v1969
    %2027 = vmatprep.subr.mxu0 0.0
    %2028 = vmatpush1.msra.mxu0 %v1970
    %2029 = vmatprep.subr.mxu0 0.0
    %2030 = vmatpush1.msra.mxu0 %v1971
    %2031 = vmatprep.subr.mxu0 0.0
    %2032 = vmatpush1.msra.mxu0 %v1972
    %2033 = vmatprep.subr.mxu0 0.0
    %2034 = vmatpush1.msra.mxu0 %v1973
    %2035 = vmatprep.subr.mxu0 0.0
    %2036 = vmatpush1.msra.mxu0 %v1974
    %2037 = vmatprep.subr.mxu0 0.0
    %2038 = vmatpush1.msra.mxu0 %v1975
    %2039 = vmatprep.subr.mxu0 0.0
    %2040 = vmatpush1.msra.mxu0 %v1976
    %2041 = vmatprep.mubr.f32.mxu0 %v1942
    %2042 = vmatmul.mubr.f32.gmra.mrb[0].mxu0 %v1941
    %v2043 = vpop.f32.mrb[0].mxu0
    %v2044 = vadd.f32 0.0, %v2043
    %v2045 = vpop.f32.mrb[0].mxu0
    %2046 = vmatprep.mubr.f32.mxu0 %v1944
    %2047 = vmatmul.mubr.f32.gmra.mrb[0].mxu0 %v1943
    %v2048 = vpop.f32.mrb[0].mxu0
    %v2049 = vadd.f32 0.0, %v2048
    %v2050 = vpop.f32.mrb[0].mxu0
    %2051 = vdwg.mxu0
    %v2052 = vadd.f32 %v1693, %v2044
    %v2053 = vadd.f32 %v1694, %v2049
    %v2054 = vmul.f32 %v2052, %v2052
    %v2055 = vmul.f32 %v2053, %v2053
    %v2056 = vrot.slane %v2054, 4
    %v2057 = vadd.f32 %v2054, %v2056
    %v2058 = vrot.slane %v2057, 2
    %v2059 = vadd.f32 %v2057, %v2058
    %v2060 = vrot.slane %v2059, 1
    %v2061 = vadd.f32 %v2059, %v2060
    %v2062 = vrot.slane %v2055, 4
    %v2063 = vadd.f32 %v2055, %v2062
    %v2064 = vrot.slane %v2063, 2
    %v2065 = vadd.f32 %v2063, %v2064
    %v2066 = vrot.slane %v2065, 1
    %v2067 = vadd.f32 %v2065, %v2066
    %v2068 = vmul.f32 %v2061, %v313
    %v2069 = vmul.f32 %v2067, %v313
    %v2070 = vrsqrt.pop %v2068
    %v2071 = vmul.f32 %v2068, %v2070
    %vm2072 = vcmp.eq.f32.partialorder %v2068, inf
    %v2073 = vsel %vm2072, %v2068, %v2071
    %vm2074 = vcmp.eq.f32.partialorder %v2068, 0.0
    %v2075 = vand.u32 %v2068, 2147483648
    %v2076 = vsel %vm2074, %v2075, %v2073
    %v2077 = vrsqrt.pop %v2069
    %v2078 = vmul.f32 %v2069, %v2077
    %vm2079 = vcmp.eq.f32.partialorder %v2069, inf
    %v2080 = vsel %vm2079, %v2069, %v2078
    %vm2081 = vcmp.eq.f32.partialorder %v2069, 0.0
    %v2082 = vand.u32 %v2069, 2147483648
    %v2083 = vsel %vm2081, %v2082, %v2080
    %v2084 = vadd.f32 %v2076, 1e-05
    %v2085 = vadd.f32 %v2083, 1e-05
    %v2086 = vrcp.pop %v2084
    %v2087 = vrcp.pop %v2085
    %v2088 = vmul.f32 %v2052, %v2086
    %v2089 = vmul.f32 %v2053, %v2087
    %s2090 = scalar_lea.vmem [#allocation5], 1
    %v2091 = vld [vmem:[%s2090] sm:$0x1]
    %v2093 = vlaneseq
    %v2094 = vshrl.u32 %v2093, 7
    %v2095 = vsub.s32 0, %v2094
    %v2096 = vrot.slane %v2091, %v2095
    %v2098 = vmul.f32 %v2088, %v2096
    %v2099 = vmul.f32 %v2089, %v2096
    %s2100 = scalar_lea.vmem [#allocation8], 1280
    %v2101 = vld [vmem:[%s2100] sm:$0xff]
    %v2102 = vld [vmem:[%s2100 + $0x8] sm:$0xff]
    %v2103 = vld [vmem:[%s2100 + $0x10] sm:$0xff]
    %v2104 = vld [vmem:[%s2100 + $0x18] sm:$0xff]
    %v2105 = vld [vmem:[%s2100 + $0x20] sm:$0xff]
    %v2106 = vld [vmem:[%s2100 + $0x28] sm:$0xff]
    %v2107 = vld [vmem:[%s2100 + $0x30] sm:$0xff]
    %v2108 = vld [vmem:[%s2100 + $0x38] sm:$0xff]
    %v2109 = vld [vmem:[%s2100 + $0x40] sm:$0xff]
    %v2110 = vld [vmem:[%s2100 + $0x48] sm:$0xff]
    %v2111 = vld [vmem:[%s2100 + $0x50] sm:$0xff]
    %v2112 = vld [vmem:[%s2100 + $0x58] sm:$0xff]
    %v2113 = vld [vmem:[%s2100 + $0x60] sm:$0xff]
    %v2114 = vld [vmem:[%s2100 + $0x68] sm:$0xff]
    %v2115 = vld [vmem:[%s2100 + $0x70] sm:$0xff]
    %v2116 = vld [vmem:[%s2100 + $0x78] sm:$0xff]
    %v2117 = vld [vmem:[%s2100 + $0x80] sm:$0xff]
    %v2118 = vld [vmem:[%s2100 + $0x88] sm:$0xff]
    %v2119 = vld [vmem:[%s2100 + $0x90] sm:$0xff]
    %v2120 = vld [vmem:[%s2100 + $0x98] sm:$0xff]
    %v2121 = vld [vmem:[%s2100 + $0xa0] sm:$0xff]
    %v2122 = vld [vmem:[%s2100 + $0xa8] sm:$0xff]
    %v2123 = vld [vmem:[%s2100 + $0xb0] sm:$0xff]
    %v2124 = vld [vmem:[%s2100 + $0xb8] sm:$0xff]
    %v2125 = vld [vmem:[%s2100 + $0xc0] sm:$0xff]
    %v2126 = vld [vmem:[%s2100 + $0xc8] sm:$0xff]
    %v2127 = vld [vmem:[%s2100 + $0xd0] sm:$0xff]
    %v2128 = vld [vmem:[%s2100 + $0xd8] sm:$0xff]
    %v2129 = vld [vmem:[%s2100 + $0xe0] sm:$0xff]
    %v2130 = vld [vmem:[%s2100 + $0xe8] sm:$0xff]
    %v2131 = vld [vmem:[%s2100 + $0xf0] sm:$0xff]
    %v2132 = vld [vmem:[%s2100 + $0xf8] sm:$0xff]
    %v2133 = vld [vmem:[%s2100 + $0x100] sm:$0xff]
    %v2134 = vld [vmem:[%s2100 + $0x108] sm:$0xff]
    %v2135 = vld [vmem:[%s2100 + $0x110] sm:$0xff]
    %v2136 = vld [vmem:[%s2100 + $0x118] sm:$0xff]
    %v2137 = vld [vmem:[%s2100 + $0x120] sm:$0xff]
    %v2138 = vld [vmem:[%s2100 + $0x128] sm:$0xff]
    %v2139 = vld [vmem:[%s2100 + $0x130] sm:$0xff]
    %v2140 = vld [vmem:[%s2100 + $0x138] sm:$0xff]
    %v2141 = vld [vmem:[%s2100 + $0x140] sm:$0xff]
    %v2142 = vld [vmem:[%s2100 + $0x148] sm:$0xff]
    %v2143 = vld [vmem:[%s2100 + $0x150] sm:$0xff]
    %v2144 = vld [vmem:[%s2100 + $0x158] sm:$0xff]
    %v2145 = vld [vmem:[%s2100 + $0x160] sm:$0xff]
    %v2146 = vld [vmem:[%s2100 + $0x168] sm:$0xff]
    %v2147 = vld [vmem:[%s2100 + $0x170] sm:$0xff]
    %v2148 = vld [vmem:[%s2100 + $0x178] sm:$0xff]
    %v2149 = vld [vmem:[%s2100 + $0x180] sm:$0xff]
    %v2150 = vld [vmem:[%s2100 + $0x188] sm:$0xff]
    %v2151 = vld [vmem:[%s2100 + $0x190] sm:$0xff]
    %v2152 = vld [vmem:[%s2100 + $0x198] sm:$0xff]
    %v2153 = vld [vmem:[%s2100 + $0x1a0] sm:$0xff]
    %v2154 = vld [vmem:[%s2100 + $0x1a8] sm:$0xff]
    %v2155 = vld [vmem:[%s2100 + $0x1b0] sm:$0xff]
    %v2156 = vld [vmem:[%s2100 + $0x1b8] sm:$0xff]
    %v2157 = vld [vmem:[%s2100 + $0x1c0] sm:$0xff]
    %v2158 = vld [vmem:[%s2100 + $0x1c8] sm:$0xff]
    %v2159 = vld [vmem:[%s2100 + $0x1d0] sm:$0xff]
    %v2160 = vld [vmem:[%s2100 + $0x1d8] sm:$0xff]
    %v2161 = vld [vmem:[%s2100 + $0x1e0] sm:$0xff]
    %v2162 = vld [vmem:[%s2100 + $0x1e8] sm:$0xff]
    %v2163 = vld [vmem:[%s2100 + $0x1f0] sm:$0xff]
    %v2164 = vld [vmem:[%s2100 + $0x1f8] sm:$0xff]
    %v2165 = vld [vmem:[%s2100 + $0x200] sm:$0xff]
    %v2166 = vld [vmem:[%s2100 + $0x208] sm:$0xff]
    %v2167 = vld [vmem:[%s2100 + $0x210] sm:$0xff]
    %v2168 = vld [vmem:[%s2100 + $0x218] sm:$0xff]
    %v2169 = vld [vmem:[%s2100 + $0x220] sm:$0xff]
    %v2170 = vld [vmem:[%s2100 + $0x228] sm:$0xff]
    %v2171 = vld [vmem:[%s2100 + $0x230] sm:$0xff]
    %v2172 = vld [vmem:[%s2100 + $0x238] sm:$0xff]
    %v2173 = vld [vmem:[%s2100 + $0x240] sm:$0xff]
    %v2174 = vld [vmem:[%s2100 + $0x248] sm:$0xff]
    %v2175 = vld [vmem:[%s2100 + $0x250] sm:$0xff]
    %v2176 = vld [vmem:[%s2100 + $0x258] sm:$0xff]
    %v2177 = vld [vmem:[%s2100 + $0x260] sm:$0xff]
    %v2178 = vld [vmem:[%s2100 + $0x268] sm:$0xff]
    %v2179 = vld [vmem:[%s2100 + $0x270] sm:$0xff]
    %v2180 = vld [vmem:[%s2100 + $0x278] sm:$0xff]
    %v2181 = vld [vmem:[%s2100 + $0x280] sm:$0xff]
    %v2182 = vld [vmem:[%s2100 + $0x288] sm:$0xff]
    %v2183 = vld [vmem:[%s2100 + $0x290] sm:$0xff]
    %v2184 = vld [vmem:[%s2100 + $0x298] sm:$0xff]
    %v2185 = vld [vmem:[%s2100 + $0x2a0] sm:$0xff]
    %v2186 = vld [vmem:[%s2100 + $0x2a8] sm:$0xff]
    %v2187 = vld [vmem:[%s2100 + $0x2b0] sm:$0xff]
    %v2188 = vld [vmem:[%s2100 + $0x2b8] sm:$0xff]
    %v2189 = vld [vmem:[%s2100 + $0x2c0] sm:$0xff]
    %v2190 = vld [vmem:[%s2100 + $0x2c8] sm:$0xff]
    %v2191 = vld [vmem:[%s2100 + $0x2d0] sm:$0xff]
    %v2192 = vld [vmem:[%s2100 + $0x2d8] sm:$0xff]
    %v2193 = vld [vmem:[%s2100 + $0x2e0] sm:$0xff]
    %v2194 = vld [vmem:[%s2100 + $0x2e8] sm:$0xff]
    %v2195 = vld [vmem:[%s2100 + $0x2f0] sm:$0xff]
    %v2196 = vld [vmem:[%s2100 + $0x2f8] sm:$0xff]
    %v2197 = vld [vmem:[%s2100 + $0x300] sm:$0xff]
    %v2198 = vld [vmem:[%s2100 + $0x308] sm:$0xff]
    %v2199 = vld [vmem:[%s2100 + $0x310] sm:$0xff]
    %v2200 = vld [vmem:[%s2100 + $0x318] sm:$0xff]
    %v2201 = vld [vmem:[%s2100 + $0x320] sm:$0xff]
    %v2202 = vld [vmem:[%s2100 + $0x328] sm:$0xff]
    %v2203 = vld [vmem:[%s2100 + $0x330] sm:$0xff]
    %v2204 = vld [vmem:[%s2100 + $0x338] sm:$0xff]
    %v2205 = vld [vmem:[%s2100 + $0x340] sm:$0xff]
    %v2206 = vld [vmem:[%s2100 + $0x348] sm:$0xff]
    %v2207 = vld [vmem:[%s2100 + $0x350] sm:$0xff]
    %v2208 = vld [vmem:[%s2100 + $0x358] sm:$0xff]
    %v2209 = vld [vmem:[%s2100 + $0x360] sm:$0xff]
    %v2210 = vld [vmem:[%s2100 + $0x368] sm:$0xff]
    %v2211 = vld [vmem:[%s2100 + $0x370] sm:$0xff]
    %v2212 = vld [vmem:[%s2100 + $0x378] sm:$0xff]
    %v2213 = vld [vmem:[%s2100 + $0x380] sm:$0xff]
    %v2214 = vld [vmem:[%s2100 + $0x388] sm:$0xff]
    %v2215 = vld [vmem:[%s2100 + $0x390] sm:$0xff]
    %v2216 = vld [vmem:[%s2100 + $0x398] sm:$0xff]
    %v2217 = vld [vmem:[%s2100 + $0x3a0] sm:$0xff]
    %v2218 = vld [vmem:[%s2100 + $0x3a8] sm:$0xff]
    %v2219 = vld [vmem:[%s2100 + $0x3b0] sm:$0xff]
    %v2220 = vld [vmem:[%s2100 + $0x3b8] sm:$0xff]
    %v2221 = vld [vmem:[%s2100 + $0x3c0] sm:$0xff]
    %v2222 = vld [vmem:[%s2100 + $0x3c8] sm:$0xff]
    %v2223 = vld [vmem:[%s2100 + $0x3d0] sm:$0xff]
    %v2224 = vld [vmem:[%s2100 + $0x3d8] sm:$0xff]
    %v2225 = vld [vmem:[%s2100 + $0x3e0] sm:$0xff]
    %v2226 = vld [vmem:[%s2100 + $0x3e8] sm:$0xff]
    %v2227 = vld [vmem:[%s2100 + $0x3f0] sm:$0xff]
    %v2228 = vld [vmem:[%s2100 + $0x3f8] sm:$0xff]
    %v2229 = vld [vmem:[%s2100 + $0x400] sm:$0xff]
    %v2230 = vld [vmem:[%s2100 + $0x408] sm:$0xff]
    %v2231 = vld [vmem:[%s2100 + $0x410] sm:$0xff]
    %v2232 = vld [vmem:[%s2100 + $0x418] sm:$0xff]
    %v2233 = vld [vmem:[%s2100 + $0x420] sm:$0xff]
    %v2234 = vld [vmem:[%s2100 + $0x428] sm:$0xff]
    %v2235 = vld [vmem:[%s2100 + $0x430] sm:$0xff]
    %v2236 = vld [vmem:[%s2100 + $0x438] sm:$0xff]
    %v2237 = vld [vmem:[%s2100 + $0x440] sm:$0xff]
    %v2238 = vld [vmem:[%s2100 + $0x448] sm:$0xff]
    %v2239 = vld [vmem:[%s2100 + $0x450] sm:$0xff]
    %v2240 = vld [vmem:[%s2100 + $0x458] sm:$0xff]
    %v2241 = vld [vmem:[%s2100 + $0x460] sm:$0xff]
    %v2242 = vld [vmem:[%s2100 + $0x468] sm:$0xff]
    %v2243 = vld [vmem:[%s2100 + $0x470] sm:$0xff]
    %v2244 = vld [vmem:[%s2100 + $0x478] sm:$0xff]
    %v2245 = vld [vmem:[%s2100 + $0x480] sm:$0xff]
    %v2246 = vld [vmem:[%s2100 + $0x488] sm:$0xff]
    %v2247 = vld [vmem:[%s2100 + $0x490] sm:$0xff]
    %v2248 = vld [vmem:[%s2100 + $0x498] sm:$0xff]
    %v2249 = vld [vmem:[%s2100 + $0x4a0] sm:$0xff]
    %v2250 = vld [vmem:[%s2100 + $0x4a8] sm:$0xff]
    %v2251 = vld [vmem:[%s2100 + $0x4b0] sm:$0xff]
    %v2252 = vld [vmem:[%s2100 + $0x4b8] sm:$0xff]
    %v2253 = vld [vmem:[%s2100 + $0x4c0] sm:$0xff]
    %v2254 = vld [vmem:[%s2100 + $0x4c8] sm:$0xff]
    %v2255 = vld [vmem:[%s2100 + $0x4d0] sm:$0xff]
    %v2256 = vld [vmem:[%s2100 + $0x4d8] sm:$0xff]
    %v2257 = vld [vmem:[%s2100 + $0x4e0] sm:$0xff]
    %v2258 = vld [vmem:[%s2100 + $0x4e8] sm:$0xff]
    %v2259 = vld [vmem:[%s2100 + $0x4f0] sm:$0xff]
    %v2260 = vld [vmem:[%s2100 + $0x4f8] sm:$0xff]
    %2261 = vmatprep.subr.mxu0 %v2102
    %2262 = vmatpush1.msra.mxu0 %v2101
    %2263 = vmatprep.subr.mxu0 %v2112
    %2264 = vmatpush1.msra.mxu0 %v2111
    %2265 = vmatprep.subr.mxu0 %v2122
    %2266 = vmatpush1.msra.mxu0 %v2121
    %2267 = vmatprep.subr.mxu0 %v2132
    %2268 = vmatpush1.msra.mxu0 %v2131
    %2269 = vmatprep.subr.mxu0 %v2142
    %2270 = vmatpush1.msra.mxu0 %v2141
    %2271 = vmatprep.subr.mxu0 %v2152
    %2272 = vmatpush1.msra.mxu0 %v2151
    %2273 = vmatprep.subr.mxu0 %v2162
    %2274 = vmatpush1.msra.mxu0 %v2161
    %2275 = vmatprep.subr.mxu0 %v2172
    %2276 = vmatpush1.msra.mxu0 %v2171
    %2277 = vmatprep.subr.mxu0 %v2182
    %2278 = vmatpush1.msra.mxu0 %v2181
    %2279 = vmatprep.subr.mxu0 %v2192
    %2280 = vmatpush1.msra.mxu0 %v2191
    %2281 = vmatprep.subr.mxu0 %v2202
    %2282 = vmatpush1.msra.mxu0 %v2201
    %2283 = vmatprep.subr.mxu0 %v2212
    %2284 = vmatpush1.msra.mxu0 %v2211
    %2285 = vmatprep.subr.mxu0 %v2222
    %2286 = vmatpush1.msra.mxu0 %v2221
    %2287 = vmatprep.subr.mxu0 %v2232
    %2288 = vmatpush1.msra.mxu0 %v2231
    %2289 = vmatprep.subr.mxu0 %v2242
    %2290 = vmatpush1.msra.mxu0 %v2241
    %2291 = vmatprep.subr.mxu0 %v2252
    %2292 = vmatpush1.msra.mxu0 %v2251
    %2293 = vmatprep.subr.mxu0 0.0
    %2294 = vmatpush1.msra.mxu0 0.0
    %2295 = vmatprep.subr.mxu0 0.0
    %2296 = vmatpush1.msra.mxu0 0.0
    %2297 = vmatprep.subr.mxu0 0.0
    %2298 = vmatpush1.msra.mxu0 0.0
    %2299 = vmatprep.subr.mxu0 0.0
    %2300 = vmatpush1.msra.mxu0 0.0
    %2301 = vmatprep.subr.mxu0 0.0
    %2302 = vmatpush1.msra.mxu0 0.0
    %2303 = vmatprep.subr.mxu0 0.0
    %2304 = vmatpush1.msra.mxu0 0.0
    %2305 = vmatprep.subr.mxu0 0.0
    %2306 = vmatpush1.msra.mxu0 0.0
    %2307 = vmatprep.subr.mxu0 0.0
    %2308 = vmatpush1.msra.mxu0 0.0
    %2309 = vmatprep.subr.mxu0 0.0
    %2310 = vmatpush1.msra.mxu0 0.0
    %2311 = vmatprep.subr.mxu0 0.0
    %2312 = vmatpush1.msra.mxu0 0.0
    %2313 = vmatprep.subr.mxu0 0.0
    %2314 = vmatpush1.msra.mxu0 0.0
    %2315 = vmatprep.subr.mxu0 0.0
    %2316 = vmatpush1.msra.mxu0 0.0
    %2317 = vmatprep.subr.mxu0 0.0
    %2318 = vmatpush1.msra.mxu0 0.0
    %2319 = vmatprep.subr.mxu0 0.0
    %2320 = vmatpush1.msra.mxu0 0.0
    %2321 = vmatprep.subr.mxu0 0.0
    %2322 = vmatpush1.msra.mxu0 0.0
    %2323 = vmatprep.subr.mxu0 0.0
    %2324 = vmatpush1.msra.mxu0 0.0
    %2325 = vmatprep.mubr.f32.mxu0 0.0
    %2326 = vmatmul.mubr.f32.gmra.mrb[0].mxu0 %v2098
    %v2327 = vpop.f32.mrb[0].mxu0
    %v2328 = vadd.f32 0.0, %v2327
    %v2329 = vpop.f32.mrb[0].mxu0
    %v2330 = vadd.f32 0.0, %v2329
    %2331 = vmatprep.mubr.f32.mxu0 0.0
    %2332 = vmatmul.mubr.f32.gmra.mrb[0].mxu0 %v2099
    %v2333 = vpop.f32.mrb[0].mxu0
    %v2334 = vadd.f32 0.0, %v2333
    %v2335 = vpop.f32.mrb[0].mxu0
    %v2336 = vadd.f32 0.0, %v2335
    %2337 = vdwg.mxu0
    %2338 = vmatprep.subr.mxu0 %v2104
    %2339 = vmatpush1.msra.mxu0 %v2103
    %2340 = vmatprep.subr.mxu0 %v2114
    %2341 = vmatpush1.msra.mxu0 %v2113
    %2342 = vmatprep.subr.mxu0 %v2124
    %2343 = vmatpush1.msra.mxu0 %v2123
    %2344 = vmatprep.subr.mxu0 %v2134
    %2345 = vmatpush1.msra.mxu0 %v2133
    %2346 = vmatprep.subr.mxu0 %v2144
    %2347 = vmatpush1.msra.mxu0 %v2143
    %2348 = vmatprep.subr.mxu0 %v2154
    %2349 = vmatpush1.msra.mxu0 %v2153
    %2350 = vmatprep.subr.mxu0 %v2164
    %2351 = vmatpush1.msra.mxu0 %v2163
    %2352 = vmatprep.subr.mxu0 %v2174
    %2353 = vmatpush1.msra.mxu0 %v2173
    %2354 = vmatprep.subr.mxu0 %v2184
    %2355 = vmatpush1.msra.mxu0 %v2183
    %2356 = vmatprep.subr.mxu0 %v2194
    %2357 = vmatpush1.msra.mxu0 %v2193
    %2358 = vmatprep.subr.mxu0 %v2204
    %2359 = vmatpush1.msra.mxu0 %v2203
    %2360 = vmatprep.subr.mxu0 %v2214
    %2361 = vmatpush1.msra.mxu0 %v2213
    %2362 = vmatprep.subr.mxu0 %v2224
    %2363 = vmatpush1.msra.mxu0 %v2223
    %2364 = vmatprep.subr.mxu0 %v2234
    %2365 = vmatpush1.msra.mxu0 %v2233
    %2366 = vmatprep.subr.mxu0 %v2244
    %2367 = vmatpush1.msra.mxu0 %v2243
    %2368 = vmatprep.subr.mxu0 %v2254
    %2369 = vmatpush1.msra.mxu0 %v2253
    %2370 = vmatprep.subr.mxu0 0.0
    %2371 = vmatpush1.msra.mxu0 0.0
    %2372 = vmatprep.subr.mxu0 0.0
    %2373 = vmatpush1.msra.mxu0 0.0
    %2374 = vmatprep.subr.mxu0 0.0
    %2375 = vmatpush1.msra.mxu0 0.0
    %2376 = vmatprep.subr.mxu0 0.0
    %2377 = vmatpush1.msra.mxu0 0.0
    %2378 = vmatprep.subr.mxu0 0.0
    %2379 = vmatpush1.msra.mxu0 0.0
    %2380 = vmatprep.subr.mxu0 0.0
    %2381 = vmatpush1.msra.mxu0 0.0
    %2382 = vmatprep.subr.mxu0 0.0
    %2383 = vmatpush1.msra.mxu0 0.0
    %2384 = vmatprep.subr.mxu0 0.0
    %2385 = vmatpush1.msra.mxu0 0.0
    %2386 = vmatprep.subr.mxu0 0.0
    %2387 = vmatpush1.msra.mxu0 0.0
    %2388 = vmatprep.subr.mxu0 0.0
    %2389 = vmatpush1.msra.mxu0 0.0
    %2390 = vmatprep.subr.mxu0 0.0
    %2391 = vmatpush1.msra.mxu0 0.0
    %2392 = vmatprep.subr.mxu0 0.0
    %2393 = vmatpush1.msra.mxu0 0.0
    %2394 = vmatprep.subr.mxu0 0.0
    %2395 = vmatpush1.msra.mxu0 0.0
    %2396 = vmatprep.subr.mxu0 0.0
    %2397 = vmatpush1.msra.mxu0 0.0
    %2398 = vmatprep.subr.mxu0 0.0
    %2399 = vmatpush1.msra.mxu0 0.0
    %2400 = vmatprep.subr.mxu0 0.0
    %2401 = vmatpush1.msra.mxu0 0.0
    %2402 = vmatprep.mubr.f32.mxu0 0.0
    %2403 = vmatmul.mubr.f32.gmra.mrb[0].mxu0 %v2098
    %v2404 = vpop.f32.mrb[0].mxu0
    %v2405 = vadd.f32 0.0, %v2404
    %v2406 = vpop.f32.mrb[0].mxu0
    %v2407 = vadd.f32 0.0, %v2406
    %2408 = vmatprep.mubr.f32.mxu0 0.0
    %2409 = vmatmul.mubr.f32.gmra.mrb[0].mxu0 %v2099
    %v2410 = vpop.f32.mrb[0].mxu0
    %v2411 = vadd.f32 0.0, %v2410
    %v2412 = vpop.f32.mrb[0].mxu0
    %v2413 = vadd.f32 0.0, %v2412
    %2414 = vdwg.mxu0
    %2415 = vmatprep.subr.mxu0 %v2106
    %2416 = vmatpush1.msra.mxu0 %v2105
    %2417 = vmatprep.subr.mxu0 %v2116
    %2418 = vmatpush1.msra.mxu0 %v2115
    %2419 = vmatprep.subr.mxu0 %v2126
    %2420 = vmatpush1.msra.mxu0 %v2125
    %2421 = vmatprep.subr.mxu0 %v2136
    %2422 = vmatpush1.msra.mxu0 %v2135
    %2423 = vmatprep.subr.mxu0 %v2146
    %2424 = vmatpush1.msra.mxu0 %v2145
    %2425 = vmatprep.subr.mxu0 %v2156
    %2426 = vmatpush1.msra.mxu0 %v2155
    %2427 = vmatprep.subr.mxu0 %v2166
    %2428 = vmatpush1.msra.mxu0 %v2165
    %2429 = vmatprep.subr.mxu0 %v2176
    %2430 = vmatpush1.msra.mxu0 %v2175
    %2431 = vmatprep.subr.mxu0 %v2186
    %2432 = vmatpush1.msra.mxu0 %v2185
    %2433 = vmatprep.subr.mxu0 %v2196
    %2434 = vmatpush1.msra.mxu0 %v2195
    %2435 = vmatprep.subr.mxu0 %v2206
    %2436 = vmatpush1.msra.mxu0 %v2205
    %2437 = vmatprep.subr.mxu0 %v2216
    %2438 = vmatpush1.msra.mxu0 %v2215
    %2439 = vmatprep.subr.mxu0 %v2226
    %2440 = vmatpush1.msra.mxu0 %v2225
    %2441 = vmatprep.subr.mxu0 %v2236
    %2442 = vmatpush1.msra.mxu0 %v2235
    %2443 = vmatprep.subr.mxu0 %v2246
    %2444 = vmatpush1.msra.mxu0 %v2245
    %2445 = vmatprep.subr.mxu0 %v2256
    %2446 = vmatpush1.msra.mxu0 %v2255
    %2447 = vmatprep.subr.mxu0 0.0
    %2448 = vmatpush1.msra.mxu0 0.0
    %2449 = vmatprep.subr.mxu0 0.0
    %2450 = vmatpush1.msra.mxu0 0.0
    %2451 = vmatprep.subr.mxu0 0.0
    %2452 = vmatpush1.msra.mxu0 0.0
    %2453 = vmatprep.subr.mxu0 0.0
    %2454 = vmatpush1.msra.mxu0 0.0
    %2455 = vmatprep.subr.mxu0 0.0
    %2456 = vmatpush1.msra.mxu0 0.0
    %2457 = vmatprep.subr.mxu0 0.0
    %2458 = vmatpush1.msra.mxu0 0.0
    %2459 = vmatprep.subr.mxu0 0.0
    %2460 = vmatpush1.msra.mxu0 0.0
    %2461 = vmatprep.subr.mxu0 0.0
    %2462 = vmatpush1.msra.mxu0 0.0
    %2463 = vmatprep.subr.mxu0 0.0
    %2464 = vmatpush1.msra.mxu0 0.0
    %2465 = vmatprep.subr.mxu0 0.0
    %2466 = vmatpush1.msra.mxu0 0.0
    %2467 = vmatprep.subr.mxu0 0.0
    %2468 = vmatpush1.msra.mxu0 0.0
    %2469 = vmatprep.subr.mxu0 0.0
    %2470 = vmatpush1.msra.mxu0 0.0
    %2471 = vmatprep.subr.mxu0 0.0
    %2472 = vmatpush1.msra.mxu0 0.0
    %2473 = vmatprep.subr.mxu0 0.0
    %2474 = vmatpush1.msra.mxu0 0.0
    %2475 = vmatprep.subr.mxu0 0.0
    %2476 = vmatpush1.msra.mxu0 0.0
    %2477 = vmatprep.subr.mxu0 0.0
    %2478 = vmatpush1.msra.mxu0 0.0
    %2479 = vmatprep.mubr.f32.mxu0 0.0
    %2480 = vmatmul.mubr.f32.gmra.mrb[0].mxu0 %v2098
    %v2481 = vpop.f32.mrb[0].mxu0
    %v2482 = vadd.f32 0.0, %v2481
    %v2483 = vpop.f32.mrb[0].mxu0
    %v2484 = vadd.f32 0.0, %v2483
    %2485 = vmatprep.mubr.f32.mxu0 0.0
    %2486 = vmatmul.mubr.f32.gmra.mrb[0].mxu0 %v2099
    %v2487 = vpop.f32.mrb[0].mxu0
    %v2488 = vadd.f32 0.0, %v2487
    %v2489 = vpop.f32.mrb[0].mxu0
    %v2490 = vadd.f32 0.0, %v2489
    %2491 = vdwg.mxu0
    %2492 = vmatprep.subr.mxu0 %v2108
    %2493 = vmatpush1.msra.mxu0 %v2107
    %2494 = vmatprep.subr.mxu0 %v2118
    %2495 = vmatpush1.msra.mxu0 %v2117
    %2496 = vmatprep.subr.mxu0 %v2128
    %2497 = vmatpush1.msra.mxu0 %v2127
    %2498 = vmatprep.subr.mxu0 %v2138
    %2499 = vmatpush1.msra.mxu0 %v2137
    %2500 = vmatprep.subr.mxu0 %v2148
    %2501 = vmatpush1.msra.mxu0 %v2147
    %2502 = vmatprep.subr.mxu0 %v2158
    %2503 = vmatpush1.msra.mxu0 %v2157
    %2504 = vmatprep.subr.mxu0 %v2168
    %2505 = vmatpush1.msra.mxu0 %v2167
    %2506 = vmatprep.subr.mxu0 %v2178
    %2507 = vmatpush1.msra.mxu0 %v2177
    %2508 = vmatprep.subr.mxu0 %v2188
    %2509 = vmatpush1.msra.mxu0 %v2187
    %2510 = vmatprep.subr.mxu0 %v2198
    %2511 = vmatpush1.msra.mxu0 %v2197
    %2512 = vmatprep.subr.mxu0 %v2208
    %2513 = vmatpush1.msra.mxu0 %v2207
    %2514 = vmatprep.subr.mxu0 %v2218
    %2515 = vmatpush1.msra.mxu0 %v2217
    %2516 = vmatprep.subr.mxu0 %v2228
    %2517 = vmatpush1.msra.mxu0 %v2227
    %2518 = vmatprep.subr.mxu0 %v2238
    %2519 = vmatpush1.msra.mxu0 %v2237
    %2520 = vmatprep.subr.mxu0 %v2248
    %2521 = vmatpush1.msra.mxu0 %v2247
    %2522 = vmatprep.subr.mxu0 %v2258
    %2523 = vmatpush1.msra.mxu0 %v2257
    %2524 = vmatprep.subr.mxu0 0.0
    %2525 = vmatpush1.msra.mxu0 0.0
    %2526 = vmatprep.subr.mxu0 0.0
    %2527 = vmatpush1.msra.mxu0 0.0
    %2528 = vmatprep.subr.mxu0 0.0
    %2529 = vmatpush1.msra.mxu0 0.0
    %2530 = vmatprep.subr.mxu0 0.0
    %2531 = vmatpush1.msra.mxu0 0.0
    %2532 = vmatprep.subr.mxu0 0.0
    %2533 = vmatpush1.msra.mxu0 0.0
    %2534 = vmatprep.subr.mxu0 0.0
    %2535 = vmatpush1.msra.mxu0 0.0
    %2536 = vmatprep.subr.mxu0 0.0
    %2537 = vmatpush1.msra.mxu0 0.0
    %2538 = vmatprep.subr.mxu0 0.0
    %2539 = vmatpush1.msra.mxu0 0.0
    %2540 = vmatprep.subr.mxu0 0.0
    %2541 = vmatpush1.msra.mxu0 0.0
    %2542 = vmatprep.subr.mxu0 0.0
    %2543 = vmatpush1.msra.mxu0 0.0
    %2544 = vmatprep.subr.mxu0 0.0
    %2545 = vmatpush1.msra.mxu0 0.0
    %2546 = vmatprep.subr.mxu0 0.0
    %2547 = vmatpush1.msra.mxu0 0.0
    %2548 = vmatprep.subr.mxu0 0.0
    %2549 = vmatpush1.msra.mxu0 0.0
    %2550 = vmatprep.subr.mxu0 0.0
    %2551 = vmatpush1.msra.mxu0 0.0
    %2552 = vmatprep.subr.mxu0 0.0
    %2553 = vmatpush1.msra.mxu0 0.0
    %2554 = vmatprep.subr.mxu0 0.0
    %2555 = vmatpush1.msra.mxu0 0.0
    %2556 = vmatprep.mubr.f32.mxu0 0.0
    %2557 = vmatmul.mubr.f32.gmra.mrb[0].mxu0 %v2098
    %v2558 = vpop.f32.mrb[0].mxu0
    %v2559 = vadd.f32 0.0, %v2558
    %v2560 = vpop.f32.mrb[0].mxu0
    %v2561 = vadd.f32 0.0, %v2560
    %2562 = vmatprep.mubr.f32.mxu0 0.0
    %2563 = vmatmul.mubr.f32.gmra.mrb[0].mxu0 %v2099
    %v2564 = vpop.f32.mrb[0].mxu0
    %v2565 = vadd.f32 0.0, %v2564
    %v2566 = vpop.f32.mrb[0].mxu0
    %v2567 = vadd.f32 0.0, %v2566
    %2568 = vdwg.mxu0
    %2569 = vmatprep.subr.mxu0 %v2110
    %2570 = vmatpush1.msra.mxu0 %v2109
    %2571 = vmatprep.subr.mxu0 %v2120
    %2572 = vmatpush1.msra.mxu0 %v2119
    %2573 = vmatprep.subr.mxu0 %v2130
    %2574 = vmatpush1.msra.mxu0 %v2129
    %2575 = vmatprep.subr.mxu0 %v2140
    %2576 = vmatpush1.msra.mxu0 %v2139
    %2577 = vmatprep.subr.mxu0 %v2150
    %2578 = vmatpush1.msra.mxu0 %v2149
    %2579 = vmatprep.subr.mxu0 %v2160
    %2580 = vmatpush1.msra.mxu0 %v2159
    %2581 = vmatprep.subr.mxu0 %v2170
    %2582 = vmatpush1.msra.mxu0 %v2169
    %2583 = vmatprep.subr.mxu0 %v2180
    %2584 = vmatpush1.msra.mxu0 %v2179
    %2585 = vmatprep.subr.mxu0 %v2190
    %2586 = vmatpush1.msra.mxu0 %v2189
    %2587 = vmatprep.subr.mxu0 %v2200
    %2588 = vmatpush1.msra.mxu0 %v2199
    %2589 = vmatprep.subr.mxu0 %v2210
    %2590 = vmatpush1.msra.mxu0 %v2209
    %2591 = vmatprep.subr.mxu0 %v2220
    %2592 = vmatpush1.msra.mxu0 %v2219
    %2593 = vmatprep.subr.mxu0 %v2230
    %2594 = vmatpush1.msra.mxu0 %v2229
    %2595 = vmatprep.subr.mxu0 %v2240
    %2596 = vmatpush1.msra.mxu0 %v2239
    %2597 = vmatprep.subr.mxu0 %v2250
    %2598 = vmatpush1.msra.mxu0 %v2249
    %2599 = vmatprep.subr.mxu0 %v2260
    %2600 = vmatpush1.msra.mxu0 %v2259
    %2601 = vmatprep.subr.mxu0 0.0
    %2602 = vmatpush1.msra.mxu0 0.0
    %2603 = vmatprep.subr.mxu0 0.0
    %2604 = vmatpush1.msra.mxu0 0.0
    %2605 = vmatprep.subr.mxu0 0.0
    %2606 = vmatpush1.msra.mxu0 0.0
    %2607 = vmatprep.subr.mxu0 0.0
    %2608 = vmatpush1.msra.mxu0 0.0
    %2609 = vmatprep.subr.mxu0 0.0
    %2610 = vmatpush1.msra.mxu0 0.0
    %2611 = vmatprep.subr.mxu0 0.0
    %2612 = vmatpush1.msra.mxu0 0.0
    %2613 = vmatprep.subr.mxu0 0.0
    %2614 = vmatpush1.msra.mxu0 0.0
    %2615 = vmatprep.subr.mxu0 0.0
    %2616 = vmatpush1.msra.mxu0 0.0
    %2617 = vmatprep.subr.mxu0 0.0
    %2618 = vmatpush1.msra.mxu0 0.0
    %2619 = vmatprep.subr.mxu0 0.0
    %2620 = vmatpush1.msra.mxu0 0.0
    %2621 = vmatprep.subr.mxu0 0.0
    %2622 = vmatpush1.msra.mxu0 0.0
    %2623 = vmatprep.subr.mxu0 0.0
    %2624 = vmatpush1.msra.mxu0 0.0
    %2625 = vmatprep.subr.mxu0 0.0
    %2626 = vmatpush1.msra.mxu0 0.0
    %2627 = vmatprep.subr.mxu0 0.0
    %2628 = vmatpush1.msra.mxu0 0.0
    %2629 = vmatprep.subr.mxu0 0.0
    %2630 = vmatpush1.msra.mxu0 0.0
    %2631 = vmatprep.subr.mxu0 0.0
    %2632 = vmatpush1.msra.mxu0 0.0
    %2633 = vmatprep.mubr.f32.mxu0 0.0
    %2634 = vmatmul.mubr.f32.gmra.mrb[0].mxu0 %v2098
    %v2635 = vpop.f32.mrb[0].mxu0
    %v2636 = vadd.f32 0.0, %v2635
    %v2637 = vpop.f32.mrb[0].mxu0
    %v2638 = vadd.f32 0.0, %v2637
    %2639 = vmatprep.mubr.f32.mxu0 0.0
    %2640 = vmatmul.mubr.f32.gmra.mrb[0].mxu0 %v2099
    %v2641 = vpop.f32.mrb[0].mxu0
    %v2642 = vadd.f32 0.0, %v2641
    %v2643 = vpop.f32.mrb[0].mxu0
    %v2644 = vadd.f32 0.0, %v2643
    %2645 = vdwg.mxu0
    %v2646 = vmul.f32 %v2328, %v295
    %v2647 = vmul.f32 %v2330, %v296
    %v2648 = vmul.f32 %v2334, %v295
    %v2649 = vmul.f32 %v2336, %v296
    %v2650 = vmul.f32 %v2559, %v297
    %v2651 = vmul.f32 %v2561, %v298
    %v2652 = vmul.f32 %v2565, %v297
    %v2653 = vmul.f32 %v2567, %v298
    %v2654 = vadd.f32 %v2646, %v2650
    %v2655 = vadd.f32 %v2647, %v2651
    %v2656 = vadd.f32 %v2648, %v2652
    %v2657 = vadd.f32 %v2649, %v2653
    %v2658 = vmul.f32 %v2405, %v295
    %v2659 = vmul.f32 %v2407, %v296
    %v2660 = vmul.f32 %v2411, %v295
    %v2661 = vmul.f32 %v2413, %v296
    %v2662 = vmul.f32 %v2636, %v297
    %v2663 = vmul.f32 %v2638, %v298
    %v2664 = vmul.f32 %v2642, %v297
    %v2665 = vmul.f32 %v2644, %v298
    %v2666 = vadd.f32 %v2658, %v2662
    %v2667 = vadd.f32 %v2659, %v2663
    %v2668 = vadd.f32 %v2660, %v2664
    %v2669 = vadd.f32 %v2661, %v2665
    %2670 = vmatprep.subr.mxu0 0.0
    %2671 = vmatpush1.xpose.msra.mxu0 %v2666
    %2672 = vmatprep.subr.mxu0 0.0
    %2673 = vmatpush1.xpose.msra.mxu0 0.0
    %2674 = vmatprep.subr.mxu0 0.0
    %2675 = vmatpush1.xpose.msra.mxu0 0.0
    %2676 = vmatprep.subr.mxu0 0.0
    %2677 = vmatpush1.xpose.msra.mxu0 0.0
    %2678 = vmatprep.subr.mxu0 0.0
    %2679 = vmatpush1.xpose.msra.mxu0 0.0
    %2680 = vmatprep.subr.mxu0 0.0
    %2681 = vmatpush1.xpose.msra.mxu0 0.0
    %2682 = vmatprep.subr.mxu0 0.0
    %2683 = vmatpush1.xpose.msra.mxu0 0.0
    %2684 = vmatprep.subr.mxu0 0.0
    %2685 = vmatpush1.xpose.msra.mxu0 0.0
    %2686 = vmatprep.subr.mxu0 0.0
    %2687 = vmatpush1.xpose.msra.mxu0 0.0
    %2688 = vmatprep.subr.mxu0 0.0
    %2689 = vmatpush1.xpose.msra.mxu0 0.0
    %2690 = vmatprep.subr.mxu0 0.0
    %2691 = vmatpush1.xpose.msra.mxu0 0.0
    %2692 = vmatprep.subr.mxu0 0.0
    %2693 = vmatpush1.xpose.msra.mxu0 0.0
    %2694 = vmatprep.subr.mxu0 0.0
    %2695 = vmatpush1.xpose.msra.mxu0 0.0
    %2696 = vmatprep.subr.mxu0 0.0
    %2697 = vmatpush1.xpose.msra.mxu0 0.0
    %2698 = vmatprep.subr.mxu0 0.0
    %2699 = vmatpush1.xpose.msra.mxu0 0.0
    %2700 = vmatprep.subr.mxu0 0.0
    %2701 = vmatpush1.xpose.msra.mxu0 0.0
    %2702 = vmatprep.subr.mxu0 0.0
    %2703 = vmatpush1.xpose.msra.mxu0 0.0
    %2704 = vmatprep.subr.mxu0 0.0
    %2705 = vmatpush1.xpose.msra.mxu0 0.0
    %2706 = vmatprep.subr.mxu0 0.0
    %2707 = vmatpush1.xpose.msra.mxu0 0.0
    %2708 = vmatprep.subr.mxu0 0.0
    %2709 = vmatpush1.xpose.msra.mxu0 0.0
    %2710 = vmatprep.subr.mxu0 0.0
    %2711 = vmatpush1.xpose.msra.mxu0 0.0
    %2712 = vmatprep.subr.mxu0 0.0
    %2713 = vmatpush1.xpose.msra.mxu0 0.0
    %2714 = vmatprep.subr.mxu0 0.0
    %2715 = vmatpush1.xpose.msra.mxu0 0.0
    %2716 = vmatprep.subr.mxu0 0.0
    %2717 = vmatpush1.xpose.msra.mxu0 0.0
    %2718 = vmatprep.subr.mxu0 0.0
    %2719 = vmatpush1.xpose.msra.mxu0 0.0
    %2720 = vmatprep.subr.mxu0 0.0
    %2721 = vmatpush1.xpose.msra.mxu0 0.0
    %2722 = vmatprep.subr.mxu0 0.0
    %2723 = vmatpush1.xpose.msra.mxu0 0.0
    %2724 = vmatprep.subr.mxu0 0.0
    %2725 = vmatpush1.xpose.msra.mxu0 0.0
    %2726 = vmatprep.subr.mxu0 0.0
    %2727 = vmatpush1.xpose.msra.mxu0 0.0
    %2728 = vmatprep.subr.mxu0 0.0
    %2729 = vmatpush1.xpose.msra.mxu0 0.0
    %2730 = vmatprep.subr.mxu0 0.0
    %2731 = vmatpush1.xpose.msra.mxu0 0.0
    %2732 = vmatprep.subr.mxu0 0.0
    %2733 = vmatpush1.xpose.msra.mxu0 0.0
    %2734 = vmatprep.mubr.f32.mxu0 0.0
    %2735 = vmatmul.mubr.f32.gmra.mrb[0].mxu0 %v2654
    %v2736 = vpop.f32.mrb[0].mxu0
    %v2737 = vadd.f32 0.0, %v2736
    %v2738 = vpop.f32.mrb[0].mxu0
    %2739 = vdwg.mxu0
    %2740 = vmatprep.subr.mxu0 0.0
    %2741 = vmatpush1.xpose.msra.mxu0 %v2668
    %2742 = vmatprep.subr.mxu0 0.0
    %2743 = vmatpush1.xpose.msra.mxu0 0.0
    %2744 = vmatprep.subr.mxu0 0.0
    %2745 = vmatpush1.xpose.msra.mxu0 0.0
    %2746 = vmatprep.subr.mxu0 0.0
    %2747 = vmatpush1.xpose.msra.mxu0 0.0
    %2748 = vmatprep.subr.mxu0 0.0
    %2749 = vmatpush1.xpose.msra.mxu0 0.0
    %2750 = vmatprep.subr.mxu0 0.0
    %2751 = vmatpush1.xpose.msra.mxu0 0.0
    %2752 = vmatprep.subr.mxu0 0.0
    %2753 = vmatpush1.xpose.msra.mxu0 0.0
    %2754 = vmatprep.subr.mxu0 0.0
    %2755 = vmatpush1.xpose.msra.mxu0 0.0
    %2756 = vmatprep.subr.mxu0 0.0
    %2757 = vmatpush1.xpose.msra.mxu0 0.0
    %2758 = vmatprep.subr.mxu0 0.0
    %2759 = vmatpush1.xpose.msra.mxu0 0.0
    %2760 = vmatprep.subr.mxu0 0.0
    %2761 = vmatpush1.xpose.msra.mxu0 0.0
    %2762 = vmatprep.subr.mxu0 0.0
    %2763 = vmatpush1.xpose.msra.mxu0 0.0
    %2764 = vmatprep.subr.mxu0 0.0
    %2765 = vmatpush1.xpose.msra.mxu0 0.0
    %2766 = vmatprep.subr.mxu0 0.0
    %2767 = vmatpush1.xpose.msra.mxu0 0.0
    %2768 = vmatprep.subr.mxu0 0.0
    %2769 = vmatpush1.xpose.msra.mxu0 0.0
    %2770 = vmatprep.subr.mxu0 0.0
    %2771 = vmatpush1.xpose.msra.mxu0 0.0
    %2772 = vmatprep.subr.mxu0 0.0
    %2773 = vmatpush1.xpose.msra.mxu0 0.0
    %2774 = vmatprep.subr.mxu0 0.0
    %2775 = vmatpush1.xpose.msra.mxu0 0.0
    %2776 = vmatprep.subr.mxu0 0.0
    %2777 = vmatpush1.xpose.msra.mxu0 0.0
    %2778 = vmatprep.subr.mxu0 0.0
    %2779 = vmatpush1.xpose.msra.mxu0 0.0
    %2780 = vmatprep.subr.mxu0 0.0
    %2781 = vmatpush1.xpose.msra.mxu0 0.0
    %2782 = vmatprep.subr.mxu0 0.0
    %2783 = vmatpush1.xpose.msra.mxu0 0.0
    %2784 = vmatprep.subr.mxu0 0.0
    %2785 = vmatpush1.xpose.msra.mxu0 0.0
    %2786 = vmatprep.subr.mxu0 0.0
    %2787 = vmatpush1.xpose.msra.mxu0 0.0
    %2788 = vmatprep.subr.mxu0 0.0
    %2789 = vmatpush1.xpose.msra.mxu0 0.0
    %2790 = vmatprep.subr.mxu0 0.0
    %2791 = vmatpush1.xpose.msra.mxu0 0.0
    %2792 = vmatprep.subr.mxu0 0.0
    %2793 = vmatpush1.xpose.msra.mxu0 0.0
    %2794 = vmatprep.subr.mxu0 0.0
    %2795 = vmatpush1.xpose.msra.mxu0 0.0
    %2796 = vmatprep.subr.mxu0 0.0
    %2797 = vmatpush1.xpose.msra.mxu0 0.0
    %2798 = vmatprep.subr.mxu0 0.0
    %2799 = vmatpush1.xpose.msra.mxu0 0.0
    %2800 = vmatprep.subr.mxu0 0.0
    %2801 = vmatpush1.xpose.msra.mxu0 0.0
    %2802 = vmatprep.subr.mxu0 0.0
    %2803 = vmatpush1.xpose.msra.mxu0 0.0
    %2804 = vmatprep.mubr.f32.mxu0 0.0
    %2805 = vmatmul.mubr.f32.gmra.mrb[0].mxu0 %v2656
    %v2806 = vpop.f32.mrb[0].mxu0
    %v2807 = vadd.f32 0.0, %v2806
    %v2808 = vpop.f32.mrb[0].mxu0
    %2809 = vdwg.mxu0
    %v2810 = vmul.f32 %v2737, 0.14433756
    %v2811 = vmul.f32 %v2807, 0.14433756
    %v2812 = vsel %vm1057, %v2810, -inf
    %v2813 = vsel %vm1057, %v2811, -inf
    %v2814 = vsel %vm1060, %v2812, -inf
    %2815 = vmax.xlane.f32.xlu0 %v2814
    %v2816 = vpop.xlane.xlu0 %2815
    %v2817 = vsel %vm1060, %v2813, -inf
    %2818 = vmax.xlane.f32.xlu0 %v2817
    %v2819 = vpop.xlane.xlu0 %2818
    %v2820 = vsub.f32 %v2812, %v2816
    %v2821 = vsub.f32 %v2813, %v2819
    %v2822 = vmul.f32 %v2820, 1.442695
    %v2823 = vpow.pop %v2822
    %v2824 = vmul.f32 %v2821, 1.442695
    %v2825 = vpow.pop %v2824
    %v2826 = vsel %vm1060, %v2823, 0.0
    %2827 = vadd.xlane.f32.xlu0 %v2826
    %v2828 = vpop.xlane.xlu0 %2827
    %v2829 = vsel %vm1060, %v2825, 0.0
    %2830 = vadd.xlane.f32.xlu0 %v2829
    %v2831 = vpop.xlane.xlu0 %2830
    %v2832 = vrcp.pop %v2828
    %v2833 = vrcp.pop %v2831
    %v2834 = vmul.f32 %v2823, %v2832
    %v2835 = vmul.f32 %v2825, %v2833
    %v2837 = vsel %vm1060, %v2834, 0
    %2839 = vmatprep.subr.mxu0 0.0
    %2840 = vmatpush1.msra.mxu0 %v2482
    %2841 = vmatprep.subr.mxu0 0.0
    %2842 = vmatpush1.msra.mxu0 0.0
    %2843 = vmatprep.subr.mxu0 0.0
    %2844 = vmatpush1.msra.mxu0 0.0
    %2845 = vmatprep.subr.mxu0 0.0
    %2846 = vmatpush1.msra.mxu0 0.0
    %2847 = vmatprep.subr.mxu0 0.0
    %2848 = vmatpush1.msra.mxu0 0.0
    %2849 = vmatprep.subr.mxu0 0.0
    %2850 = vmatpush1.msra.mxu0 0.0
    %2851 = vmatprep.subr.mxu0 0.0
    %2852 = vmatpush1.msra.mxu0 0.0
    %2853 = vmatprep.subr.mxu0 0.0
    %2854 = vmatpush1.msra.mxu0 0.0
    %2855 = vmatprep.subr.mxu0 0.0
    %2856 = vmatpush1.msra.mxu0 0.0
    %2857 = vmatprep.subr.mxu0 0.0
    %2858 = vmatpush1.msra.mxu0 0.0
    %2859 = vmatprep.subr.mxu0 0.0
    %2860 = vmatpush1.msra.mxu0 0.0
    %2861 = vmatprep.subr.mxu0 0.0
    %2862 = vmatpush1.msra.mxu0 0.0
    %2863 = vmatprep.subr.mxu0 0.0
    %2864 = vmatpush1.msra.mxu0 0.0
    %2865 = vmatprep.subr.mxu0 0.0
    %2866 = vmatpush1.msra.mxu0 0.0
    %2867 = vmatprep.subr.mxu0 0.0
    %2868 = vmatpush1.msra.mxu0 0.0
    %2869 = vmatprep.subr.mxu0 0.0
    %2870 = vmatpush1.msra.mxu0 0.0
    %2871 = vmatprep.subr.mxu0 0.0
    %2872 = vmatpush1.msra.mxu0 0.0
    %2873 = vmatprep.subr.mxu0 0.0
    %2874 = vmatpush1.msra.mxu0 0.0
    %2875 = vmatprep.subr.mxu0 0.0
    %2876 = vmatpush1.msra.mxu0 0.0
    %2877 = vmatprep.subr.mxu0 0.0
    %2878 = vmatpush1.msra.mxu0 0.0
    %2879 = vmatprep.subr.mxu0 0.0
    %2880 = vmatpush1.msra.mxu0 0.0
    %2881 = vmatprep.subr.mxu0 0.0
    %2882 = vmatpush1.msra.mxu0 0.0
    %2883 = vmatprep.subr.mxu0 0.0
    %2884 = vmatpush1.msra.mxu0 0.0
    %2885 = vmatprep.subr.mxu0 0.0
    %2886 = vmatpush1.msra.mxu0 0.0
    %2887 = vmatprep.subr.mxu0 0.0
    %2888 = vmatpush1.msra.mxu0 0.0
    %2889 = vmatprep.subr.mxu0 0.0
    %2890 = vmatpush1.msra.mxu0 0.0
    %2891 = vmatprep.subr.mxu0 0.0
    %2892 = vmatpush1.msra.mxu0 0.0
    %2893 = vmatprep.subr.mxu0 0.0
    %2894 = vmatpush1.msra.mxu0 0.0
    %2895 = vmatprep.subr.mxu0 0.0
    %2896 = vmatpush1.msra.mxu0 0.0
    %2897 = vmatprep.subr.mxu0 0.0
    %2898 = vmatpush1.msra.mxu0 0.0
    %2899 = vmatprep.subr.mxu0 0.0
    %2900 = vmatpush1.msra.mxu0 0.0
    %2901 = vmatprep.subr.mxu0 0.0
    %2902 = vmatpush1.msra.mxu0 0.0
    %2903 = vmatprep.mubr.f32.mxu0 0.0
    %2904 = vmatmul.mubr.f32.gmra.mrb[0].mxu0 %v2837
    %v2905 = vpop.f32.mrb[0].mxu0
    %v2906 = vadd.f32 0.0, %v2905
    %v2907 = vpop.f32.mrb[0].mxu0
    %2908 = vdwg.mxu0
    %v2910 = vsel %vm1060, %v2835, 0
    %2912 = vmatprep.subr.mxu0 0.0
    %2913 = vmatpush1.msra.mxu0 %v2488
    %2914 = vmatprep.subr.mxu0 0.0
    %2915 = vmatpush1.msra.mxu0 0.0
    %2916 = vmatprep.subr.mxu0 0.0
    %2917 = vmatpush1.msra.mxu0 0.0
    %2918 = vmatprep.subr.mxu0 0.0
    %2919 = vmatpush1.msra.mxu0 0.0
    %2920 = vmatprep.subr.mxu0 0.0
    %2921 = vmatpush1.msra.mxu0 0.0
    %2922 = vmatprep.subr.mxu0 0.0
    %2923 = vmatpush1.msra.mxu0 0.0
    %2924 = vmatprep.subr.mxu0 0.0
    %2925 = vmatpush1.msra.mxu0 0.0
    %2926 = vmatprep.subr.mxu0 0.0
    %2927 = vmatpush1.msra.mxu0 0.0
    %2928 = vmatprep.subr.mxu0 0.0
    %2929 = vmatpush1.msra.mxu0 0.0
    %2930 = vmatprep.subr.mxu0 0.0
    %2931 = vmatpush1.msra.mxu0 0.0
    %2932 = vmatprep.subr.mxu0 0.0
    %2933 = vmatpush1.msra.mxu0 0.0
    %2934 = vmatprep.subr.mxu0 0.0
    %2935 = vmatpush1.msra.mxu0 0.0
    %2936 = vmatprep.subr.mxu0 0.0
    %2937 = vmatpush1.msra.mxu0 0.0
    %2938 = vmatprep.subr.mxu0 0.0
    %2939 = vmatpush1.msra.mxu0 0.0
    %2940 = vmatprep.subr.mxu0 0.0
    %2941 = vmatpush1.msra.mxu0 0.0
    %2942 = vmatprep.subr.mxu0 0.0
    %2943 = vmatpush1.msra.mxu0 0.0
    %2944 = vmatprep.subr.mxu0 0.0
    %2945 = vmatpush1.msra.mxu0 0.0
    %2946 = vmatprep.subr.mxu0 0.0
    %2947 = vmatpush1.msra.mxu0 0.0
    %2948 = vmatprep.subr.mxu0 0.0
    %2949 = vmatpush1.msra.mxu0 0.0
    %2950 = vmatprep.subr.mxu0 0.0
    %2951 = vmatpush1.msra.mxu0 0.0
    %2952 = vmatprep.subr.mxu0 0.0
    %2953 = vmatpush1.msra.mxu0 0.0
    %2954 = vmatprep.subr.mxu0 0.0
    %2955 = vmatpush1.msra.mxu0 0.0
    %2956 = vmatprep.subr.mxu0 0.0
    %2957 = vmatpush1.msra.mxu0 0.0
    %2958 = vmatprep.subr.mxu0 0.0
    %2959 = vmatpush1.msra.mxu0 0.0
    %2960 = vmatprep.subr.mxu0 0.0
    %2961 = vmatpush1.msra.mxu0 0.0
    %2962 = vmatprep.subr.mxu0 0.0
    %2963 = vmatpush1.msra.mxu0 0.0
    %2964 = vmatprep.subr.mxu0 0.0
    %2965 = vmatpush1.msra.mxu0 0.0
    %2966 = vmatprep.subr.mxu0 0.0
    %2967 = vmatpush1.msra.mxu0 0.0
    %2968 = vmatprep.subr.mxu0 0.0
    %2969 = vmatpush1.msra.mxu0 0.0
    %2970 = vmatprep.subr.mxu0 0.0
    %2971 = vmatpush1.msra.mxu0 0.0
    %2972 = vmatprep.subr.mxu0 0.0
    %2973 = vmatpush1.msra.mxu0 0.0
    %2974 = vmatprep.subr.mxu0 0.0
    %2975 = vmatpush1.msra.mxu0 0.0
    %2976 = vmatprep.mubr.f32.mxu0 0.0
    %2977 = vmatmul.mubr.f32.gmra.mrb[0].mxu0 %v2910
    %v2978 = vpop.f32.mrb[0].mxu0
    %v2979 = vadd.f32 0.0, %v2978
    %v2980 = vpop.f32.mrb[0].mxu0
    %2981 = vdwg.mxu0
    %2982 = vmatprep.subr.mxu0 0.0
    %2983 = vmatpush1.xpose.msra.mxu0 %v2667
    %2984 = vmatprep.subr.mxu0 0.0
    %2985 = vmatpush1.xpose.msra.mxu0 0.0
    %2986 = vmatprep.subr.mxu0 0.0
    %2987 = vmatpush1.xpose.msra.mxu0 0.0
    %2988 = vmatprep.subr.mxu0 0.0
    %2989 = vmatpush1.xpose.msra.mxu0 0.0
    %2990 = vmatprep.subr.mxu0 0.0
    %2991 = vmatpush1.xpose.msra.mxu0 0.0
    %2992 = vmatprep.subr.mxu0 0.0
    %2993 = vmatpush1.xpose.msra.mxu0 0.0
    %2994 = vmatprep.subr.mxu0 0.0
    %2995 = vmatpush1.xpose.msra.mxu0 0.0
    %2996 = vmatprep.subr.mxu0 0.0
    %2997 = vmatpush1.xpose.msra.mxu0 0.0
    %2998 = vmatprep.subr.mxu0 0.0
    %2999 = vmatpush1.xpose.msra.mxu0 0.0
    %3000 = vmatprep.subr.mxu0 0.0
    %3001 = vmatpush1.xpose.msra.mxu0 0.0
    %3002 = vmatprep.subr.mxu0 0.0
    %3003 = vmatpush1.xpose.msra.mxu0 0.0
    %3004 = vmatprep.subr.mxu0 0.0
    %3005 = vmatpush1.xpose.msra.mxu0 0.0
    %3006 = vmatprep.subr.mxu0 0.0
    %3007 = vmatpush1.xpose.msra.mxu0 0.0
    %3008 = vmatprep.subr.mxu0 0.0
    %3009 = vmatpush1.xpose.msra.mxu0 0.0
    %3010 = vmatprep.subr.mxu0 0.0
    %3011 = vmatpush1.xpose.msra.mxu0 0.0
    %3012 = vmatprep.subr.mxu0 0.0
    %3013 = vmatpush1.xpose.msra.mxu0 0.0
    %3014 = vmatprep.subr.mxu0 0.0
    %3015 = vmatpush1.xpose.msra.mxu0 0.0
    %3016 = vmatprep.subr.mxu0 0.0
    %3017 = vmatpush1.xpose.msra.mxu0 0.0
    %3018 = vmatprep.subr.mxu0 0.0
    %3019 = vmatpush1.xpose.msra.mxu0 0.0
    %3020 = vmatprep.subr.mxu0 0.0
    %3021 = vmatpush1.xpose.msra.mxu0 0.0
    %3022 = vmatprep.subr.mxu0 0.0
    %3023 = vmatpush1.xpose.msra.mxu0 0.0
    %3024 = vmatprep.subr.mxu0 0.0
    %3025 = vmatpush1.xpose.msra.mxu0 0.0
    %3026 = vmatprep.subr.mxu0 0.0
    %3027 = vmatpush1.xpose.msra.mxu0 0.0
    %3028 = vmatprep.subr.mxu0 0.0
    %3029 = vmatpush1.xpose.msra.mxu0 0.0
    %3030 = vmatprep.subr.mxu0 0.0
    %3031 = vmatpush1.xpose.msra.mxu0 0.0
    %3032 = vmatprep.subr.mxu0 0.0
    %3033 = vmatpush1.xpose.msra.mxu0 0.0
    %3034 = vmatprep.subr.mxu0 0.0
    %3035 = vmatpush1.xpose.msra.mxu0 0.0
    %3036 = vmatprep.subr.mxu0 0.0
    %3037 = vmatpush1.xpose.msra.mxu0 0.0
    %3038 = vmatprep.subr.mxu0 0.0
    %3039 = vmatpush1.xpose.msra.mxu0 0.0
    %3040 = vmatprep.subr.mxu0 0.0
    %3041 = vmatpush1.xpose.msra.mxu0 0.0
    %3042 = vmatprep.subr.mxu0 0.0
    %3043 = vmatpush1.xpose.msra.mxu0 0.0
    %3044 = vmatprep.subr.mxu0 0.0
    %3045 = vmatpush1.xpose.msra.mxu0 0.0
    %3046 = vmatprep.mubr.f32.mxu0 0.0
    %3047 = vmatmul.mubr.f32.gmra.mrb[0].mxu0 %v2655
    %v3048 = vpop.f32.mrb[0].mxu0
    %v3049 = vadd.f32 0.0, %v3048
    %v3050 = vpop.f32.mrb[0].mxu0
    %3051 = vdwg.mxu0
    %3052 = vmatprep.subr.mxu0 0.0
    %3053 = vmatpush1.xpose.msra.mxu0 %v2669
    %3054 = vmatprep.subr.mxu0 0.0
    %3055 = vmatpush1.xpose.msra.mxu0 0.0
    %3056 = vmatprep.subr.mxu0 0.0
    %3057 = vmatpush1.xpose.msra.mxu0 0.0
    %3058 = vmatprep.subr.mxu0 0.0
    %3059 = vmatpush1.xpose.msra.mxu0 0.0
    %3060 = vmatprep.subr.mxu0 0.0
    %3061 = vmatpush1.xpose.msra.mxu0 0.0
    %3062 = vmatprep.subr.mxu0 0.0
    %3063 = vmatpush1.xpose.msra.mxu0 0.0
    %3064 = vmatprep.subr.mxu0 0.0
    %3065 = vmatpush1.xpose.msra.mxu0 0.0
    %3066 = vmatprep.subr.mxu0 0.0
    %3067 = vmatpush1.xpose.msra.mxu0 0.0
    %3068 = vmatprep.subr.mxu0 0.0
    %3069 = vmatpush1.xpose.msra.mxu0 0.0
    %3070 = vmatprep.subr.mxu0 0.0
    %3071 = vmatpush1.xpose.msra.mxu0 0.0
    %3072 = vmatprep.subr.mxu0 0.0
    %3073 = vmatpush1.xpose.msra.mxu0 0.0
    %3074 = vmatprep.subr.mxu0 0.0
    %3075 = vmatpush1.xpose.msra.mxu0 0.0
    %3076 = vmatprep.subr.mxu0 0.0
    %3077 = vmatpush1.xpose.msra.mxu0 0.0
    %3078 = vmatprep.subr.mxu0 0.0
    %3079 = vmatpush1.xpose.msra.mxu0 0.0
    %3080 = vmatprep.subr.mxu0 0.0
    %3081 = vmatpush1.xpose.msra.mxu0 0.0
    %3082 = vmatprep.subr.mxu0 0.0
    %3083 = vmatpush1.xpose.msra.mxu0 0.0
    %3084 = vmatprep.subr.mxu0 0.0
    %3085 = vmatpush1.xpose.msra.mxu0 0.0
    %3086 = vmatprep.subr.mxu0 0.0
    %3087 = vmatpush1.xpose.msra.mxu0 0.0
    %3088 = vmatprep.subr.mxu0 0.0
    %3089 = vmatpush1.xpose.msra.mxu0 0.0
    %3090 = vmatprep.subr.mxu0 0.0
    %3091 = vmatpush1.xpose.msra.mxu0 0.0
    %3092 = vmatprep.subr.mxu0 0.0
    %3093 = vmatpush1.xpose.msra.mxu0 0.0
    %3094 = vmatprep.subr.mxu0 0.0
    %3095 = vmatpush1.xpose.msra.mxu0 0.0
    %3096 = vmatprep.subr.mxu0 0.0
    %3097 = vmatpush1.xpose.msra.mxu0 0.0
    %3098 = vmatprep.subr.mxu0 0.0
    %3099 = vmatpush1.xpose.msra.mxu0 0.0
    %3100 = vmatprep.subr.mxu0 0.0
    %3101 = vmatpush1.xpose.msra.mxu0 0.0
    %3102 = vmatprep.subr.mxu0 0.0
    %3103 = vmatpush1.xpose.msra.mxu0 0.0
    %3104 = vmatprep.subr.mxu0 0.0
    %3105 = vmatpush1.xpose.msra.mxu0 0.0
    %3106 = vmatprep.subr.mxu0 0.0
    %3107 = vmatpush1.xpose.msra.mxu0 0.0
    %3108 = vmatprep.subr.mxu0 0.0
    %3109 = vmatpush1.xpose.msra.mxu0 0.0
    %3110 = vmatprep.subr.mxu0 0.0
    %3111 = vmatpush1.xpose.msra.mxu0 0.0
    %3112 = vmatprep.subr.mxu0 0.0
    %3113 = vmatpush1.xpose.msra.mxu0 0.0
    %3114 = vmatprep.subr.mxu0 0.0
    %3115 = vmatpush1.xpose.msra.mxu0 0.0
    %3116 = vmatprep.mubr.f32.mxu0 0.0
    %3117 = vmatmul.mubr.f32.gmra.mrb[0].mxu0 %v2657
    %v3118 = vpop.f32.mrb[0].mxu0
    %v3119 = vadd.f32 0.0, %v3118
    %v3120 = vpop.f32.mrb[0].mxu0
    %3121 = vdwg.mxu0
    %v3122 = vmul.f32 %v3049, 0.14433756
    %v3123 = vmul.f32 %v3119, 0.14433756
    %v3124 = vsel %vm1057, %v3122, -inf
    %v3125 = vsel %vm1057, %v3123, -inf
    %v3126 = vsel %vm1060, %v3124, -inf
    %3127 = vmax.xlane.f32.xlu0 %v3126
    %v3128 = vpop.xlane.xlu0 %3127
    %v3129 = vsel %vm1060, %v3125, -inf
    %3130 = vmax.xlane.f32.xlu0 %v3129
    %v3131 = vpop.xlane.xlu0 %3130
    %v3132 = vsub.f32 %v3124, %v3128
    %v3133 = vsub.f32 %v3125, %v3131
    %v3134 = vmul.f32 %v3132, 1.442695
    %v3135 = vpow.pop %v3134
    %v3136 = vmul.f32 %v3133, 1.442695
    %v3137 = vpow.pop %v3136
    %v3138 = vsel %vm1060, %v3135, 0.0
    %3139 = vadd.xlane.f32.xlu0 %v3138
    %v3140 = vpop.xlane.xlu0 %3139
    %v3141 = vsel %vm1060, %v3137, 0.0
    %3142 = vadd.xlane.f32.xlu0 %v3141
    %v3143 = vpop.xlane.xlu0 %3142
    %v3144 = vrcp.pop %v3140
    %v3145 = vrcp.pop %v3143
    %v3146 = vmul.f32 %v3135, %v3144
    %v3147 = vmul.f32 %v3137, %v3145
    %v3149 = vsel %vm1060, %v3146, 0
    %3151 = vmatprep.subr.mxu0 0.0
    %3152 = vmatpush1.msra.mxu0 %v2484
    %3153 = vmatprep.subr.mxu0 0.0
    %3154 = vmatpush1.msra.mxu0 0.0
    %3155 = vmatprep.subr.mxu0 0.0
    %3156 = vmatpush1.msra.mxu0 0.0
    %3157 = vmatprep.subr.mxu0 0.0
    %3158 = vmatpush1.msra.mxu0 0.0
    %3159 = vmatprep.subr.mxu0 0.0
    %3160 = vmatpush1.msra.mxu0 0.0
    %3161 = vmatprep.subr.mxu0 0.0
    %3162 = vmatpush1.msra.mxu0 0.0
    %3163 = vmatprep.subr.mxu0 0.0
    %3164 = vmatpush1.msra.mxu0 0.0
    %3165 = vmatprep.subr.mxu0 0.0
    %3166 = vmatpush1.msra.mxu0 0.0
    %3167 = vmatprep.subr.mxu0 0.0
    %3168 = vmatpush1.msra.mxu0 0.0
    %3169 = vmatprep.subr.mxu0 0.0
    %3170 = vmatpush1.msra.mxu0 0.0
    %3171 = vmatprep.subr.mxu0 0.0
    %3172 = vmatpush1.msra.mxu0 0.0
    %3173 = vmatprep.subr.mxu0 0.0
    %3174 = vmatpush1.msra.mxu0 0.0
    %3175 = vmatprep.subr.mxu0 0.0
    %3176 = vmatpush1.msra.mxu0 0.0
    %3177 = vmatprep.subr.mxu0 0.0
    %3178 = vmatpush1.msra.mxu0 0.0
    %3179 = vmatprep.subr.mxu0 0.0
    %3180 = vmatpush1.msra.mxu0 0.0
    %3181 = vmatprep.subr.mxu0 0.0
    %3182 = vmatpush1.msra.mxu0 0.0
    %3183 = vmatprep.subr.mxu0 0.0
    %3184 = vmatpush1.msra.mxu0 0.0
    %3185 = vmatprep.subr.mxu0 0.0
    %3186 = vmatpush1.msra.mxu0 0.0
    %3187 = vmatprep.subr.mxu0 0.0
    %3188 = vmatpush1.msra.mxu0 0.0
    %3189 = vmatprep.subr.mxu0 0.0
    %3190 = vmatpush1.msra.mxu0 0.0
    %3191 = vmatprep.subr.mxu0 0.0
    %3192 = vmatpush1.msra.mxu0 0.0
    %3193 = vmatprep.subr.mxu0 0.0
    %3194 = vmatpush1.msra.mxu0 0.0
    %3195 = vmatprep.subr.mxu0 0.0
    %3196 = vmatpush1.msra.mxu0 0.0
    %3197 = vmatprep.subr.mxu0 0.0
    %3198 = vmatpush1.msra.mxu0 0.0
    %3199 = vmatprep.subr.mxu0 0.0
    %3200 = vmatpush1.msra.mxu0 0.0
    %3201 = vmatprep.subr.mxu0 0.0
    %3202 = vmatpush1.msra.mxu0 0.0
    %3203 = vmatprep.subr.mxu0 0.0
    %3204 = vmatpush1.msra.mxu0 0.0
    %3205 = vmatprep.subr.mxu0 0.0
    %3206 = vmatpush1.msra.mxu0 0.0
    %3207 = vmatprep.subr.mxu0 0.0
    %3208 = vmatpush1.msra.mxu0 0.0
    %3209 = vmatprep.subr.mxu0 0.0
    %3210 = vmatpush1.msra.mxu0 0.0
    %3211 = vmatprep.subr.mxu0 0.0
    %3212 = vmatpush1.msra.mxu0 0.0
    %3213 = vmatprep.subr.mxu0 0.0
    %3214 = vmatpush1.msra.mxu0 0.0
    %3215 = vmatprep.mubr.f32.mxu0 0.0
    %3216 = vmatmul.mubr.f32.gmra.mrb[0].mxu0 %v3149
    %v3217 = vpop.f32.mrb[0].mxu0
    %v3218 = vadd.f32 0.0, %v3217
    %v3219 = vpop.f32.mrb[0].mxu0
    %3220 = vdwg.mxu0
    %v3222 = vsel %vm1060, %v3147, 0
    %3224 = vmatprep.subr.mxu0 0.0
    %3225 = vmatpush1.msra.mxu0 %v2490
    %3226 = vmatprep.subr.mxu0 0.0
    %3227 = vmatpush1.msra.mxu0 0.0
    %3228 = vmatprep.subr.mxu0 0.0
    %3229 = vmatpush1.msra.mxu0 0.0
    %3230 = vmatprep.subr.mxu0 0.0
    %3231 = vmatpush1.msra.mxu0 0.0
    %3232 = vmatprep.subr.mxu0 0.0
    %3233 = vmatpush1.msra.mxu0 0.0
    %3234 = vmatprep.subr.mxu0 0.0
    %3235 = vmatpush1.msra.mxu0 0.0
    %3236 = vmatprep.subr.mxu0 0.0
    %3237 = vmatpush1.msra.mxu0 0.0
    %3238 = vmatprep.subr.mxu0 0.0
    %3239 = vmatpush1.msra.mxu0 0.0
    %3240 = vmatprep.subr.mxu0 0.0
    %3241 = vmatpush1.msra.mxu0 0.0
    %3242 = vmatprep.subr.mxu0 0.0
    %3243 = vmatpush1.msra.mxu0 0.0
    %3244 = vmatprep.subr.mxu0 0.0
    %3245 = vmatpush1.msra.mxu0 0.0
    %3246 = vmatprep.subr.mxu0 0.0
    %3247 = vmatpush1.msra.mxu0 0.0
    %3248 = vmatprep.subr.mxu0 0.0
    %3249 = vmatpush1.msra.mxu0 0.0
    %3250 = vmatprep.subr.mxu0 0.0
    %3251 = vmatpush1.msra.mxu0 0.0
    %3252 = vmatprep.subr.mxu0 0.0
    %3253 = vmatpush1.msra.mxu0 0.0
    %3254 = vmatprep.subr.mxu0 0.0
    %3255 = vmatpush1.msra.mxu0 0.0
    %3256 = vmatprep.subr.mxu0 0.0
    %3257 = vmatpush1.msra.mxu0 0.0
    %3258 = vmatprep.subr.mxu0 0.0
    %3259 = vmatpush1.msra.mxu0 0.0
    %3260 = vmatprep.subr.mxu0 0.0
    %3261 = vmatpush1.msra.mxu0 0.0
    %3262 = vmatprep.subr.mxu0 0.0
    %3263 = vmatpush1.msra.mxu0 0.0
    %3264 = vmatprep.subr.mxu0 0.0
    %3265 = vmatpush1.msra.mxu0 0.0
    %3266 = vmatprep.subr.mxu0 0.0
    %3267 = vmatpush1.msra.mxu0 0.0
    %3268 = vmatprep.subr.mxu0 0.0
    %3269 = vmatpush1.msra.mxu0 0.0
    %3270 = vmatprep.subr.mxu0 0.0
    %3271 = vmatpush1.msra.mxu0 0.0
    %3272 = vmatprep.subr.mxu0 0.0
    %3273 = vmatpush1.msra.mxu0 0.0
    %3274 = vmatprep.subr.mxu0 0.0
    %3275 = vmatpush1.msra.mxu0 0.0
    %3276 = vmatprep.subr.mxu0 0.0
    %3277 = vmatpush1.msra.mxu0 0.0
    %3278 = vmatprep.subr.mxu0 0.0
    %3279 = vmatpush1.msra.mxu0 0.0
    %3280 = vmatprep.subr.mxu0 0.0
    %3281 = vmatpush1.msra.mxu0 0.0
    %3282 = vmatprep.subr.mxu0 0.0
    %3283 = vmatpush1.msra.mxu0 0.0
    %3284 = vmatprep.subr.mxu0 0.0
    %3285 = vmatpush1.msra.mxu0 0.0
    %3286 = vmatprep.subr.mxu0 0.0
    %3287 = vmatpush1.msra.mxu0 0.0
    %3288 = vmatprep.mubr.f32.mxu0 0.0
    %3289 = vmatmul.mubr.f32.gmra.mrb[0].mxu0 %v3222
    %v3290 = vpop.f32.mrb[0].mxu0
    %v3291 = vadd.f32 0.0, %v3290
    %v3292 = vpop.f32.mrb[0].mxu0
    %3293 = vdwg.mxu0
    %s3294 = scalar_lea.vmem [#allocation10], 256
    %v3295 = vld [vmem:[%s3294] sm:$0xff]
    %v3296 = vld [vmem:[%s3294 + $0x8] sm:$0xff]
    %v3297 = vld [vmem:[%s3294 + $0x10] sm:$0xff]
    %v3298 = vld [vmem:[%s3294 + $0x18] sm:$0xff]
    %v3299 = vld [vmem:[%s3294 + $0x20] sm:$0xff]
    %v3300 = vld [vmem:[%s3294 + $0x28] sm:$0xff]
    %v3301 = vld [vmem:[%s3294 + $0x30] sm:$0xff]
    %v3302 = vld [vmem:[%s3294 + $0x38] sm:$0xff]
    %v3303 = vld [vmem:[%s3294 + $0x40] sm:$0xff]
    %v3304 = vld [vmem:[%s3294 + $0x48] sm:$0xff]
    %v3305 = vld [vmem:[%s3294 + $0x50] sm:$0xff]
    %v3306 = vld [vmem:[%s3294 + $0x58] sm:$0xff]
    %v3307 = vld [vmem:[%s3294 + $0x60] sm:$0xff]
    %v3308 = vld [vmem:[%s3294 + $0x68] sm:$0xff]
    %v3309 = vld [vmem:[%s3294 + $0x70] sm:$0xff]
    %v3310 = vld [vmem:[%s3294 + $0x78] sm:$0xff]
    %v3311 = vld [vmem:[%s3294 + $0x80] sm:$0xff]
    %v3312 = vld [vmem:[%s3294 + $0x88] sm:$0xff]
    %v3313 = vld [vmem:[%s3294 + $0x90] sm:$0xff]
    %v3314 = vld [vmem:[%s3294 + $0x98] sm:$0xff]
    %v3315 = vld [vmem:[%s3294 + $0xa0] sm:$0xff]
    %v3316 = vld [vmem:[%s3294 + $0xa8] sm:$0xff]
    %v3317 = vld [vmem:[%s3294 + $0xb0] sm:$0xff]
    %v3318 = vld [vmem:[%s3294 + $0xb8] sm:$0xff]
    %v3319 = vld [vmem:[%s3294 + $0xc0] sm:$0xff]
    %v3320 = vld [vmem:[%s3294 + $0xc8] sm:$0xff]
    %v3321 = vld [vmem:[%s3294 + $0xd0] sm:$0xff]
    %v3322 = vld [vmem:[%s3294 + $0xd8] sm:$0xff]
    %v3323 = vld [vmem:[%s3294 + $0xe0] sm:$0xff]
    %v3324 = vld [vmem:[%s3294 + $0xe8] sm:$0xff]
    %v3325 = vld [vmem:[%s3294 + $0xf0] sm:$0xff]
    %v3326 = vld [vmem:[%s3294 + $0xf8] sm:$0xff]
    %3327 = vmatprep.subr.mxu0 0.0
    %3328 = vmatpush1.msra.mxu0 %v3295
    %3329 = vmatprep.subr.mxu0 0.0
    %3330 = vmatpush1.msra.mxu0 %v3296
    %3331 = vmatprep.subr.mxu0 0.0
    %3332 = vmatpush1.msra.mxu0 %v3297
    %3333 = vmatprep.subr.mxu0 0.0
    %3334 = vmatpush1.msra.mxu0 %v3298
    %3335 = vmatprep.subr.mxu0 0.0
    %3336 = vmatpush1.msra.mxu0 %v3299
    %3337 = vmatprep.subr.mxu0 0.0
    %3338 = vmatpush1.msra.mxu0 %v3300
    %3339 = vmatprep.subr.mxu0 0.0
    %3340 = vmatpush1.msra.mxu0 %v3301
    %3341 = vmatprep.subr.mxu0 0.0
    %3342 = vmatpush1.msra.mxu0 %v3302
    %3343 = vmatprep.subr.mxu0 0.0
    %3344 = vmatpush1.msra.mxu0 %v3303
    %3345 = vmatprep.subr.mxu0 0.0
    %3346 = vmatpush1.msra.mxu0 %v3304
    %3347 = vmatprep.subr.mxu0 0.0
    %3348 = vmatpush1.msra.mxu0 %v3305
    %3349 = vmatprep.subr.mxu0 0.0
    %3350 = vmatpush1.msra.mxu0 %v3306
    %3351 = vmatprep.subr.mxu0 0.0
    %3352 = vmatpush1.msra.mxu0 %v3307
    %3353 = vmatprep.subr.mxu0 0.0
    %3354 = vmatpush1.msra.mxu0 %v3308
    %3355 = vmatprep.subr.mxu0 0.0
    %3356 = vmatpush1.msra.mxu0 %v3309
    %3357 = vmatprep.subr.mxu0 0.0
    %3358 = vmatpush1.msra.mxu0 %v3310
    %3359 = vmatprep.subr.mxu0 0.0
    %3360 = vmatpush1.msra.mxu0 %v3311
    %3361 = vmatprep.subr.mxu0 0.0
    %3362 = vmatpush1.msra.mxu0 %v3312
    %3363 = vmatprep.subr.mxu0 0.0
    %3364 = vmatpush1.msra.mxu0 %v3313
    %3365 = vmatprep.subr.mxu0 0.0
    %3366 = vmatpush1.msra.mxu0 %v3314
    %3367 = vmatprep.subr.mxu0 0.0
    %3368 = vmatpush1.msra.mxu0 %v3315
    %3369 = vmatprep.subr.mxu0 0.0
    %3370 = vmatpush1.msra.mxu0 %v3316
    %3371 = vmatprep.subr.mxu0 0.0
    %3372 = vmatpush1.msra.mxu0 %v3317
    %3373 = vmatprep.subr.mxu0 0.0
    %3374 = vmatpush1.msra.mxu0 %v3318
    %3375 = vmatprep.subr.mxu0 0.0
    %3376 = vmatpush1.msra.mxu0 %v3319
    %3377 = vmatprep.subr.mxu0 0.0
    %3378 = vmatpush1.msra.mxu0 %v3320
    %3379 = vmatprep.subr.mxu0 0.0
    %3380 = vmatpush1.msra.mxu0 %v3321
    %3381 = vmatprep.subr.mxu0 0.0
    %3382 = vmatpush1.msra.mxu0 %v3322
    %3383 = vmatprep.subr.mxu0 0.0
    %3384 = vmatpush1.msra.mxu0 %v3323
    %3385 = vmatprep.subr.mxu0 0.0
    %3386 = vmatpush1.msra.mxu0 %v3324
    %3387 = vmatprep.subr.mxu0 0.0
    %3388 = vmatpush1.msra.mxu0 %v3325
    %3389 = vmatprep.subr.mxu0 0.0
    %3390 = vmatpush1.msra.mxu0 %v3326
    %3391 = vmatprep.mubr.f32.mxu0 %v3218
    %3392 = vmatmul.mubr.f32.gmra.mrb[0].mxu0 %v2906
    %v3393 = vpop.f32.mrb[0].mxu0
    %v3394 = vadd.f32 0.0, %v3393
    %v3395 = vpop.f32.mrb[0].mxu0
    %3396 = vmatprep.mubr.f32.mxu0 %v3291
    %3397 = vmatmul.mubr.f32.gmra.mrb[0].mxu0 %v2979
    %v3398 = vpop.f32.mrb[0].mxu0
    %v3399 = vadd.f32 0.0, %v3398
    %v3400 = vpop.f32.mrb[0].mxu0
    %3401 = vdwg.mxu0
    %v3402 = vadd.f32 %v2098, %v3394
    %v3403 = vadd.f32 %v2099, %v3399
    %v3404 = vmul.f32 %v3402, %v3402
    %v3405 = vmul.f32 %v3403, %v3403
    %v3406 = vrot.slane %v3404, 4
    %v3407 = vadd.f32 %v3404, %v3406
    %v3408 = vrot.slane %v3407, 2
    %v3409 = vadd.f32 %v3407, %v3408
    %v3410 = vrot.slane %v3409, 1
    %v3411 = vadd.f32 %v3409, %v3410
    %v3412 = vrot.slane %v3405, 4
    %v3413 = vadd.f32 %v3405, %v3412
    %v3414 = vrot.slane %v3413, 2
    %v3415 = vadd.f32 %v3413, %v3414
    %v3416 = vrot.slane %v3415, 1
    %v3417 = vadd.f32 %v3415, %v3416
    %v3418 = vmul.f32 %v3411, %v313
    %v3419 = vmul.f32 %v3417, %v313
    %v3420 = vrsqrt.pop %v3418
    %v3421 = vmul.f32 %v3418, %v3420
    %vm3422 = vcmp.eq.f32.partialorder %v3418, inf
    %v3423 = vsel %vm3422, %v3418, %v3421
    %vm3424 = vcmp.eq.f32.partialorder %v3418, 0.0
    %v3425 = vand.u32 %v3418, 2147483648
    %v3426 = vsel %vm3424, %v3425, %v3423
    %v3427 = vrsqrt.pop %v3419
    %v3428 = vmul.f32 %v3419, %v3427
    %vm3429 = vcmp.eq.f32.partialorder %v3419, inf
    %v3430 = vsel %vm3429, %v3419, %v3428
    %vm3431 = vcmp.eq.f32.partialorder %v3419, 0.0
    %v3432 = vand.u32 %v3419, 2147483648
    %v3433 = vsel %vm3431, %v3432, %v3430
    %v3434 = vadd.f32 %v3426, 1e-05
    %v3435 = vadd.f32 %v3433, 1e-05
    %v3436 = vrcp.pop %v3434
    %v3437 = vrcp.pop %v3435
    %v3438 = vmul.f32 %v3402, %v3436
    %v3439 = vmul.f32 %v3403, %v3437
    %s3440 = scalar_lea.vmem [#allocation7], 1
    %v3441 = vld [vmem:[%s3440] sm:$0x1]
    %v3443 = vlaneseq
    %v3444 = vshrl.u32 %v3443, 7
    %v3445 = vsub.s32 0, %v3444
    %v3446 = vrot.slane %v3441, %v3445
    %v3448 = vmul.f32 %v3438, %v3446
    %v3449 = vmul.f32 %v3439, %v3446
    %s3450 = scalar_lea.vmem [#allocation11], 512
    %v3451 = vld [vmem:[%s3450] sm:$0xff]
    %v3452 = vld [vmem:[%s3450 + $0x8] sm:$0xff]
    %v3453 = vld [vmem:[%s3450 + $0x10] sm:$0xff]
    %v3454 = vld [vmem:[%s3450 + $0x18] sm:$0xff]
    %v3455 = vld [vmem:[%s3450 + $0x20] sm:$0xff]
    %v3456 = vld [vmem:[%s3450 + $0x28] sm:$0xff]
    %v3457 = vld [vmem:[%s3450 + $0x30] sm:$0xff]
    %v3458 = vld [vmem:[%s3450 + $0x38] sm:$0xff]
    %v3459 = vld [vmem:[%s3450 + $0x40] sm:$0xff]
    %v3460 = vld [vmem:[%s3450 + $0x48] sm:$0xff]
    %v3461 = vld [vmem:[%s3450 + $0x50] sm:$0xff]
    %v3462 = vld [vmem:[%s3450 + $0x58] sm:$0xff]
    %v3463 = vld [vmem:[%s3450 + $0x60] sm:$0xff]
    %v3464 = vld [vmem:[%s3450 + $0x68] sm:$0xff]
    %v3465 = vld [vmem:[%s3450 + $0x70] sm:$0xff]
    %v3466 = vld [vmem:[%s3450 + $0x78] sm:$0xff]
    %v3467 = vld [vmem:[%s3450 + $0x80] sm:$0xff]
    %v3468 = vld [vmem:[%s3450 + $0x88] sm:$0xff]
    %v3469 = vld [vmem:[%s3450 + $0x90] sm:$0xff]
    %v3470 = vld [vmem:[%s3450 + $0x98] sm:$0xff]
    %v3471 = vld [vmem:[%s3450 + $0xa0] sm:$0xff]
    %v3472 = vld [vmem:[%s3450 + $0xa8] sm:$0xff]
    %v3473 = vld [vmem:[%s3450 + $0xb0] sm:$0xff]
    %v3474 = vld [vmem:[%s3450 + $0xb8] sm:$0xff]
    %v3475 = vld [vmem:[%s3450 + $0xc0] sm:$0xff]
    %v3476 = vld [vmem:[%s3450 + $0xc8] sm:$0xff]
    %v3477 = vld [vmem:[%s3450 + $0xd0] sm:$0xff]
    %v3478 = vld [vmem:[%s3450 + $0xd8] sm:$0xff]
    %v3479 = vld [vmem:[%s3450 + $0xe0] sm:$0xff]
    %v3480 = vld [vmem:[%s3450 + $0xe8] sm:$0xff]
    %v3481 = vld [vmem:[%s3450 + $0xf0] sm:$0xff]
    %v3482 = vld [vmem:[%s3450 + $0xf8] sm:$0xff]
    %v3483 = vld [vmem:[%s3450 + $0x100] sm:$0xff]
    %v3484 = vld [vmem:[%s3450 + $0x108] sm:$0xff]
    %v3485 = vld [vmem:[%s3450 + $0x110] sm:$0xff]
    %v3486 = vld [vmem:[%s3450 + $0x118] sm:$0xff]
    %v3487 = vld [vmem:[%s3450 + $0x120] sm:$0xff]
    %v3488 = vld [vmem:[%s3450 + $0x128] sm:$0xff]
    %v3489 = vld [vmem:[%s3450 + $0x130] sm:$0xff]
    %v3490 = vld [vmem:[%s3450 + $0x138] sm:$0xff]
    %v3491 = vld [vmem:[%s3450 + $0x140] sm:$0xff]
    %v3492 = vld [vmem:[%s3450 + $0x148] sm:$0xff]
    %v3493 = vld [vmem:[%s3450 + $0x150] sm:$0xff]
    %v3494 = vld [vmem:[%s3450 + $0x158] sm:$0xff]
    %v3495 = vld [vmem:[%s3450 + $0x160] sm:$0xff]
    %v3496 = vld [vmem:[%s3450 + $0x168] sm:$0xff]
    %v3497 = vld [vmem:[%s3450 + $0x170] sm:$0xff]
    %v3498 = vld [vmem:[%s3450 + $0x178] sm:$0xff]
    %v3499 = vld [vmem:[%s3450 + $0x180] sm:$0xff]
    %v3500 = vld [vmem:[%s3450 + $0x188] sm:$0xff]
    %v3501 = vld [vmem:[%s3450 + $0x190] sm:$0xff]
    %v3502 = vld [vmem:[%s3450 + $0x198] sm:$0xff]
    %v3503 = vld [vmem:[%s3450 + $0x1a0] sm:$0xff]
    %v3504 = vld [vmem:[%s3450 + $0x1a8] sm:$0xff]
    %v3505 = vld [vmem:[%s3450 + $0x1b0] sm:$0xff]
    %v3506 = vld [vmem:[%s3450 + $0x1b8] sm:$0xff]
    %v3507 = vld [vmem:[%s3450 + $0x1c0] sm:$0xff]
    %v3508 = vld [vmem:[%s3450 + $0x1c8] sm:$0xff]
    %v3509 = vld [vmem:[%s3450 + $0x1d0] sm:$0xff]
    %v3510 = vld [vmem:[%s3450 + $0x1d8] sm:$0xff]
    %v3511 = vld [vmem:[%s3450 + $0x1e0] sm:$0xff]
    %v3512 = vld [vmem:[%s3450 + $0x1e8] sm:$0xff]
    %v3513 = vld [vmem:[%s3450 + $0x1f0] sm:$0xff]
    %v3514 = vld [vmem:[%s3450 + $0x1f8] sm:$0xff]
    %3515 = vmatprep.subr.mxu0 %v3452
    %3516 = vmatpush1.msra.mxu0 %v3451
    %3517 = vmatprep.subr.mxu0 %v3456
    %3518 = vmatpush1.msra.mxu0 %v3455
    %3519 = vmatprep.subr.mxu0 %v3460
    %3520 = vmatpush1.msra.mxu0 %v3459
    %3521 = vmatprep.subr.mxu0 %v3464
    %3522 = vmatpush1.msra.mxu0 %v3463
    %3523 = vmatprep.subr.mxu0 %v3468
    %3524 = vmatpush1.msra.mxu0 %v3467
    %3525 = vmatprep.subr.mxu0 %v3472
    %3526 = vmatpush1.msra.mxu0 %v3471
    %3527 = vmatprep.subr.mxu0 %v3476
    %3528 = vmatpush1.msra.mxu0 %v3475
    %3529 = vmatprep.subr.mxu0 %v3480
    %3530 = vmatpush1.msra.mxu0 %v3479
    %3531 = vmatprep.subr.mxu0 %v3484
    %3532 = vmatpush1.msra.mxu0 %v3483
    %3533 = vmatprep.subr.mxu0 %v3488
    %3534 = vmatpush1.msra.mxu0 %v3487
    %3535 = vmatprep.subr.mxu0 %v3492
    %3536 = vmatpush1.msra.mxu0 %v3491
    %3537 = vmatprep.subr.mxu0 %v3496
    %3538 = vmatpush1.msra.mxu0 %v3495
    %3539 = vmatprep.subr.mxu0 %v3500
    %3540 = vmatpush1.msra.mxu0 %v3499
    %3541 = vmatprep.subr.mxu0 %v3504
    %3542 = vmatpush1.msra.mxu0 %v3503
    %3543 = vmatprep.subr.mxu0 %v3508
    %3544 = vmatpush1.msra.mxu0 %v3507
    %3545 = vmatprep.subr.mxu0 %v3512
    %3546 = vmatpush1.msra.mxu0 %v3511
    %3547 = vmatprep.subr.mxu0 0.0
    %3548 = vmatpush1.msra.mxu0 0.0
    %3549 = vmatprep.subr.mxu0 0.0
    %3550 = vmatpush1.msra.mxu0 0.0
    %3551 = vmatprep.subr.mxu0 0.0
    %3552 = vmatpush1.msra.mxu0 0.0
    %3553 = vmatprep.subr.mxu0 0.0
    %3554 = vmatpush1.msra.mxu0 0.0
    %3555 = vmatprep.subr.mxu0 0.0
    %3556 = vmatpush1.msra.mxu0 0.0
    %3557 = vmatprep.subr.mxu0 0.0
    %3558 = vmatpush1.msra.mxu0 0.0
    %3559 = vmatprep.subr.mxu0 0.0
    %3560 = vmatpush1.msra.mxu0 0.0
    %3561 = vmatprep.subr.mxu0 0.0
    %3562 = vmatpush1.msra.mxu0 0.0
    %3563 = vmatprep.subr.mxu0 0.0
    %3564 = vmatpush1.msra.mxu0 0.0
    %3565 = vmatprep.subr.mxu0 0.0
    %3566 = vmatpush1.msra.mxu0 0.0
    %3567 = vmatprep.subr.mxu0 0.0
    %3568 = vmatpush1.msra.mxu0 0.0
    %3569 = vmatprep.subr.mxu0 0.0
    %3570 = vmatpush1.msra.mxu0 0.0
    %3571 = vmatprep.subr.mxu0 0.0
    %3572 = vmatpush1.msra.mxu0 0.0
    %3573 = vmatprep.subr.mxu0 0.0
    %3574 = vmatpush1.msra.mxu0 0.0
    %3575 = vmatprep.subr.mxu0 0.0
    %3576 = vmatpush1.msra.mxu0 0.0
    %3577 = vmatprep.subr.mxu0 0.0
    %3578 = vmatpush1.msra.mxu0 0.0
    %3579 = vmatprep.mubr.f32.mxu0 0.0
    %3580 = vmatmul.mubr.f32.gmra.mrb[0].mxu0 %v3448
    %v3581 = vpop.f32.mrb[0].mxu0
    %v3582 = vadd.f32 0.0, %v3581
    %v3583 = vpop.f32.mrb[0].mxu0
    %v3584 = vadd.f32 0.0, %v3583
    %3585 = vmatprep.mubr.f32.mxu0 0.0
    %3586 = vmatmul.mubr.f32.gmra.mrb[0].mxu0 %v3449
    %v3587 = vpop.f32.mrb[0].mxu0
    %v3588 = vadd.f32 0.0, %v3587
    %v3589 = vpop.f32.mrb[0].mxu0
    %v3590 = vadd.f32 0.0, %v3589
    %3591 = vdwg.mxu0
    %3592 = vmatprep.subr.mxu0 %v3454
    %3593 = vmatpush1.msra.mxu0 %v3453
    %3594 = vmatprep.subr.mxu0 %v3458
    %3595 = vmatpush1.msra.mxu0 %v3457
    %3596 = vmatprep.subr.mxu0 %v3462
    %3597 = vmatpush1.msra.mxu0 %v3461
    %3598 = vmatprep.subr.mxu0 %v3466
    %3599 = vmatpush1.msra.mxu0 %v3465
    %3600 = vmatprep.subr.mxu0 %v3470
    %3601 = vmatpush1.msra.mxu0 %v3469
    %3602 = vmatprep.subr.mxu0 %v3474
    %3603 = vmatpush1.msra.mxu0 %v3473
    %3604 = vmatprep.subr.mxu0 %v3478
    %3605 = vmatpush1.msra.mxu0 %v3477
    %3606 = vmatprep.subr.mxu0 %v3482
    %3607 = vmatpush1.msra.mxu0 %v3481
    %3608 = vmatprep.subr.mxu0 %v3486
    %3609 = vmatpush1.msra.mxu0 %v3485
    %3610 = vmatprep.subr.mxu0 %v3490
    %3611 = vmatpush1.msra.mxu0 %v3489
    %3612 = vmatprep.subr.mxu0 %v3494
    %3613 = vmatpush1.msra.mxu0 %v3493
    %3614 = vmatprep.subr.mxu0 %v3498
    %3615 = vmatpush1.msra.mxu0 %v3497
    %3616 = vmatprep.subr.mxu0 %v3502
    %3617 = vmatpush1.msra.mxu0 %v3501
    %3618 = vmatprep.subr.mxu0 %v3506
    %3619 = vmatpush1.msra.mxu0 %v3505
    %3620 = vmatprep.subr.mxu0 %v3510
    %3621 = vmatpush1.msra.mxu0 %v3509
    %3622 = vmatprep.subr.mxu0 %v3514
    %3623 = vmatpush1.msra.mxu0 %v3513
    %3624 = vmatprep.subr.mxu0 0.0
    %3625 = vmatpush1.msra.mxu0 0.0
    %3626 = vmatprep.subr.mxu0 0.0
    %3627 = vmatpush1.msra.mxu0 0.0
    %3628 = vmatprep.subr.mxu0 0.0
    %3629 = vmatpush1.msra.mxu0 0.0
    %3630 = vmatprep.subr.mxu0 0.0
    %3631 = vmatpush1.msra.mxu0 0.0
    %3632 = vmatprep.subr.mxu0 0.0
    %3633 = vmatpush1.msra.mxu0 0.0
    %3634 = vmatprep.subr.mxu0 0.0
    %3635 = vmatpush1.msra.mxu0 0.0
    %3636 = vmatprep.subr.mxu0 0.0
    %3637 = vmatpush1.msra.mxu0 0.0
    %3638 = vmatprep.subr.mxu0 0.0
    %3639 = vmatpush1.msra.mxu0 0.0
    %3640 = vmatprep.subr.mxu0 0.0
    %3641 = vmatpush1.msra.mxu0 0.0
    %3642 = vmatprep.subr.mxu0 0.0
    %3643 = vmatpush1.msra.mxu0 0.0
    %3644 = vmatprep.subr.mxu0 0.0
    %3645 = vmatpush1.msra.mxu0 0.0
    %3646 = vmatprep.subr.mxu0 0.0
    %3647 = vmatpush1.msra.mxu0 0.0
    %3648 = vmatprep.subr.mxu0 0.0
    %3649 = vmatpush1.msra.mxu0 0.0
    %3650 = vmatprep.subr.mxu0 0.0
    %3651 = vmatpush1.msra.mxu0 0.0
    %3652 = vmatprep.subr.mxu0 0.0
    %3653 = vmatpush1.msra.mxu0 0.0
    %3654 = vmatprep.subr.mxu0 0.0
    %3655 = vmatpush1.msra.mxu0 0.0
    %3656 = vmatprep.mubr.f32.mxu0 0.0
    %3657 = vmatmul.mubr.f32.gmra.mrb[0].mxu0 %v3448
    %v3658 = vpop.f32.mrb[0].mxu0
    %v3659 = vadd.f32 0.0, %v3658
    %v3660 = vpop.f32.mrb[0].mxu0
    %v3661 = vadd.f32 0.0, %v3660
    %3662 = vmatprep.mubr.f32.mxu0 0.0
    %3663 = vmatmul.mubr.f32.gmra.mrb[0].mxu0 %v3449
    %v3664 = vpop.f32.mrb[0].mxu0
    %v3665 = vadd.f32 0.0, %v3664
    %v3666 = vpop.f32.mrb[0].mxu0
    %v3667 = vadd.f32 0.0, %v3666
    %3668 = vdwg.mxu0
    %v3669 = vmul.f32 %v3659, %v3582
    %v3670 = vmul.f32 %v3661, %v3584
    %v3671 = vmul.f32 %v3665, %v3588
    %v3672 = vmul.f32 %v3667, %v3590
    %v3673 = vxor.u32 %v3669, 2147483648
    %v3674 = vxor.u32 %v3670, 2147483648
    %v3675 = vxor.u32 %v3671, 2147483648
    %v3676 = vxor.u32 %v3672, 2147483648
    %v3677 = vmul.f32 %v3673, 1.442695
    %v3678 = vpow.pop %v3677
    %v3679 = vmul.f32 %v3674, 1.442695
    %v3680 = vpow.pop %v3679
    %v3681 = vmul.f32 %v3675, 1.442695
    %v3682 = vpow.pop %v3681
    %v3683 = vmul.f32 %v3676, 1.442695
    %v3684 = vpow.pop %v3683
    %v3685 = vadd.f32 %v3678, 1.0
    %v3686 = vadd.f32 %v3680, 1.0
    %v3687 = vadd.f32 %v3682, 1.0
    %v3688 = vadd.f32 %v3684, 1.0
    %v3689 = vrcp.pop %v3685
    %v3690 = vmul.f32 1.0, %v3689
    %v3691 = vrcp.pop %v3686
    %v3692 = vmul.f32 1.0, %v3691
    %v3693 = vrcp.pop %v3687
    %v3694 = vmul.f32 1.0, %v3693
    %v3695 = vrcp.pop %v3688
    %v3696 = vmul.f32 1.0, %v3695
    %v3697 = vmul.f32 %v3669, %v3690
    %v3698 = vmul.f32 %v3670, %v3692
    %v3699 = vmul.f32 %v3671, %v3694
    %v3700 = vmul.f32 %v3672, %v3696
    %s3701 = scalar_lea.vmem [#allocation13], 256
    %v3702 = vld [vmem:[%s3701] sm:$0xff]
    %v3703 = vld [vmem:[%s3701 + $0x8] sm:$0xff]
    %v3704 = vld [vmem:[%s3701 + $0x10] sm:$0xff]
    %v3705 = vld [vmem:[%s3701 + $0x18] sm:$0xff]
    %v3706 = vld [vmem:[%s3701 + $0x20] sm:$0xff]
    %v3707 = vld [vmem:[%s3701 + $0x28] sm:$0xff]
    %v3708 = vld [vmem:[%s3701 + $0x30] sm:$0xff]
    %v3709 = vld [vmem:[%s3701 + $0x38] sm:$0xff]
    %v3710 = vld [vmem:[%s3701 + $0x40] sm:$0xff]
    %v3711 = vld [vmem:[%s3701 + $0x48] sm:$0xff]
    %v3712 = vld [vmem:[%s3701 + $0x50] sm:$0xff]
    %v3713 = vld [vmem:[%s3701 + $0x58] sm:$0xff]
    %v3714 = vld [vmem:[%s3701 + $0x60] sm:$0xff]
    %v3715 = vld [vmem:[%s3701 + $0x68] sm:$0xff]
    %v3716 = vld [vmem:[%s3701 + $0x70] sm:$0xff]
    %v3717 = vld [vmem:[%s3701 + $0x78] sm:$0xff]
    %v3718 = vld [vmem:[%s3701 + $0x80] sm:$0xff]
    %v3719 = vld [vmem:[%s3701 + $0x88] sm:$0xff]
    %v3720 = vld [vmem:[%s3701 + $0x90] sm:$0xff]
    %v3721 = vld [vmem:[%s3701 + $0x98] sm:$0xff]
    %v3722 = vld [vmem:[%s3701 + $0xa0] sm:$0xff]
    %v3723 = vld [vmem:[%s3701 + $0xa8] sm:$0xff]
    %v3724 = vld [vmem:[%s3701 + $0xb0] sm:$0xff]
    %v3725 = vld [vmem:[%s3701 + $0xb8] sm:$0xff]
    %v3726 = vld [vmem:[%s3701 + $0xc0] sm:$0xff]
    %v3727 = vld [vmem:[%s3701 + $0xc8] sm:$0xff]
    %v3728 = vld [vmem:[%s3701 + $0xd0] sm:$0xff]
    %v3729 = vld [vmem:[%s3701 + $0xd8] sm:$0xff]
    %v3730 = vld [vmem:[%s3701 + $0xe0] sm:$0xff]
    %v3731 = vld [vmem:[%s3701 + $0xe8] sm:$0xff]
    %v3732 = vld [vmem:[%s3701 + $0xf0] sm:$0xff]
    %v3733 = vld [vmem:[%s3701 + $0xf8] sm:$0xff]
    %3734 = vmatprep.subr.mxu0 0.0
    %3735 = vmatpush1.msra.mxu0 %v3702
    %3736 = vmatprep.subr.mxu0 0.0
    %3737 = vmatpush1.msra.mxu0 %v3703
    %3738 = vmatprep.subr.mxu0 0.0
    %3739 = vmatpush1.msra.mxu0 %v3704
    %3740 = vmatprep.subr.mxu0 0.0
    %3741 = vmatpush1.msra.mxu0 %v3705
    %3742 = vmatprep.subr.mxu0 0.0
    %3743 = vmatpush1.msra.mxu0 %v3706
    %3744 = vmatprep.subr.mxu0 0.0
    %3745 = vmatpush1.msra.mxu0 %v3707
    %3746 = vmatprep.subr.mxu0 0.0
    %3747 = vmatpush1.msra.mxu0 %v3708
    %3748 = vmatprep.subr.mxu0 0.0
    %3749 = vmatpush1.msra.mxu0 %v3709
    %3750 = vmatprep.subr.mxu0 0.0
    %3751 = vmatpush1.msra.mxu0 %v3710
    %3752 = vmatprep.subr.mxu0 0.0
    %3753 = vmatpush1.msra.mxu0 %v3711
    %3754 = vmatprep.subr.mxu0 0.0
    %3755 = vmatpush1.msra.mxu0 %v3712
    %3756 = vmatprep.subr.mxu0 0.0
    %3757 = vmatpush1.msra.mxu0 %v3713
    %3758 = vmatprep.subr.mxu0 0.0
    %3759 = vmatpush1.msra.mxu0 %v3714
    %3760 = vmatprep.subr.mxu0 0.0
    %3761 = vmatpush1.msra.mxu0 %v3715
    %3762 = vmatprep.subr.mxu0 0.0
    %3763 = vmatpush1.msra.mxu0 %v3716
    %3764 = vmatprep.subr.mxu0 0.0
    %3765 = vmatpush1.msra.mxu0 %v3717
    %3766 = vmatprep.subr.mxu0 0.0
    %3767 = vmatpush1.msra.mxu0 %v3718
    %3768 = vmatprep.subr.mxu0 0.0
    %3769 = vmatpush1.msra.mxu0 %v3719
    %3770 = vmatprep.subr.mxu0 0.0
    %3771 = vmatpush1.msra.mxu0 %v3720
    %3772 = vmatprep.subr.mxu0 0.0
    %3773 = vmatpush1.msra.mxu0 %v3721
    %3774 = vmatprep.subr.mxu0 0.0
    %3775 = vmatpush1.msra.mxu0 %v3722
    %3776 = vmatprep.subr.mxu0 0.0
    %3777 = vmatpush1.msra.mxu0 %v3723
    %3778 = vmatprep.subr.mxu0 0.0
    %3779 = vmatpush1.msra.mxu0 %v3724
    %3780 = vmatprep.subr.mxu0 0.0
    %3781 = vmatpush1.msra.mxu0 %v3725
    %3782 = vmatprep.subr.mxu0 0.0
    %3783 = vmatpush1.msra.mxu0 %v3726
    %3784 = vmatprep.subr.mxu0 0.0
    %3785 = vmatpush1.msra.mxu0 %v3727
    %3786 = vmatprep.subr.mxu0 0.0
    %3787 = vmatpush1.msra.mxu0 %v3728
    %3788 = vmatprep.subr.mxu0 0.0
    %3789 = vmatpush1.msra.mxu0 %v3729
    %3790 = vmatprep.subr.mxu0 0.0
    %3791 = vmatpush1.msra.mxu0 %v3730
    %3792 = vmatprep.subr.mxu0 0.0
    %3793 = vmatpush1.msra.mxu0 %v3731
    %3794 = vmatprep.subr.mxu0 0.0
    %3795 = vmatpush1.msra.mxu0 %v3732
    %3796 = vmatprep.subr.mxu0 0.0
    %3797 = vmatpush1.msra.mxu0 %v3733
    %3798 = vmatprep.mubr.f32.mxu0 %v3698
    %3799 = vmatmul.mubr.f32.gmra.mrb[0].mxu0 %v3697
    %v3800 = vpop.f32.mrb[0].mxu0
    %v3801 = vadd.f32 0.0, %v3800
    %v3802 = vpop.f32.mrb[0].mxu0
    %3803 = vmatprep.mubr.f32.mxu0 %v3700
    %3804 = vmatmul.mubr.f32.gmra.mrb[0].mxu0 %v3699
    %v3805 = vpop.f32.mrb[0].mxu0
    %v3806 = vadd.f32 0.0, %v3805
    %v3807 = vpop.f32.mrb[0].mxu0
    %3808 = vdwg.mxu0
    %v3809 = vadd.f32 %v3448, %v3801
    %v3810 = vadd.f32 %v3449, %v3806
    %v3811 = vld [vmem:[#allocation17] sm:$0xff]
    %v3812 = vld [vmem:[#allocation17 + $0x8] sm:$0xff]
    %v3813 = vld [vmem:[#allocation17 + $0x10] sm:$0xff]
    %v3814 = vld [vmem:[#allocation17 + $0x18] sm:$0xff]
    %v3815 = vld [vmem:[#allocation17 + $0x20] sm:$0xff]
    %v3816 = vld [vmem:[#allocation17 + $0x28] sm:$0xff]
    %v3817 = vld [vmem:[#allocation17 + $0x30] sm:$0xff]
    %v3818 = vld [vmem:[#allocation17 + $0x38] sm:$0xff]
    %v3819 = vld [vmem:[#allocation17 + $0x40] sm:$0xff]
    %v3820 = vld [vmem:[#allocation17 + $0x48] sm:$0xff]
    %v3821 = vld [vmem:[#allocation17 + $0x50] sm:$0xff]
    %v3822 = vld [vmem:[#allocation17 + $0x58] sm:$0xff]
    %v3823 = vld [vmem:[#allocation17 + $0x60] sm:$0xff]
    %v3824 = vld [vmem:[#allocation17 + $0x68] sm:$0xff]
    %v3825 = vld [vmem:[#allocation17 + $0x70] sm:$0xff]
    %v3826 = vld [vmem:[#allocation17 + $0x78] sm:$0xff]
    %v3827 = vld [vmem:[#allocation19] sm:$0x1]
    %v3829 = vlaneseq
    %v3830 = vshrl.u32 %v3829, 7
    %v3831 = vsub.s32 0, %v3830
    %v3832 = vrot.slane %v3827, %v3831
    %3834 = vmatprep.subr.mxu0 0.0
    %3835 = vmatpush1.msra.mxu0 %v3811
    %3836 = vmatprep.subr.mxu0 0.0
    %3837 = vmatpush1.msra.mxu0 %v3812
    %3838 = vmatprep.subr.mxu0 0.0
    %3839 = vmatpush1.msra.mxu0 %v3813
    %3840 = vmatprep.subr.mxu0 0.0
    %3841 = vmatpush1.msra.mxu0 %v3814
    %3842 = vmatprep.subr.mxu0 0.0
    %3843 = vmatpush1.msra.mxu0 %v3815
    %3844 = vmatprep.subr.mxu0 0.0
    %3845 = vmatpush1.msra.mxu0 %v3816
    %3846 = vmatprep.subr.mxu0 0.0
    %3847 = vmatpush1.msra.mxu0 %v3817
    %3848 = vmatprep.subr.mxu0 0.0
    %3849 = vmatpush1.msra.mxu0 %v3818
    %3850 = vmatprep.subr.mxu0 0.0
    %3851 = vmatpush1.msra.mxu0 %v3819
    %3852 = vmatprep.subr.mxu0 0.0
    %3853 = vmatpush1.msra.mxu0 %v3820
    %3854 = vmatprep.subr.mxu0 0.0
    %3855 = vmatpush1.msra.mxu0 %v3821
    %3856 = vmatprep.subr.mxu0 0.0
    %3857 = vmatpush1.msra.mxu0 %v3822
    %3858 = vmatprep.subr.mxu0 0.0
    %3859 = vmatpush1.msra.mxu0 %v3823
    %3860 = vmatprep.subr.mxu0 0.0
    %3861 = vmatpush1.msra.mxu0 %v3824
    %3862 = vmatprep.subr.mxu0 0.0
    %3863 = vmatpush1.msra.mxu0 %v3825
    %3864 = vmatprep.subr.mxu0 0.0
    %3865 = vmatpush1.msra.mxu0 %v3826
    %3866 = vmatprep.subr.mxu0 0.0
    %3867 = vmatpush1.msra.mxu0 0.0
    %3868 = vmatprep.subr.mxu0 0.0
    %3869 = vmatpush1.msra.mxu0 0.0
    %3870 = vmatprep.subr.mxu0 0.0
    %3871 = vmatpush1.msra.mxu0 0.0
    %3872 = vmatprep.subr.mxu0 0.0
    %3873 = vmatpush1.msra.mxu0 0.0
    %3874 = vmatprep.subr.mxu0 0.0
    %3875 = vmatpush1.msra.mxu0 0.0
    %3876 = vmatprep.subr.mxu0 0.0
    %3877 = vmatpush1.msra.mxu0 0.0
    %3878 = vmatprep.subr.mxu0 0.0
    %3879 = vmatpush1.msra.mxu0 0.0
    %3880 = vmatprep.subr.mxu0 0.0
    %3881 = vmatpush1.msra.mxu0 0.0
    %3882 = vmatprep.subr.mxu0 0.0
    %3883 = vmatpush1.msra.mxu0 0.0
    %3884 = vmatprep.subr.mxu0 0.0
    %3885 = vmatpush1.msra.mxu0 0.0
    %3886 = vmatprep.subr.mxu0 0.0
    %3887 = vmatpush1.msra.mxu0 0.0
    %3888 = vmatprep.subr.mxu0 0.0
    %3889 = vmatpush1.msra.mxu0 0.0
    %3890 = vmatprep.subr.mxu0 0.0
    %3891 = vmatpush1.msra.mxu0 0.0
    %3892 = vmatprep.subr.mxu0 0.0
    %3893 = vmatpush1.msra.mxu0 0.0
    %3894 = vmatprep.subr.mxu0 0.0
    %3895 = vmatpush1.msra.mxu0 0.0
    %3896 = vmatprep.subr.mxu0 0.0
    %3897 = vmatpush1.msra.mxu0 0.0
    %3898 = vmatprep.mubr.f32.mxu0 0.0
    %3899 = vmatmul.mubr.f32.gmra.mrb[0].mxu0 %v3809
    %v3900 = vpop.f32.mrb[0].mxu0
    %v3901 = vadd.f32 %v3832, %v3900
    %v3902 = vpop.f32.mrb[0].mxu0
    %3903 = vmatprep.mubr.f32.mxu0 0.0
    %3904 = vmatmul.mubr.f32.gmra.mrb[0].mxu0 %v3810
    %v3905 = vpop.f32.mrb[0].mxu0
    %v3906 = vadd.f32 %v3832, %v3905
    %v3907 = vpop.f32.mrb[0].mxu0
    %3908 = vdwg.mxu0
    %3909 = vst [vmem:[#allocation20] sm:$0xff] %v3901
    %3910 = vst [vmem:[#allocation20 + $0x8] sm:$0xff] %v3906
    // Predicated region
    $region94: #{tpu_custom_call.1} parent=1 // pred_check
      _
    $region95: #{tpu_custom_call.1} parent=1 // pred_check_branch
      %3912 = sbr.rel (0) target = $region97
    $region96: #{tpu_custom_call.1} parent=1 // pred_region
      %s3914 = ssub.s32 256, 256
      %3915 = vsyncadd [#allocation4], %s3914
      %s3916 = sshll.u32 [#allocation20], 4
      %s3917 = int_to_ptr.vmem [resolvable:$true] %s3916
      %3922 = dma.vmem_to_hbm [thread:$0]  %s3917, 256, %s12, [#allocation4], 128, 128, 8
    $region97: #{tpu_custom_call.1} parent=1 // pred_fallthru
      _
    // Predicated region
    $region98: #{tpu_custom_call.1} parent=1 // pred_check
      _
    $region99: #{tpu_custom_call.1} parent=1 // pred_check_branch
      %3924 = sbr.rel (0) target = $region101
    $region100: #{tpu_custom_call.1} parent=1 // pred_region
      %3925 = dma.done [#allocation4], 256
    $region101: #{tpu_custom_call.1} parent=1 // pred_fallthru
      _
    %3926 = vsyncpa [#allocation3], 1
    %3927 = vsyncpa [#allocation6], 1
    %3928 = vsyncpa [#allocation9], 1
    %3929 = vsyncpa [#allocation12], 1
    %3930 = vsyncpa [#allocation15], 1
    %3931 = vsyncpa [#allocation18], 1
    %3932 = vsyncpa [#allocation4], 1

</llo_original>
